<compile_context>
chip_gen: v6e
topology: v6e:2x2x1
jax: 0.10.0
libtpu: 0.0.40
codegen_flags: <defaults>
</compile_context>

<pallas_src>
import jax
import jax.numpy as jnp
import numpy as np
from jax.experimental import pallas as pl
from jax.experimental.pallas import tpu as pltpu


# ----------------------------- Pallas kernel --------------------------------
def _make_resblock3_kernel(TH, Wo, downsample):
    """TH: output rows per tile, Wo: output width (static ints)."""
    M = TH * Wo   # per-step matmul M dim (multiple of 8; 128 on real shapes)

    def kernel(xm_ref, xt_ref, xb_ref,
               w1_ref, b1_ref, w2_ref, b2_ref, w3_ref, b3_ref, *rest):
        if downsample:
            wsc_ref, bsc_ref, o_ref = rest
        else:
            (o_ref,) = rest

        C1 = w1_ref.shape[1]

        r = pl.program_id(1)
        # Halo rows that fall outside the image are zero padding.
        not_first = (r > 0).astype(jnp.float32)
        not_last = (r < pl.num_programs(1) - 1).astype(jnp.float32)

        xm = xm_ref[...].reshape(M, -1)                    # (M, Cin) bf16

        # ---- conv1 (1x1, stride pre-applied) + folded BN1 + ReLU ----
        # Also recomputed on the two 1-row input halos (cheap 1x1), so conv2's
        # halo needs no extra DMA machinery.
        def conv1(x2d):
            h = jnp.dot(x2d, w1_ref[...], preferred_element_type=jnp.float32)
            return jnp.maximum(h + b1_ref[...], 0.0)       # f32

        h1 = conv1(xm).astype(jnp.bfloat16).reshape(TH, Wo, C1)
        h1_top = (conv1(xt_ref[...]) * not_first).astype(jnp.bfloat16)
        h1_bot = (conv1(xb_ref[...]) * not_last).astype(jnp.bfloat16)

        # ---- conv2 (3x3, stride 1, pad 1) ----
        # bf16 zero/halo-padded slab, then 3 accumulating tap matmuls
        # (one per ky, K = 3*C1 each) — no 9*C1-wide f32 im2col slab.
        hp = jnp.concatenate(
            [h1_top.reshape(1, Wo, C1), h1, h1_bot.reshape(1, Wo, C1)], axis=0)
        zcol = jnp.zeros((TH + 2, 1, C1), jnp.bfloat16)
        hp = jnp.concatenate([zcol, hp, zcol], axis=1)     # (TH+2, Wo+2, C1)

        acc = None
        for ky in range(3):
            cols = jnp.concatenate(
                [hp[ky:ky + TH, kx:kx + Wo, :] for kx in range(3)], axis=-1)
            part = jnp.dot(cols.reshape(M, 3 * C1), w2_ref[ky],
                           preferred_element_type=jnp.float32)
            acc = part if acc is None else acc + part
        h2 = jnp.maximum(acc + b2_ref[...], 0.0).astype(jnp.bfloat16)

        # ---- conv3 (1x1) + folded BN3 + ReLU ----
        h3 = jnp.dot(h2, w3_ref[...], preferred_element_type=jnp.float32)
        h3 = jnp.maximum(h3 + b3_ref[...], 0.0)            # (M, C3) f32

        # ---- shortcut ----
        if downsample:
            sc = jnp.dot(xm, wsc_ref[...], preferred_element_type=jnp.float32)
            sc = jnp.maximum(sc + bsc_ref[...], 0.0)
        else:
            # TODO(synk): identity shortcut carries the bf16-cast input; keep
            # an f32 copy if residual rounding across many stacked blocks
            # matters.
            sc = xm.astype(jnp.float32)

        o_ref[...] = (sc + h3).reshape(TH, Wo, -1).astype(o_ref.dtype)

    return kernel


# ------------------------------- wrapper -------------------------------------
def _fold_bn(gamma, beta, mean, var, conv_bias, eps=1e-5):
    """Fold conv bias + eval-mode BatchNorm into per-channel scale and bias."""
    scale = gamma / jnp.sqrt(var + eps)                    # (C,)
    bias = beta + scale * (conv_bias - mean)               # (C,)
    return scale, bias[None, :].astype(jnp.float32)


def _resident(arr, pipeline_mode=None):
    # Full-array block with a constant index_map: fetched once, kept in VMEM.
    nd = arr.ndim
    if pipeline_mode is None:
        return pl.BlockSpec(arr.shape, lambda n, r: (0,) * nd)
    return pl.BlockSpec(arr.shape, lambda n, r: (0,) * nd,
                        pipeline_mode=pipeline_mode)


def _pick_row_tile(Ho):
    # ~8 output rows per tile (review: 8-16) dividing Ho evenly.  Bigger tiles
    # are fine on v6e's 128 MiB VMEM, but 8 keeps the padded conv2 slab small
    # enough for v7x's 64 MiB while giving the pipeline several grid steps.
    if Ho <= 8:
        return Ho
    best = 1
    for th in range(2, 9):
        if Ho % th == 0:
            best = th
    return best


def _vmem_limit_bytes():
    # Per-generation scoped-VMEM budget (64 MiB/TC on v7x vs 128 MiB on
    # v5e/v6e), leaving ~25% headroom for compiler scratch.
    try:
        cap = pltpu.get_tpu_info().vmem_capacity_bytes
    except Exception:
        cap = 64 * 1024 * 1024
    return int(cap * 3 // 4)


def resblock3_forward(x_nchw, params, stride, downsample):
    """Pallas implementation of ResBlock3.forward (BatchNorm in eval mode)."""
    N, Cin, H, W = x_nchw.shape

    w1, cb1 = params["conv1"]
    w2, cb2 = params["conv2"]
    w3, cb3 = params["conv3"]
    C1, C2, C3 = w1.shape[0], w2.shape[0], w3.shape[0]

    if not downsample and (stride != 1 or Cin != C3):
        raise ValueError(
            "identity shortcut requires stride == 1 and in_c == out_c[2]")

    # NCHW -> NHWC; conv1/shortcut stride applied as spatial subsampling (one
    # fused XLA copy at the PyTorch boundary).
    x = jnp.transpose(x_nchw, (0, 2, 3, 1))[:, ::stride, ::stride, :]
    _, Ho, Wo, _ = x.shape
    x4 = x.astype(jnp.bfloat16)                            # (N, Ho, Wo, Cin)

    TH = _pick_row_tile(Ho)
    RT = Ho // TH

    # Fold BN scales into the conv weights (bf16); biases stay f32.
    s1, b1 = _fold_bn(*params["bn1"], cb1)
    s2, b2 = _fold_bn(*params["bn2"], cb2)
    s3, b3 = _fold_bn(*params["bn3"], cb3)
    w1_k = (jnp.transpose(w1[:, :, 0, 0]) * s1[None, :]).astype(jnp.bfloat16)
    # (ky, kx*C1 + c1, C2) layout so w2_k[ky] matches the per-ky im2col slab.
    w2_k = (jnp.transpose(w2, (2, 3, 1, 0)).reshape(3, 3 * C1, C2)
            * s2[None, None, :]).astype(jnp.bfloat16)
    w3_k = (jnp.transpose(w3[:, :, 0, 0]) * s3[None, :]).astype(jnp.bfloat16)

    weights = [w1_k, b1, w2_k, b2, w3_k, b3]
    if downsample:
        wsc, cbsc = params["conv_sc"]
        ssc, bsc = _fold_bn(*params["bn_sc"], cbsc)
        wsc_k = (jnp.transpose(wsc[:, :, 0, 0]) * ssc[None, :]).astype(jnp.bfloat16)
        weights += [wsc_k, bsc]

    # Main tile plus two clamped 1-row halo views of the same input array.
    def x_main_map(n, r):
        return (n, r, 0, 0)

    def x_top_map(n, r):
        return (n, jnp.maximum(r * TH - 1, 0), 0, 0)

    def x_bot_map(n, r):
        return (n, jnp.minimum(r * TH + TH, Ho - 1), 0, 0)

    def run(weight_mode):
        in_specs = [
            pl.BlockSpec((None, TH, Wo, Cin), x_main_map),
            pl.BlockSpec((None, None, Wo, Cin), x_top_map),
            pl.BlockSpec((None, None, Wo, Cin), x_bot_map),
        ] + [_resident(a, weight_mode) for a in weights]
        return pl.pallas_call(
            _make_resblock3_kernel(TH, Wo, downsample),
            grid=(N, RT),
            out_shape=jax.ShapeDtypeStruct((N, Ho, Wo, C3), jnp.bfloat16),
            in_specs=in_specs,
            out_specs=pl.BlockSpec((None, TH, Wo, C3), lambda n, r: (n, r, 0, 0)),
            compiler_params=pltpu.CompilerParams(
                dimension_semantics=("parallel", "parallel"),
                vmem_limit_bytes=_vmem_limit_bytes()),
        )(x4, x4, x4, *weights)

    try:
        # Single-buffer the resident weights/biases (constant index_map).
        out4 = run(pl.Buffered(buffer_count=1))
    except Exception:
        out4 = run(None)

    # Back to NCHW f32 at the framework edge.
    return jnp.transpose(out4, (0, 3, 1, 2)).astype(jnp.float32)


# ----------------------- pure-JAX reference (NCHW, f32) -----------------------
def _conv2d_ref(x, w, b, stride, padding):
    y = jax.lax.conv_general_dilated(
        x, w, window_strides=(stride, stride),
        padding=((padding, padding), (padding, padding)),
        dimension_numbers=("NCHW", "OIHW", "NCHW"),
        precision=jax.lax.Precision.HIGHEST)
    return y + b[None, :, None, None]


def _bn_ref(x, gamma, beta, mean, var, eps=1e-5):
    inv = (gamma / jnp.sqrt(var + eps))[None, :, None, None]
    return (x - mean[None, :, None, None]) * inv + beta[None, :, None, None]


def resblock3_reference(x, params, stride, downsample):
    relu = lambda t: jnp.maximum(t, 0.0)
    out = relu(_bn_ref(_conv2d_ref(x, *params["conv1"], stride, 0), *params["bn1"]))
    out = relu(_bn_ref(_conv2d_ref(out, *params["conv2"], 1, 1), *params["bn2"]))
    out = relu(_bn_ref(_conv2d_ref(out, *params["conv3"], 1, 0), *params["bn3"]))
    if downsample:
        sc = relu(_bn_ref(_conv2d_ref(x, *params["conv_sc"], stride, 0),
                          *params["bn_sc"]))
    else:
        sc = x
    return sc + out


# ------------------------- deterministic parameter init ----------------------
def init_params(key, in_c, out_c, downsample):
    ks = jax.random.split(key, 8)

    def conv(k, cin, cout, ksize):
        kw, kb = jax.random.split(k)
        w = 0.1 * jax.random.normal(kw, (cout, cin, ksize, ksize), jnp.float32)
        b = 0.1 * jax.random.normal(kb, (cout,), jnp.float32)
        return w, b

    def bn(k, c):
        k1, k2, k3, k4 = jax.random.split(k, 4)
        gamma = 1.0 + 0.1 * jax.random.normal(k1, (c,), jnp.float32)
        beta = 0.1 * jax.random.normal(k2, (c,), jnp.float32)
        mean = 0.1 * jax.random.normal(k3, (c,), jnp.float32)
        var = 0.5 + jax.random.uniform(k4, (c,), dtype=jnp.float32)
        return gamma, beta, mean, var

    p = {
        "conv1": conv(ks[0], in_c, out_c[0], 1), "bn1": bn(ks[1], out_c[0]),
        "conv2": conv(ks[2], out_c[0], out_c[1], 3), "bn2": bn(ks[3], out_c[1]),
        "conv3": conv(ks[4], out_c[1], out_c[2], 1), "bn3": bn(ks[5], out_c[2]),
    }
    if downsample:
        p["conv_sc"] = conv(ks[6], in_c, out_c[2], 1)
        p["bn_sc"] = bn(ks[7], out_c[2])
    return p


# ---------------------------------- main --------------------------------------
if __name__ == "__main__":
    key = jax.random.PRNGKey(0)
    kx, kp, kp2 = jax.random.split(key, 3)

    # Case 1: projection shortcut (downsample=True), stride 2 (Ho=8 -> 1 tile).
    in_c, out_c, stride = 4, (8, 8, 16), 2
    x = jax.random.normal(kx, (2, in_c, 16, 16), jnp.float32)
    params = init_params(kp, in_c, out_c, downsample=True)
    out = jax.block_until_ready(resblock3_forward(x, params, stride, True))
    ref = resblock3_reference(x, params, stride, True)
    np.testing.assert_allclose(np.asarray(out), np.asarray(ref),
                               atol=2e-2, rtol=2e-2)

    # Case 2: identity shortcut, stride 1 (Ho=16 -> 2 row tiles, exercises the
    # interior halo rows).
    in_c2, out_c2 = 16, (8, 8, 16)
    x2 = jax.random.normal(kx, (2, in_c2, 16, 16), jnp.float32)
    params2 = init_params(kp2, in_c2, out_c2, downsample=False)
    out2 = jax.block_until_ready(resblock3_forward(x2, params2, 1, False))
    ref2 = resblock3_reference(x2, params2, 1, False)
    np.testing.assert_allclose(np.asarray(out2), np.asarray(ref2),
                               atol=2e-2, rtol=2e-2)

    print("KERNEL_OK")
</pallas_src>

<mosaic_0001>
module attributes {stable_mosaic.version = 11 : i64} {
  func.func @kernel(%arg0: i32, %arg1: i32, %arg2: memref<1x8x8x4xbf16, #tpu.memory_space<vmem>>, %arg3: memref<1x1x8x4xbf16, #tpu.memory_space<vmem>>, %arg4: memref<1x1x8x4xbf16, #tpu.memory_space<vmem>>, %arg5: memref<4x8xbf16, #tpu.memory_space<vmem>>, %arg6: memref<1x8xf32, #tpu.memory_space<vmem>>, %arg7: memref<3x24x8xbf16, #tpu.memory_space<vmem>>, %arg8: memref<1x8xf32, #tpu.memory_space<vmem>>, %arg9: memref<8x16xbf16, #tpu.memory_space<vmem>>, %arg10: memref<1x16xf32, #tpu.memory_space<vmem>>, %arg11: memref<4x16xbf16, #tpu.memory_space<vmem>>, %arg12: memref<1x16xf32, #tpu.memory_space<vmem>>, %arg13: memref<1x8x8x16xbf16, #tpu.memory_space<vmem>>) attributes {dimension_semantics = [#tpu.dimension_semantics<parallel>, #tpu.dimension_semantics<parallel>], iteration_bounds = array<i64: 2, 1>, scalar_prefetch = 0 : i64, scratch_operands = 0 : i64, tpu.core_type = #tpu.core_type<tc>, window_params = [{transform_indices = @transform_0, window_bounds = array<i64: 1, 8, 8, 4>}, {transform_indices = @transform_1, window_bounds = array<i64: 1, 1, 8, 4>}, {transform_indices = @transform_2, window_bounds = array<i64: 1, 1, 8, 4>}, {pipeline_mode = #tpu.pipeline_mode<synchronous>, transform_indices = @transform_3, window_bounds = array<i64: 4, 8>}, {pipeline_mode = #tpu.pipeline_mode<synchronous>, transform_indices = @transform_4, window_bounds = array<i64: 1, 8>}, {pipeline_mode = #tpu.pipeline_mode<synchronous>, transform_indices = @transform_5, window_bounds = array<i64: 3, 24, 8>}, {pipeline_mode = #tpu.pipeline_mode<synchronous>, transform_indices = @transform_6, window_bounds = array<i64: 1, 8>}, {pipeline_mode = #tpu.pipeline_mode<synchronous>, transform_indices = @transform_7, window_bounds = array<i64: 8, 16>}, {pipeline_mode = #tpu.pipeline_mode<synchronous>, transform_indices = @transform_8, window_bounds = array<i64: 1, 16>}, {pipeline_mode = #tpu.pipeline_mode<synchronous>, transform_indices = @transform_9, window_bounds = array<i64: 4, 16>}, {pipeline_mode = #tpu.pipeline_mode<synchronous>, transform_indices = @transform_10, window_bounds = array<i64: 1, 16>}, {transform_indices = @transform_11, window_bounds = array<i64: 1, 8, 8, 16>}]} {
    %c0_i32 = arith.constant 0 : i32
    %0 = arith.cmpi sgt, %arg1, %c0_i32 : i32
    %1 = arith.extui %0 : i1 to i32
    %2 = arith.sitofp %1 : i32 to f32
    %c0_i32_0 = arith.constant 0 : i32
    %3 = arith.cmpi slt, %arg1, %c0_i32_0 : i32
    %4 = arith.extui %3 : i1 to i32
    %5 = arith.sitofp %4 : i32 to f32
    %c0 = arith.constant 0 : index
    %c0_1 = arith.constant 0 : index
    %c0_2 = arith.constant 0 : index
    %c0_3 = arith.constant 0 : index
    %6 = vector.load %arg2[%c0, %c0_1, %c0_2, %c0_3] : memref<1x8x8x4xbf16, #tpu.memory_space<vmem>>, vector<1x8x8x4xbf16>
    %7 = vector.shape_cast %6 : vector<1x8x8x4xbf16> to vector<8x8x4xbf16>
    %8 = vector.shape_cast %7 : vector<8x8x4xbf16> to vector<64x4xbf16>
    %c0_4 = arith.constant 0 : index
    %c0_5 = arith.constant 0 : index
    %9 = vector.load %arg5[%c0_4, %c0_5] : memref<4x8xbf16, #tpu.memory_space<vmem>>, vector<4x8xbf16>
    %cst = arith.constant dense<0.000000e+00> : vector<64x8xf32>
    %10 = tpu.matmul %8, %9, %cst {dimension_numbers = #tpu.dot_dimension_numbers<[1], [0], [0], [1], [0, 0, 1, 1], [], []>} : vector<64x4xbf16>, vector<4x8xbf16>, vector<64x8xf32> -> vector<64x8xf32>
    %c0_6 = arith.constant 0 : index
    %c0_7 = arith.constant 0 : index
    %11 = vector.load %arg6[%c0_6, %c0_7] : memref<1x8xf32, #tpu.memory_space<vmem>>, vector<1x8xf32>
    %12 = vector.broadcast %11 : vector<1x8xf32> to vector<64x8xf32>
    %13 = arith.addf %10, %12 : vector<64x8xf32>
    %cst_8 = arith.constant 0.000000e+00 : f32
    %14 = vector.broadcast %cst_8 : f32 to vector<64x8xf32>
    %15 = arith.maximumf %13, %14 : vector<64x8xf32>
    %16 = arith.truncf %15 : vector<64x8xf32> to vector<64x8xbf16>
    %17 = vector.shape_cast %16 : vector<64x8xbf16> to vector<8x8x8xbf16>
    %c0_9 = arith.constant 0 : index
    %c0_10 = arith.constant 0 : index
    %c0_11 = arith.constant 0 : index
    %c0_12 = arith.constant 0 : index
    %18 = vector.load %arg3[%c0_9, %c0_10, %c0_11, %c0_12] : memref<1x1x8x4xbf16, #tpu.memory_space<vmem>>, vector<1x1x8x4xbf16>
    %19 = vector.shape_cast %18 : vector<1x1x8x4xbf16> to vector<8x4xbf16>
    %c0_13 = arith.constant 0 : index
    %c0_14 = arith.constant 0 : index
    %20 = vector.load %arg5[%c0_13, %c0_14] : memref<4x8xbf16, #tpu.memory_space<vmem>>, vector<4x8xbf16>
    %cst_15 = arith.constant dense<0.000000e+00> : vector<8x8xf32>
    %21 = tpu.matmul %19, %20, %cst_15 {dimension_numbers = #tpu.dot_dimension_numbers<[1], [0], [0], [1], [0, 0, 1, 1], [], []>} : vector<8x4xbf16>, vector<4x8xbf16>, vector<8x8xf32> -> vector<8x8xf32>
    %c0_16 = arith.constant 0 : index
    %c0_17 = arith.constant 0 : index
    %22 = vector.load %arg6[%c0_16, %c0_17] : memref<1x8xf32, #tpu.memory_space<vmem>>, vector<1x8xf32>
    %23 = vector.broadcast %22 : vector<1x8xf32> to vector<8x8xf32>
    %24 = arith.addf %21, %23 : vector<8x8xf32>
    %cst_18 = arith.constant 0.000000e+00 : f32
    %25 = vector.broadcast %cst_18 : f32 to vector<8x8xf32>
    %26 = arith.maximumf %24, %25 : vector<8x8xf32>
    %27 = vector.broadcast %2 : f32 to vector<8x8xf32>
    %28 = arith.mulf %26, %27 : vector<8x8xf32>
    %29 = arith.truncf %28 : vector<8x8xf32> to vector<8x8xbf16>
    %c0_19 = arith.constant 0 : index
    %c0_20 = arith.constant 0 : index
    %c0_21 = arith.constant 0 : index
    %c0_22 = arith.constant 0 : index
    %30 = vector.load %arg4[%c0_19, %c0_20, %c0_21, %c0_22] : memref<1x1x8x4xbf16, #tpu.memory_space<vmem>>, vector<1x1x8x4xbf16>
    %31 = vector.shape_cast %30 : vector<1x1x8x4xbf16> to vector<8x4xbf16>
    %c0_23 = arith.constant 0 : index
    %c0_24 = arith.constant 0 : index
    %32 = vector.load %arg5[%c0_23, %c0_24] : memref<4x8xbf16, #tpu.memory_space<vmem>>, vector<4x8xbf16>
    %cst_25 = arith.constant dense<0.000000e+00> : vector<8x8xf32>
    %33 = tpu.matmul %31, %32, %cst_25 {dimension_numbers = #tpu.dot_dimension_numbers<[1], [0], [0], [1], [0, 0, 1, 1], [], []>} : vector<8x4xbf16>, vector<4x8xbf16>, vector<8x8xf32> -> vector<8x8xf32>
    %c0_26 = arith.constant 0 : index
    %c0_27 = arith.constant 0 : index
    %34 = vector.load %arg6[%c0_26, %c0_27] : memref<1x8xf32, #tpu.memory_space<vmem>>, vector<1x8xf32>
    %35 = vector.broadcast %34 : vector<1x8xf32> to vector<8x8xf32>
    %36 = arith.addf %33, %35 : vector<8x8xf32>
    %cst_28 = arith.constant 0.000000e+00 : f32
    %37 = vector.broadcast %cst_28 : f32 to vector<8x8xf32>
    %38 = arith.maximumf %36, %37 : vector<8x8xf32>
    %39 = vector.broadcast %5 : f32 to vector<8x8xf32>
    %40 = arith.mulf %38, %39 : vector<8x8xf32>
    %41 = arith.truncf %40 : vector<8x8xf32> to vector<8x8xbf16>
    %42 = vector.shape_cast %29 : vector<8x8xbf16> to vector<1x8x8xbf16>
    %43 = vector.shape_cast %41 : vector<8x8xbf16> to vector<1x8x8xbf16>
    %44 = tpu.concatenate %42, %17, %43 in 0 : vector<1x8x8xbf16>, vector<8x8x8xbf16>, vector<1x8x8xbf16> -> vector<10x8x8xbf16>
    %cst_29 = arith.constant 0.000000e+00 : bf16
    %45 = vector.broadcast %cst_29 : bf16 to vector<10x1x8xbf16>
    %46 = tpu.concatenate %45, %44, %45 in 1 : vector<10x1x8xbf16>, vector<10x8x8xbf16>, vector<10x1x8xbf16> -> vector<10x10x8xbf16>
    %47 = vector.extract_strided_slice %46 {offsets = [0, 0, 0], sizes = [8, 8, 8], strides = [1, 1, 1]} : vector<10x10x8xbf16> to vector<8x8x8xbf16>
    %48 = vector.extract_strided_slice %46 {offsets = [0, 1, 0], sizes = [8, 8, 8], strides = [1, 1, 1]} : vector<10x10x8xbf16> to vector<8x8x8xbf16>
    %49 = vector.extract_strided_slice %46 {offsets = [0, 2, 0], sizes = [8, 8, 8], strides = [1, 1, 1]} : vector<10x10x8xbf16> to vector<8x8x8xbf16>
    %50 = tpu.concatenate %47, %48, %49 in 2 : vector<8x8x8xbf16>, vector<8x8x8xbf16>, vector<8x8x8xbf16> -> vector<8x8x24xbf16>
    %51 = vector.shape_cast %50 : vector<8x8x24xbf16> to vector<64x24xbf16>
    %c0_30 = arith.constant 0 : index
    %c0_31 = arith.constant 0 : index
    %c0_32 = arith.constant 0 : index
    %52 = vector.load %arg7[%c0_30, %c0_31, %c0_32] : memref<3x24x8xbf16, #tpu.memory_space<vmem>>, vector<1x24x8xbf16>
    %53 = vector.shape_cast %52 : vector<1x24x8xbf16> to vector<24x8xbf16>
    %cst_33 = arith.constant dense<0.000000e+00> : vector<64x8xf32>
    %54 = tpu.matmul %51, %53, %cst_33 {dimension_numbers = #tpu.dot_dimension_numbers<[1], [0], [0], [1], [0, 0, 1, 1], [], []>} : vector<64x24xbf16>, vector<24x8xbf16>, vector<64x8xf32> -> vector<64x8xf32>
    %55 = vector.extract_strided_slice %46 {offsets = [1, 0, 0], sizes = [8, 8, 8], strides = [1, 1, 1]} : vector<10x10x8xbf16> to vector<8x8x8xbf16>
    %56 = vector.extract_strided_slice %46 {offsets = [1, 1, 0], sizes = [8, 8, 8], strides = [1, 1, 1]} : vector<10x10x8xbf16> to vector<8x8x8xbf16>
    %57 = vector.extract_strided_slice %46 {offsets = [1, 2, 0], sizes = [8, 8, 8], strides = [1, 1, 1]} : vector<10x10x8xbf16> to vector<8x8x8xbf16>
    %58 = tpu.concatenate %55, %56, %57 in 2 : vector<8x8x8xbf16>, vector<8x8x8xbf16>, vector<8x8x8xbf16> -> vector<8x8x24xbf16>
    %59 = vector.shape_cast %58 : vector<8x8x24xbf16> to vector<64x24xbf16>
    %c1 = arith.constant 1 : index
    %c0_34 = arith.constant 0 : index
    %c0_35 = arith.constant 0 : index
    %60 = vector.load %arg7[%c1, %c0_34, %c0_35] : memref<3x24x8xbf16, #tpu.memory_space<vmem>>, vector<1x24x8xbf16>
    %61 = vector.shape_cast %60 : vector<1x24x8xbf16> to vector<24x8xbf16>
    %cst_36 = arith.constant dense<0.000000e+00> : vector<64x8xf32>
    %62 = tpu.matmul %59, %61, %cst_36 {dimension_numbers = #tpu.dot_dimension_numbers<[1], [0], [0], [1], [0, 0, 1, 1], [], []>} : vector<64x24xbf16>, vector<24x8xbf16>, vector<64x8xf32> -> vector<64x8xf32>
    %63 = arith.addf %54, %62 : vector<64x8xf32>
    %64 = vector.extract_strided_slice %46 {offsets = [2, 0, 0], sizes = [8, 8, 8], strides = [1, 1, 1]} : vector<10x10x8xbf16> to vector<8x8x8xbf16>
    %65 = vector.extract_strided_slice %46 {offsets = [2, 1, 0], sizes = [8, 8, 8], strides = [1, 1, 1]} : vector<10x10x8xbf16> to vector<8x8x8xbf16>
    %66 = vector.extract_strided_slice %46 {offsets = [2, 2, 0], sizes = [8, 8, 8], strides = [1, 1, 1]} : vector<10x10x8xbf16> to vector<8x8x8xbf16>
    %67 = tpu.concatenate %64, %65, %66 in 2 : vector<8x8x8xbf16>, vector<8x8x8xbf16>, vector<8x8x8xbf16> -> vector<8x8x24xbf16>
    %68 = vector.shape_cast %67 : vector<8x8x24xbf16> to vector<64x24xbf16>
    %c2 = arith.constant 2 : index
    %c0_37 = arith.constant 0 : index
    %c0_38 = arith.constant 0 : index
    %69 = vector.load %arg7[%c2, %c0_37, %c0_38] : memref<3x24x8xbf16, #tpu.memory_space<vmem>>, vector<1x24x8xbf16>
    %70 = vector.shape_cast %69 : vector<1x24x8xbf16> to vector<24x8xbf16>
    %cst_39 = arith.constant dense<0.000000e+00> : vector<64x8xf32>
    %71 = tpu.matmul %68, %70, %cst_39 {dimension_numbers = #tpu.dot_dimension_numbers<[1], [0], [0], [1], [0, 0, 1, 1], [], []>} : vector<64x24xbf16>, vector<24x8xbf16>, vector<64x8xf32> -> vector<64x8xf32>
    %72 = arith.addf %63, %71 : vector<64x8xf32>
    %c0_40 = arith.constant 0 : index
    %c0_41 = arith.constant 0 : index
    %73 = vector.load %arg8[%c0_40, %c0_41] : memref<1x8xf32, #tpu.memory_space<vmem>>, vector<1x8xf32>
    %74 = vector.broadcast %73 : vector<1x8xf32> to vector<64x8xf32>
    %75 = arith.addf %72, %74 : vector<64x8xf32>
    %cst_42 = arith.constant 0.000000e+00 : f32
    %76 = vector.broadcast %cst_42 : f32 to vector<64x8xf32>
    %77 = arith.maximumf %75, %76 : vector<64x8xf32>
    %78 = arith.truncf %77 : vector<64x8xf32> to vector<64x8xbf16>
    %c0_43 = arith.constant 0 : index
    %c0_44 = arith.constant 0 : index
    %79 = vector.load %arg9[%c0_43, %c0_44] : memref<8x16xbf16, #tpu.memory_space<vmem>>, vector<8x16xbf16>
    %cst_45 = arith.constant dense<0.000000e+00> : vector<64x16xf32>
    %80 = tpu.matmul %78, %79, %cst_45 {dimension_numbers = #tpu.dot_dimension_numbers<[1], [0], [0], [1], [0, 0, 1, 1], [], []>} : vector<64x8xbf16>, vector<8x16xbf16>, vector<64x16xf32> -> vector<64x16xf32>
    %c0_46 = arith.constant 0 : index
    %c0_47 = arith.constant 0 : index
    %81 = vector.load %arg10[%c0_46, %c0_47] : memref<1x16xf32, #tpu.memory_space<vmem>>, vector<1x16xf32>
    %82 = vector.broadcast %81 : vector<1x16xf32> to vector<64x16xf32>
    %83 = arith.addf %80, %82 : vector<64x16xf32>
    %cst_48 = arith.constant 0.000000e+00 : f32
    %84 = vector.broadcast %cst_48 : f32 to vector<64x16xf32>
    %85 = arith.maximumf %83, %84 : vector<64x16xf32>
    %c0_49 = arith.constant 0 : index
    %c0_50 = arith.constant 0 : index
    %86 = vector.load %arg11[%c0_49, %c0_50] : memref<4x16xbf16, #tpu.memory_space<vmem>>, vector<4x16xbf16>
    %cst_51 = arith.constant dense<0.000000e+00> : vector<64x16xf32>
    %87 = tpu.matmul %8, %86, %cst_51 {dimension_numbers = #tpu.dot_dimension_numbers<[1], [0], [0], [1], [0, 0, 1, 1], [], []>} : vector<64x4xbf16>, vector<4x16xbf16>, vector<64x16xf32> -> vector<64x16xf32>
    %c0_52 = arith.constant 0 : index
    %c0_53 = arith.constant 0 : index
    %88 = vector.load %arg12[%c0_52, %c0_53] : memref<1x16xf32, #tpu.memory_space<vmem>>, vector<1x16xf32>
    %89 = vector.broadcast %88 : vector<1x16xf32> to vector<64x16xf32>
    %90 = arith.addf %87, %89 : vector<64x16xf32>
    %cst_54 = arith.constant 0.000000e+00 : f32
    %91 = vector.broadcast %cst_54 : f32 to vector<64x16xf32>
    %92 = arith.maximumf %90, %91 : vector<64x16xf32>
    %93 = arith.addf %92, %85 : vector<64x16xf32>
    %94 = vector.shape_cast %93 : vector<64x16xf32> to vector<8x8x16xf32>
    %95 = arith.truncf %94 : vector<8x8x16xf32> to vector<8x8x16xbf16>
    %c0_55 = arith.constant 0 : index
    %c0_56 = arith.constant 0 : index
    %c0_57 = arith.constant 0 : index
    %c0_58 = arith.constant 0 : index
    %96 = vector.load %arg13[%c0_55, %c0_56, %c0_57, %c0_58] : memref<1x8x8x16xbf16, #tpu.memory_space<vmem>>, vector<1x8x8x16xbf16>
    %97 = vector.shape_cast %96 : vector<1x8x8x16xbf16> to vector<8x8x16xbf16>
    %98 = vector.shape_cast %95 : vector<8x8x16xbf16> to vector<1x8x8x16xbf16>
    tpu.vector_store %arg13[%c0_55, %c0_56, %c0_57, %c0_58], %98 {strides = array<i32>} : memref<1x8x8x16xbf16, #tpu.memory_space<vmem>>, vector<1x8x8x16xbf16>,
    return
  }
  func.func @transform_0(%arg0: i32, %arg1: i32) -> (i32, i32, i32, i32) {
    %c0_i32 = arith.constant 0 : i32
    %c0_i32_0 = arith.constant 0 : i32
    %c0_i32_1 = arith.constant 0 : i32
    return %arg0, %arg1, %c0_i32, %c0_i32_0 : i32, i32, i32, i32
  }
  func.func @transform_1(%arg0: i32, %arg1: i32) -> (i32, i32, i32, i32) {
    %c8_i32 = arith.constant 8 : i32
    %0 = arith.muli %arg1, %c8_i32 : i32
    %c1_i32 = arith.constant 1 : i32
    %1 = arith.subi %0, %c1_i32 : i32
    %c0_i32 = arith.constant 0 : i32
    %2 = arith.maxsi %1, %c0_i32 : i32
    %c0_i32_0 = arith.constant 0 : i32
    %c0_i32_1 = arith.constant 0 : i32
    %c0_i32_2 = arith.constant 0 : i32
    return %arg0, %2, %c0_i32_0, %c0_i32_1 : i32, i32, i32, i32
  }
  func.func @transform_2(%arg0: i32, %arg1: i32) -> (i32, i32, i32, i32) {
    %c8_i32 = arith.constant 8 : i32
    %0 = arith.muli %arg1, %c8_i32 : i32
    %c8_i32_0 = arith.constant 8 : i32
    %1 = arith.addi %0, %c8_i32_0 : i32
    %c7_i32 = arith.constant 7 : i32
    %2 = arith.minsi %1, %c7_i32 : i32
    %c0_i32 = arith.constant 0 : i32
    %c0_i32_1 = arith.constant 0 : i32
    %c0_i32_2 = arith.constant 0 : i32
    return %arg0, %2, %c0_i32, %c0_i32_1 : i32, i32, i32, i32
  }
  func.func @transform_3(%arg0: i32, %arg1: i32) -> (i32, i32) {
    %c0_i32 = arith.constant 0 : i32
    %c0_i32_0 = arith.constant 0 : i32
    %c0_i32_1 = arith.constant 0 : i32
    return %c0_i32, %c0_i32_0 : i32, i32
  }
  func.func @transform_4(%arg0: i32, %arg1: i32) -> (i32, i32) {
    %c0_i32 = arith.constant 0 : i32
    %c0_i32_0 = arith.constant 0 : i32
    %c0_i32_1 = arith.constant 0 : i32
    return %c0_i32, %c0_i32_0 : i32, i32
  }
  func.func @transform_5(%arg0: i32, %arg1: i32) -> (i32, i32, i32) {
    %c0_i32 = arith.constant 0 : i32
    %c0_i32_0 = arith.constant 0 : i32
    %c0_i32_1 = arith.constant 0 : i32
    %c0_i32_2 = arith.constant 0 : i32
    return %c0_i32, %c0_i32_0, %c0_i32_1 : i32, i32, i32
  }
  func.func @transform_6(%arg0: i32, %arg1: i32) -> (i32, i32) {
    %c0_i32 = arith.constant 0 : i32
    %c0_i32_0 = arith.constant 0 : i32
    %c0_i32_1 = arith.constant 0 : i32
    return %c0_i32, %c0_i32_0 : i32, i32
  }
  func.func @transform_7(%arg0: i32, %arg1: i32) -> (i32, i32) {
    %c0_i32 = arith.constant 0 : i32
    %c0_i32_0 = arith.constant 0 : i32
    %c0_i32_1 = arith.constant 0 : i32
    return %c0_i32, %c0_i32_0 : i32, i32
  }
  func.func @transform_8(%arg0: i32, %arg1: i32) -> (i32, i32) {
    %c0_i32 = arith.constant 0 : i32
    %c0_i32_0 = arith.constant 0 : i32
    %c0_i32_1 = arith.constant 0 : i32
    return %c0_i32, %c0_i32_0 : i32, i32
  }
  func.func @transform_9(%arg0: i32, %arg1: i32) -> (i32, i32) {
    %c0_i32 = arith.constant 0 : i32
    %c0_i32_0 = arith.constant 0 : i32
    %c0_i32_1 = arith.constant 0 : i32
    return %c0_i32, %c0_i32_0 : i32, i32
  }
  func.func @transform_10(%arg0: i32, %arg1: i32) -> (i32, i32) {
    %c0_i32 = arith.constant 0 : i32
    %c0_i32_0 = arith.constant 0 : i32
    %c0_i32_1 = arith.constant 0 : i32
    return %c0_i32, %c0_i32_0 : i32, i32
  }
  func.func @transform_11(%arg0: i32, %arg1: i32) -> (i32, i32, i32, i32) {
    %c0_i32 = arith.constant 0 : i32
    %c0_i32_0 = arith.constant 0 : i32
    %c0_i32_1 = arith.constant 0 : i32
    return %arg0, %arg1, %c0_i32, %c0_i32_0 : i32, i32, i32, i32
  }
}

module attributes {stable_mosaic.version = 11 : i64} {
  func.func @kernel(%arg0: i32, %arg1: i32, %arg2: memref<1x8x8x4xbf16, #tpu.memory_space<vmem>>, %arg3: memref<1x1x8x4xbf16, #tpu.memory_space<vmem>>, %arg4: memref<1x1x8x4xbf16, #tpu.memory_space<vmem>>, %arg5: memref<4x8xbf16, #tpu.memory_space<vmem>>, %arg6: memref<1x8xf32, #tpu.memory_space<vmem>>, %arg7: memref<3x24x8xbf16, #tpu.memory_space<vmem>>, %arg8: memref<1x8xf32, #tpu.memory_space<vmem>>, %arg9: memref<8x16xbf16, #tpu.memory_space<vmem>>, %arg10: memref<1x16xf32, #tpu.memory_space<vmem>>, %arg11: memref<4x16xbf16, #tpu.memory_space<vmem>>, %arg12: memref<1x16xf32, #tpu.memory_space<vmem>>, %arg13: memref<1x8x8x16xbf16, #tpu.memory_space<vmem>>) attributes {dimension_semantics = [#tpu.dimension_semantics<parallel>, #tpu.dimension_semantics<parallel>], iteration_bounds = array<i64: 2, 1>, scalar_prefetch = 0 : i64, scratch_operands = 0 : i64, tpu.core_type = #tpu.core_type<tc>, window_params = [{transform_indices = @transform_0, window_bounds = array<i64: 1, 8, 8, 4>}, {transform_indices = @transform_1, window_bounds = array<i64: 1, 1, 8, 4>}, {transform_indices = @transform_2, window_bounds = array<i64: 1, 1, 8, 4>}, {pipeline_mode = #tpu.pipeline_mode<synchronous>, transform_indices = @transform_3, window_bounds = array<i64: 4, 8>}, {pipeline_mode = #tpu.pipeline_mode<synchronous>, transform_indices = @transform_4, window_bounds = array<i64: 1, 8>}, {pipeline_mode = #tpu.pipeline_mode<synchronous>, transform_indices = @transform_5, window_bounds = array<i64: 3, 24, 8>}, {pipeline_mode = #tpu.pipeline_mode<synchronous>, transform_indices = @transform_6, window_bounds = array<i64: 1, 8>}, {pipeline_mode = #tpu.pipeline_mode<synchronous>, transform_indices = @transform_7, window_bounds = array<i64: 8, 16>}, {pipeline_mode = #tpu.pipeline_mode<synchronous>, transform_indices = @transform_8, window_bounds = array<i64: 1, 16>}, {pipeline_mode = #tpu.pipeline_mode<synchronous>, transform_indices = @transform_9, window_bounds = array<i64: 4, 16>}, {pipeline_mode = #tpu.pipeline_mode<synchronous>, transform_indices = @transform_10, window_bounds = array<i64: 1, 16>}, {transform_indices = @transform_11, window_bounds = array<i64: 1, 8, 8, 16>}]} {
    %c0_i32 = arith.constant 0 : i32
    %0 = arith.cmpi sgt, %arg1, %c0_i32 : i32
    %1 = arith.extui %0 : i1 to i32
    %2 = arith.sitofp %1 : i32 to f32
    %c0_i32_0 = arith.constant 0 : i32
    %3 = arith.cmpi slt, %arg1, %c0_i32_0 : i32
    %4 = arith.extui %3 : i1 to i32
    %5 = arith.sitofp %4 : i32 to f32
    %c0 = arith.constant 0 : index
    %c0_1 = arith.constant 0 : index
    %c0_2 = arith.constant 0 : index
    %c0_3 = arith.constant 0 : index
    %6 = vector.load %arg2[%c0, %c0_1, %c0_2, %c0_3] : memref<1x8x8x4xbf16, #tpu.memory_space<vmem>>, vector<1x8x8x4xbf16>
    %7 = vector.shape_cast %6 : vector<1x8x8x4xbf16> to vector<8x8x4xbf16>
    %8 = vector.shape_cast %7 : vector<8x8x4xbf16> to vector<64x4xbf16>
    %c0_4 = arith.constant 0 : index
    %c0_5 = arith.constant 0 : index
    %9 = vector.load %arg5[%c0_4, %c0_5] : memref<4x8xbf16, #tpu.memory_space<vmem>>, vector<4x8xbf16>
    %cst = arith.constant dense<0.000000e+00> : vector<64x8xf32>
    %10 = tpu.matmul %8, %9, %cst {dimension_numbers = #tpu.dot_dimension_numbers<[1], [0], [0], [1], [0, 0, 1, 1], [], []>} : vector<64x4xbf16>, vector<4x8xbf16>, vector<64x8xf32> -> vector<64x8xf32>
    %c0_6 = arith.constant 0 : index
    %c0_7 = arith.constant 0 : index
    %11 = vector.load %arg6[%c0_6, %c0_7] : memref<1x8xf32, #tpu.memory_space<vmem>>, vector<1x8xf32>
    %12 = vector.broadcast %11 : vector<1x8xf32> to vector<64x8xf32>
    %13 = arith.addf %10, %12 : vector<64x8xf32>
    %cst_8 = arith.constant 0.000000e+00 : f32
    %14 = vector.broadcast %cst_8 : f32 to vector<64x8xf32>
    %15 = arith.maximumf %13, %14 : vector<64x8xf32>
    %16 = arith.truncf %15 : vector<64x8xf32> to vector<64x8xbf16>
    %17 = vector.shape_cast %16 : vector<64x8xbf16> to vector<8x8x8xbf16>
    %c0_9 = arith.constant 0 : index
    %c0_10 = arith.constant 0 : index
    %c0_11 = arith.constant 0 : index
    %c0_12 = arith.constant 0 : index
    %18 = vector.load %arg3[%c0_9, %c0_10, %c0_11, %c0_12] : memref<1x1x8x4xbf16, #tpu.memory_space<vmem>>, vector<1x1x8x4xbf16>
    %19 = vector.shape_cast %18 : vector<1x1x8x4xbf16> to vector<8x4xbf16>
    %c0_13 = arith.constant 0 : index
    %c0_14 = arith.constant 0 : index
    %20 = vector.load %arg5[%c0_13, %c0_14] : memref<4x8xbf16, #tpu.memory_space<vmem>>, vector<4x8xbf16>
    %cst_15 = arith.constant dense<0.000000e+00> : vector<8x8xf32>
    %21 = tpu.matmul %19, %20, %cst_15 {dimension_numbers = #tpu.dot_dimension_numbers<[1], [0], [0], [1], [0, 0, 1, 1], [], []>} : vector<8x4xbf16>, vector<4x8xbf16>, vector<8x8xf32> -> vector<8x8xf32>
    %c0_16 = arith.constant 0 : index
    %c0_17 = arith.constant 0 : index
    %22 = vector.load %arg6[%c0_16, %c0_17] : memref<1x8xf32, #tpu.memory_space<vmem>>, vector<1x8xf32>
    %23 = vector.broadcast %22 : vector<1x8xf32> to vector<8x8xf32>
    %24 = arith.addf %21, %23 : vector<8x8xf32>
    %cst_18 = arith.constant 0.000000e+00 : f32
    %25 = vector.broadcast %cst_18 : f32 to vector<8x8xf32>
    %26 = arith.maximumf %24, %25 : vector<8x8xf32>
    %27 = vector.broadcast %2 : f32 to vector<8x8xf32>
    %28 = arith.mulf %26, %27 : vector<8x8xf32>
    %29 = arith.truncf %28 : vector<8x8xf32> to vector<8x8xbf16>
    %c0_19 = arith.constant 0 : index
    %c0_20 = arith.constant 0 : index
    %c0_21 = arith.constant 0 : index
    %c0_22 = arith.constant 0 : index
    %30 = vector.load %arg4[%c0_19, %c0_20, %c0_21, %c0_22] : memref<1x1x8x4xbf16, #tpu.memory_space<vmem>>, vector<1x1x8x4xbf16>
    %31 = vector.shape_cast %30 : vector<1x1x8x4xbf16> to vector<8x4xbf16>
    %c0_23 = arith.constant 0 : index
    %c0_24 = arith.constant 0 : index
    %32 = vector.load %arg5[%c0_23, %c0_24] : memref<4x8xbf16, #tpu.memory_space<vmem>>, vector<4x8xbf16>
    %cst_25 = arith.constant dense<0.000000e+00> : vector<8x8xf32>
    %33 = tpu.matmul %31, %32, %cst_25 {dimension_numbers = #tpu.dot_dimension_numbers<[1], [0], [0], [1], [0, 0, 1, 1], [], []>} : vector<8x4xbf16>, vector<4x8xbf16>, vector<8x8xf32> -> vector<8x8xf32>
    %c0_26 = arith.constant 0 : index
    %c0_27 = arith.constant 0 : index
    %34 = vector.load %arg6[%c0_26, %c0_27] : memref<1x8xf32, #tpu.memory_space<vmem>>, vector<1x8xf32>
    %35 = vector.broadcast %34 : vector<1x8xf32> to vector<8x8xf32>
    %36 = arith.addf %33, %35 : vector<8x8xf32>
    %cst_28 = arith.constant 0.000000e+00 : f32
    %37 = vector.broadcast %cst_28 : f32 to vector<8x8xf32>
    %38 = arith.maximumf %36, %37 : vector<8x8xf32>
    %39 = vector.broadcast %5 : f32 to vector<8x8xf32>
    %40 = arith.mulf %38, %39 : vector<8x8xf32>
    %41 = arith.truncf %40 : vector<8x8xf32> to vector<8x8xbf16>
    %42 = vector.shape_cast %29 : vector<8x8xbf16> to vector<1x8x8xbf16>
    %43 = vector.shape_cast %41 : vector<8x8xbf16> to vector<1x8x8xbf16>
    %44 = tpu.concatenate %42, %17, %43 in 0 : vector<1x8x8xbf16>, vector<8x8x8xbf16>, vector<1x8x8xbf16> -> vector<10x8x8xbf16>
    %cst_29 = arith.constant 0.000000e+00 : bf16
    %45 = vector.broadcast %cst_29 : bf16 to vector<10x1x8xbf16>
    %46 = tpu.concatenate %45, %44, %45 in 1 : vector<10x1x8xbf16>, vector<10x8x8xbf16>, vector<10x1x8xbf16> -> vector<10x10x8xbf16>
    %47 = vector.extract_strided_slice %46 {offsets = [0, 0, 0], sizes = [8, 8, 8], strides = [1, 1, 1]} : vector<10x10x8xbf16> to vector<8x8x8xbf16>
    %48 = vector.extract_strided_slice %46 {offsets = [0, 1, 0], sizes = [8, 8, 8], strides = [1, 1, 1]} : vector<10x10x8xbf16> to vector<8x8x8xbf16>
    %49 = vector.extract_strided_slice %46 {offsets = [0, 2, 0], sizes = [8, 8, 8], strides = [1, 1, 1]} : vector<10x10x8xbf16> to vector<8x8x8xbf16>
    %50 = tpu.concatenate %47, %48, %49 in 2 : vector<8x8x8xbf16>, vector<8x8x8xbf16>, vector<8x8x8xbf16> -> vector<8x8x24xbf16>
    %51 = vector.shape_cast %50 : vector<8x8x24xbf16> to vector<64x24xbf16>
    %c0_30 = arith.constant 0 : index
    %c0_31 = arith.constant 0 : index
    %c0_32 = arith.constant 0 : index
    %52 = vector.load %arg7[%c0_30, %c0_31, %c0_32] : memref<3x24x8xbf16, #tpu.memory_space<vmem>>, vector<1x24x8xbf16>
    %53 = vector.shape_cast %52 : vector<1x24x8xbf16> to vector<24x8xbf16>
    %cst_33 = arith.constant dense<0.000000e+00> : vector<64x8xf32>
    %54 = tpu.matmul %51, %53, %cst_33 {dimension_numbers = #tpu.dot_dimension_numbers<[1], [0], [0], [1], [0, 0, 1, 1], [], []>} : vector<64x24xbf16>, vector<24x8xbf16>, vector<64x8xf32> -> vector<64x8xf32>
    %55 = vector.extract_strided_slice %46 {offsets = [1, 0, 0], sizes = [8, 8, 8], strides = [1, 1, 1]} : vector<10x10x8xbf16> to vector<8x8x8xbf16>
    %56 = vector.extract_strided_slice %46 {offsets = [1, 1, 0], sizes = [8, 8, 8], strides = [1, 1, 1]} : vector<10x10x8xbf16> to vector<8x8x8xbf16>
    %57 = vector.extract_strided_slice %46 {offsets = [1, 2, 0], sizes = [8, 8, 8], strides = [1, 1, 1]} : vector<10x10x8xbf16> to vector<8x8x8xbf16>
    %58 = tpu.concatenate %55, %56, %57 in 2 : vector<8x8x8xbf16>, vector<8x8x8xbf16>, vector<8x8x8xbf16> -> vector<8x8x24xbf16>
    %59 = vector.shape_cast %58 : vector<8x8x24xbf16> to vector<64x24xbf16>
    %c1 = arith.constant 1 : index
    %c0_34 = arith.constant 0 : index
    %c0_35 = arith.constant 0 : index
    %60 = vector.load %arg7[%c1, %c0_34, %c0_35] : memref<3x24x8xbf16, #tpu.memory_space<vmem>>, vector<1x24x8xbf16>
    %61 = vector.shape_cast %60 : vector<1x24x8xbf16> to vector<24x8xbf16>
    %cst_36 = arith.constant dense<0.000000e+00> : vector<64x8xf32>
    %62 = tpu.matmul %59, %61, %cst_36 {dimension_numbers = #tpu.dot_dimension_numbers<[1], [0], [0], [1], [0, 0, 1, 1], [], []>} : vector<64x24xbf16>, vector<24x8xbf16>, vector<64x8xf32> -> vector<64x8xf32>
    %63 = arith.addf %54, %62 : vector<64x8xf32>
    %64 = vector.extract_strided_slice %46 {offsets = [2, 0, 0], sizes = [8, 8, 8], strides = [1, 1, 1]} : vector<10x10x8xbf16> to vector<8x8x8xbf16>
    %65 = vector.extract_strided_slice %46 {offsets = [2, 1, 0], sizes = [8, 8, 8], strides = [1, 1, 1]} : vector<10x10x8xbf16> to vector<8x8x8xbf16>
    %66 = vector.extract_strided_slice %46 {offsets = [2, 2, 0], sizes = [8, 8, 8], strides = [1, 1, 1]} : vector<10x10x8xbf16> to vector<8x8x8xbf16>
    %67 = tpu.concatenate %64, %65, %66 in 2 : vector<8x8x8xbf16>, vector<8x8x8xbf16>, vector<8x8x8xbf16> -> vector<8x8x24xbf16>
    %68 = vector.shape_cast %67 : vector<8x8x24xbf16> to vector<64x24xbf16>
    %c2 = arith.constant 2 : index
    %c0_37 = arith.constant 0 : index
    %c0_38 = arith.constant 0 : index
    %69 = vector.load %arg7[%c2, %c0_37, %c0_38] : memref<3x24x8xbf16, #tpu.memory_space<vmem>>, vector<1x24x8xbf16>
    %70 = vector.shape_cast %69 : vector<1x24x8xbf16> to vector<24x8xbf16>
    %cst_39 = arith.constant dense<0.000000e+00> : vector<64x8xf32>
    %71 = tpu.matmul %68, %70, %cst_39 {dimension_numbers = #tpu.dot_dimension_numbers<[1], [0], [0], [1], [0, 0, 1, 1], [], []>} : vector<64x24xbf16>, vector<24x8xbf16>, vector<64x8xf32> -> vector<64x8xf32>
    %72 = arith.addf %63, %71 : vector<64x8xf32>
    %c0_40 = arith.constant 0 : index
    %c0_41 = arith.constant 0 : index
    %73 = vector.load %arg8[%c0_40, %c0_41] : memref<1x8xf32, #tpu.memory_space<vmem>>, vector<1x8xf32>
    %74 = vector.broadcast %73 : vector<1x8xf32> to vector<64x8xf32>
    %75 = arith.addf %72, %74 : vector<64x8xf32>
    %cst_42 = arith.constant 0.000000e+00 : f32
    %76 = vector.broadcast %cst_42 : f32 to vector<64x8xf32>
    %77 = arith.maximumf %75, %76 : vector<64x8xf32>
    %78 = arith.truncf %77 : vector<64x8xf32> to vector<64x8xbf16>
    %c0_43 = arith.constant 0 : index
    %c0_44 = arith.constant 0 : index
    %79 = vector.load %arg9[%c0_43, %c0_44] : memref<8x16xbf16, #tpu.memory_space<vmem>>, vector<8x16xbf16>
    %cst_45 = arith.constant dense<0.000000e+00> : vector<64x16xf32>
    %80 = tpu.matmul %78, %79, %cst_45 {dimension_numbers = #tpu.dot_dimension_numbers<[1], [0], [0], [1], [0, 0, 1, 1], [], []>} : vector<64x8xbf16>, vector<8x16xbf16>, vector<64x16xf32> -> vector<64x16xf32>
    %c0_46 = arith.constant 0 : index
    %c0_47 = arith.constant 0 : index
    %81 = vector.load %arg10[%c0_46, %c0_47] : memref<1x16xf32, #tpu.memory_space<vmem>>, vector<1x16xf32>
    %82 = vector.broadcast %81 : vector<1x16xf32> to vector<64x16xf32>
    %83 = arith.addf %80, %82 : vector<64x16xf32>
    %cst_48 = arith.constant 0.000000e+00 : f32
    %84 = vector.broadcast %cst_48 : f32 to vector<64x16xf32>
    %85 = arith.maximumf %83, %84 : vector<64x16xf32>
    %c0_49 = arith.constant 0 : index
    %c0_50 = arith.constant 0 : index
    %86 = vector.load %arg11[%c0_49, %c0_50] : memref<4x16xbf16, #tpu.memory_space<vmem>>, vector<4x16xbf16>
    %cst_51 = arith.constant dense<0.000000e+00> : vector<64x16xf32>
    %87 = tpu.matmul %8, %86, %cst_51 {dimension_numbers = #tpu.dot_dimension_numbers<[1], [0], [0], [1], [0, 0, 1, 1], [], []>} : vector<64x4xbf16>, vector<4x16xbf16>, vector<64x16xf32> -> vector<64x16xf32>
    %c0_52 = arith.constant 0 : index
    %c0_53 = arith.constant 0 : index
    %88 = vector.load %arg12[%c0_52, %c0_53] : memref<1x16xf32, #tpu.memory_space<vmem>>, vector<1x16xf32>
    %89 = vector.broadcast %88 : vector<1x16xf32> to vector<64x16xf32>
    %90 = arith.addf %87, %89 : vector<64x16xf32>
    %cst_54 = arith.constant 0.000000e+00 : f32
    %91 = vector.broadcast %cst_54 : f32 to vector<64x16xf32>
    %92 = arith.maximumf %90, %91 : vector<64x16xf32>
    %93 = arith.addf %92, %85 : vector<64x16xf32>
    %94 = vector.shape_cast %93 : vector<64x16xf32> to vector<8x8x16xf32>
    %95 = arith.truncf %94 : vector<8x8x16xf32> to vector<8x8x16xbf16>
    %c0_55 = arith.constant 0 : index
    %c0_56 = arith.constant 0 : index
    %c0_57 = arith.constant 0 : index
    %c0_58 = arith.constant 0 : index
    %96 = vector.load %arg13[%c0_55, %c0_56, %c0_57, %c0_58] : memref<1x8x8x16xbf16, #tpu.memory_space<vmem>>, vector<1x8x8x16xbf16>
    %97 = vector.shape_cast %96 : vector<1x8x8x16xbf16> to vector<8x8x16xbf16>
    %98 = vector.shape_cast %95 : vector<8x8x16xbf16> to vector<1x8x8x16xbf16>
    tpu.vector_store %arg13[%c0_55, %c0_56, %c0_57, %c0_58], %98 {strides = array<i32>} : memref<1x8x8x16xbf16, #tpu.memory_space<vmem>>, vector<1x8x8x16xbf16>,
    return
  }
  func.func @transform_0(%arg0: i32, %arg1: i32) -> (i32, i32, i32, i32) {
    %c0_i32 = arith.constant 0 : i32
    %c0_i32_0 = arith.constant 0 : i32
    %c0_i32_1 = arith.constant 0 : i32
    return %arg0, %arg1, %c0_i32, %c0_i32_0 : i32, i32, i32, i32
  }
  func.func @transform_1(%arg0: i32, %arg1: i32) -> (i32, i32, i32, i32) {
    %c8_i32 = arith.constant 8 : i32
    %0 = arith.muli %arg1, %c8_i32 : i32
    %c1_i32 = arith.constant 1 : i32
    %1 = arith.subi %0, %c1_i32 : i32
    %c0_i32 = arith.constant 0 : i32
    %2 = arith.maxsi %1, %c0_i32 : i32
    %c0_i32_0 = arith.constant 0 : i32
    %c0_i32_1 = arith.constant 0 : i32
    %c0_i32_2 = arith.constant 0 : i32
    return %arg0, %2, %c0_i32_0, %c0_i32_1 : i32, i32, i32, i32
  }
  func.func @transform_2(%arg0: i32, %arg1: i32) -> (i32, i32, i32, i32) {
    %c8_i32 = arith.constant 8 : i32
    %0 = arith.muli %arg1, %c8_i32 : i32
    %c8_i32_0 = arith.constant 8 : i32
    %1 = arith.addi %0, %c8_i32_0 : i32
    %c7_i32 = arith.constant 7 : i32
    %2 = arith.minsi %1, %c7_i32 : i32
    %c0_i32 = arith.constant 0 : i32
    %c0_i32_1 = arith.constant 0 : i32
    %c0_i32_2 = arith.constant 0 : i32
    return %arg0, %2, %c0_i32, %c0_i32_1 : i32, i32, i32, i32
  }
  func.func @transform_3(%arg0: i32, %arg1: i32) -> (i32, i32) {
    %c0_i32 = arith.constant 0 : i32
    %c0_i32_0 = arith.constant 0 : i32
    %c0_i32_1 = arith.constant 0 : i32
    return %c0_i32, %c0_i32_0 : i32, i32
  }
  func.func @transform_4(%arg0: i32, %arg1: i32) -> (i32, i32) {
    %c0_i32 = arith.constant 0 : i32
    %c0_i32_0 = arith.constant 0 : i32
    %c0_i32_1 = arith.constant 0 : i32
    return %c0_i32, %c0_i32_0 : i32, i32
  }
  func.func @transform_5(%arg0: i32, %arg1: i32) -> (i32, i32, i32) {
    %c0_i32 = arith.constant 0 : i32
    %c0_i32_0 = arith.constant 0 : i32
    %c0_i32_1 = arith.constant 0 : i32
    %c0_i32_2 = arith.constant 0 : i32
    return %c0_i32, %c0_i32_0, %c0_i32_1 : i32, i32, i32
  }
  func.func @transform_6(%arg0: i32, %arg1: i32) -> (i32, i32) {
    %c0_i32 = arith.constant 0 : i32
    %c0_i32_0 = arith.constant 0 : i32
    %c0_i32_1 = arith.constant 0 : i32
    return %c0_i32, %c0_i32_0 : i32, i32
  }
  func.func @transform_7(%arg0: i32, %arg1: i32) -> (i32, i32) {
    %c0_i32 = arith.constant 0 : i32
    %c0_i32_0 = arith.constant 0 : i32
    %c0_i32_1 = arith.constant 0 : i32
    return %c0_i32, %c0_i32_0 : i32, i32
  }
  func.func @transform_8(%arg0: i32, %arg1: i32) -> (i32, i32) {
    %c0_i32 = arith.constant 0 : i32
    %c0_i32_0 = arith.constant 0 : i32
    %c0_i32_1 = arith.constant 0 : i32
    return %c0_i32, %c0_i32_0 : i32, i32
  }
  func.func @transform_9(%arg0: i32, %arg1: i32) -> (i32, i32) {
    %c0_i32 = arith.constant 0 : i32
    %c0_i32_0 = arith.constant 0 : i32
    %c0_i32_1 = arith.constant 0 : i32
    return %c0_i32, %c0_i32_0 : i32, i32
  }
  func.func @transform_10(%arg0: i32, %arg1: i32) -> (i32, i32) {
    %c0_i32 = arith.constant 0 : i32
    %c0_i32_0 = arith.constant 0 : i32
    %c0_i32_1 = arith.constant 0 : i32
    return %c0_i32, %c0_i32_0 : i32, i32
  }
  func.func @transform_11(%arg0: i32, %arg1: i32) -> (i32, i32, i32, i32) {
    %c0_i32 = arith.constant 0 : i32
    %c0_i32_0 = arith.constant 0 : i32
    %c0_i32_1 = arith.constant 0 : i32
    return %arg0, %arg1, %c0_i32, %c0_i32_0 : i32, i32, i32, i32
  }
}

</mosaic_0001>

<llo_original>
// kernel: tpu_custom_call.1
$region0: #{tpu_custom_call.1}
  #allocation0 [shape = 'u32[]', space=smem, size = 0x4, offset = 0x4, fixed_abs, tag = 'smem constant byte address 0x4 - core index']
  #allocation1 [shape = 'u32[144,128]{1,0:T(1,128)}', space=vmem, size = 0x12000, scoped, tag = 'internal scratch']
  %s0 = inlined_call_operand.vmem [shape: bf16[2,8,8,4], index: 0, kind: input, shape index: {}]
  %s1 = inlined_call_operand.vmem [shape: bf16[2,8,8,4], index: 1, kind: input, shape index: {}]
  %s2 = inlined_call_operand.vmem [shape: bf16[2,8,8,4], index: 2, kind: input, shape index: {}]
  %s3 = inlined_call_operand.vmem [shape: bf16[4,8], index: 3, kind: input, shape index: {}]
  %s4 = inlined_call_operand.vmem [shape: f32[1,8], index: 4, kind: input, shape index: {}]
  %s5 = inlined_call_operand.vmem [shape: bf16[3,24,8], index: 5, kind: input, shape index: {}]
  %s6 = inlined_call_operand.vmem [shape: f32[1,8], index: 6, kind: input, shape index: {}]
  %s7 = inlined_call_operand.vmem [shape: bf16[8,16], index: 7, kind: input, shape index: {}]
  %s8 = inlined_call_operand.vmem [shape: f32[1,16], index: 8, kind: input, shape index: {}]
  %s9 = inlined_call_operand.vmem [shape: bf16[4,16], index: 9, kind: input, shape index: {}]
  %s10 = inlined_call_operand.vmem [shape: f32[1,16], index: 10, kind: input, shape index: {}]
  %s11 = inlined_call_operand.hbm [shape: bf16[2,8,8,16], index: 11, kind: output, shape index: {}]
  %s12 = sld [smem:[#allocation0]]
  $region77: #{tpu_custom_call.1} parent=0
    _
  %s14 = ssub.s32 1, %s12
  %s15 = scalar_select 0, %s14, %s12
  $region1: #{tpu_custom_call.1} parent=0
    #allocation2 [shape = 'u8[32768]{0}', space=vmem, size = 0x8000, scoped, tag = 'output window, operand 0']
    #allocation3 [shape = 's32[2]{0}', space=sflag, size = 0x8, scoped, tag = 'scoped memory for tpu_custom_call.1']
    %16 = vsyncpa [#allocation3], 0
    %s17 = scalar_lea.sflag [#allocation3], 1
    %18 = vsyncpa %s17, 0
    loop: start=0, step=1, limit=4
    $region2: #{tpu_custom_call.1} parent=1 // loop_pre_header
      _
    $region3: #{tpu_custom_call.1} parent=1 // loop_header
      %s20 = sphi 0, %s24
      %p21 = scmp.ge.s32.totalorder %s20, 4
      %s27 = sphi 0, %s39
      %s28 = sphi 0, %s35
      %s29 = sphi 0, %s27
      %s30 = sphi 0, %s28
      %s31 = sphi 0, %s29
      %s32 = sphi 0, %s30
      %s44 = sphi 0, %s46
      %s47 = sphi 0, %s44
      %s48 = sphi 0, %s47
      %s64 = sphi 0, %s48
      %s80 = sphi 0, %s82
      %s83 = sphi 0, %s80
      %s84 = sphi 0, %s83
      %s100 = sphi 0, %s84
      %s116 = sphi 0, %s118
      %s119 = sphi 0, %s116
      %s120 = sphi 0, %s119
      %s136 = sphi 0, %s120
      %s140 = sphi 0, %s140
      %s142 = sphi 0, %s140
      %s143 = sphi 0, %s142
      %s157 = sphi 0, %s143
      %s161 = sphi 0, %s161
      %s163 = sphi 0, %s161
      %s164 = sphi 0, %s163
      %s178 = sphi 0, %s164
      %s182 = sphi 0, %s182
      %s184 = sphi 0, %s182
      %s185 = sphi 0, %s184
      %s199 = sphi 0, %s185
      %s203 = sphi 0, %s203
      %s205 = sphi 0, %s203
      %s206 = sphi 0, %s205
      %s220 = sphi 0, %s206
      %s224 = sphi 0, %s224
      %s226 = sphi 0, %s224
      %s227 = sphi 0, %s226
      %s241 = sphi 0, %s227
      %s245 = sphi 0, %s245
      %s247 = sphi 0, %s245
      %s248 = sphi 0, %s247
      %s262 = sphi 0, %s248
      %s266 = sphi 0, %s266
      %s268 = sphi 0, %s266
      %s269 = sphi 0, %s268
      %s283 = sphi 0, %s269
      %s287 = sphi 0, %s287
      %s289 = sphi 0, %s287
      %s290 = sphi 0, %s289
      %s304 = sphi 0, %s290
      %s312 = sphi 0, %s314
      %s315 = sphi 0, %s312
      %s316 = sphi 0, %s315
      %s332 = sphi 0, %s316
    $region4: #{tpu_custom_call.1} parent=1 // loop_header_branch
      %23 = sbr.rel (%p21) target = $region8
    $region5: #{tpu_custom_call.1} parent=1 // loop_body
      %s25 = ssub.s32 %s20, 1
      %s26 = ssub.s32 %s20, 2
      %s33 = sadd.s32 1, %s28
      %p34 = scmp.ge.s32.totalorder %s33, 1
      %s35 = scalar_select %p34, 0, %s33
      %s36 = sadd.s32 1, %s27
      %s37 = scalar_select %p34, %s36, %s27
      %p38 = scmp.ge.s32.totalorder %s37, 2
      %s39 = scalar_select %p38, 0, %s37
      %s40 = ssub.s32 %s27, %s39
      %s41 = ssub.s32 %s28, %s35
      %s42 = sor.u32 %s40, %s41
      %p43 = scmp.eq.s32.totalorder %s42, 0
      %s45 = sadd.s32 %s44, 1
      %s46 = scalar_select %p43, %s44, %s45
      %p49 = pneg %p43
      %p50 = scmp.eq.s32.totalorder %s20, 1
      %p51 = por %p49, %p50
      %p52 = scmp.ne.s32.totalorder %s44, %s47
      %p53 = scmp.eq.s32.totalorder %s20, 0
      %p54 = por %p52, %p53
      %p55 = scmp.ne.s32.totalorder %s44, %s47
      %p56 = scmp.eq.s32.totalorder %s25, 1
      %p57 = por %p55, %p56
      %p58 = scmp.ne.s32.totalorder %s47, %s48
      %p59 = scmp.eq.s32.totalorder %s25, 0
      %p60 = por %p58, %p59
      %p61 = scmp.ne.s32.totalorder %s47, %s48
      %p62 = scmp.eq.s32.totalorder %s26, 1
      %p63 = por %p61, %p62
      %p65 = scmp.ne.s32.totalorder %s48, %s64
      %p66 = scmp.eq.s32.totalorder %s26, 0
      %p67 = por %p65, %p66
      %s68 = smul.u32 %s28, 8
      %s69 = ssub.s32 %s68, 1
      %p70 = scmp.gt.s32.totalorder %s69, 0
      %s71 = scalar_select %p70, %s69, 0
      %s72 = smul.u32 %s35, 8
      %s73 = ssub.s32 %s72, 1
      %p74 = scmp.gt.s32.totalorder %s73, 0
      %s75 = scalar_select %p74, %s73, 0
      %s76 = ssub.s32 %s27, %s39
      %s77 = ssub.s32 %s71, %s75
      %s78 = sor.u32 %s76, %s77
      %p79 = scmp.eq.s32.totalorder %s78, 0
      %s81 = sadd.s32 %s80, 1
      %s82 = scalar_select %p79, %s80, %s81
      %p85 = pneg %p79
      %p86 = scmp.eq.s32.totalorder %s20, 1
      %p87 = por %p85, %p86
      %p88 = scmp.ne.s32.totalorder %s80, %s83
      %p89 = scmp.eq.s32.totalorder %s20, 0
      %p90 = por %p88, %p89
      %p91 = scmp.ne.s32.totalorder %s80, %s83
      %p92 = scmp.eq.s32.totalorder %s25, 1
      %p93 = por %p91, %p92
      %p94 = scmp.ne.s32.totalorder %s83, %s84
      %p95 = scmp.eq.s32.totalorder %s25, 0
      %p96 = por %p94, %p95
      %p97 = scmp.ne.s32.totalorder %s83, %s84
      %p98 = scmp.eq.s32.totalorder %s26, 1
      %p99 = por %p97, %p98
      %p101 = scmp.ne.s32.totalorder %s84, %s100
      %p102 = scmp.eq.s32.totalorder %s26, 0
      %p103 = por %p101, %p102
      %s104 = smul.u32 %s28, 8
      %s105 = sadd.s32 %s104, 8
      %p106 = scmp.lt.s32.totalorder %s105, 7
      %s107 = scalar_select %p106, %s105, 7
      %s108 = smul.u32 %s35, 8
      %s109 = sadd.s32 %s108, 8
      %p110 = scmp.lt.s32.totalorder %s109, 7
      %s111 = scalar_select %p110, %s109, 7
      %s112 = ssub.s32 %s27, %s39
      %s113 = ssub.s32 %s107, %s111
      %s114 = sor.u32 %s112, %s113
      %p115 = scmp.eq.s32.totalorder %s114, 0
      %s117 = sadd.s32 %s116, 1
      %s118 = scalar_select %p115, %s116, %s117
      %p121 = pneg %p115
      %p122 = scmp.eq.s32.totalorder %s20, 1
      %p123 = por %p121, %p122
      %p124 = scmp.ne.s32.totalorder %s116, %s119
      %p125 = scmp.eq.s32.totalorder %s20, 0
      %p126 = por %p124, %p125
      %p127 = scmp.ne.s32.totalorder %s116, %s119
      %p128 = scmp.eq.s32.totalorder %s25, 1
      %p129 = por %p127, %p128
      %p130 = scmp.ne.s32.totalorder %s119, %s120
      %p131 = scmp.eq.s32.totalorder %s25, 0
      %p132 = por %p130, %p131
      %p133 = scmp.ne.s32.totalorder %s119, %s120
      %p134 = scmp.eq.s32.totalorder %s26, 1
      %p135 = por %p133, %p134
      %p137 = scmp.ne.s32.totalorder %s120, %s136
      %p138 = scmp.eq.s32.totalorder %s26, 0
      %p139 = por %p137, %p138
      %s141 = sadd.s32 %s140, 1
      %p144 = scmp.eq.s32.totalorder %s20, 1
      %p145 = scmp.ne.s32.totalorder %s140, %s142
      %p146 = scmp.eq.s32.totalorder %s20, 0
      %p147 = por %p145, %p146
      %p148 = scmp.ne.s32.totalorder %s140, %s142
      %p149 = scmp.eq.s32.totalorder %s25, 1
      %p150 = por %p148, %p149
      %p151 = scmp.ne.s32.totalorder %s142, %s143
      %p152 = scmp.eq.s32.totalorder %s25, 0
      %p153 = por %p151, %p152
      %p154 = scmp.ne.s32.totalorder %s142, %s143
      %p155 = scmp.eq.s32.totalorder %s26, 1
      %p156 = por %p154, %p155
      %p158 = scmp.ne.s32.totalorder %s143, %s157
      %p159 = scmp.eq.s32.totalorder %s26, 0
      %p160 = por %p158, %p159
      %s162 = sadd.s32 %s161, 1
      %p165 = scmp.eq.s32.totalorder %s20, 1
      %p166 = scmp.ne.s32.totalorder %s161, %s163
      %p167 = scmp.eq.s32.totalorder %s20, 0
      %p168 = por %p166, %p167
      %p169 = scmp.ne.s32.totalorder %s161, %s163
      %p170 = scmp.eq.s32.totalorder %s25, 1
      %p171 = por %p169, %p170
      %p172 = scmp.ne.s32.totalorder %s163, %s164
      %p173 = scmp.eq.s32.totalorder %s25, 0
      %p174 = por %p172, %p173
      %p175 = scmp.ne.s32.totalorder %s163, %s164
      %p176 = scmp.eq.s32.totalorder %s26, 1
      %p177 = por %p175, %p176
      %p179 = scmp.ne.s32.totalorder %s164, %s178
      %p180 = scmp.eq.s32.totalorder %s26, 0
      %p181 = por %p179, %p180
      %s183 = sadd.s32 %s182, 1
      %p186 = scmp.eq.s32.totalorder %s20, 1
      %p187 = scmp.ne.s32.totalorder %s182, %s184
      %p188 = scmp.eq.s32.totalorder %s20, 0
      %p189 = por %p187, %p188
      %p190 = scmp.ne.s32.totalorder %s182, %s184
      %p191 = scmp.eq.s32.totalorder %s25, 1
      %p192 = por %p190, %p191
      %p193 = scmp.ne.s32.totalorder %s184, %s185
      %p194 = scmp.eq.s32.totalorder %s25, 0
      %p195 = por %p193, %p194
      %p196 = scmp.ne.s32.totalorder %s184, %s185
      %p197 = scmp.eq.s32.totalorder %s26, 1
      %p198 = por %p196, %p197
      %p200 = scmp.ne.s32.totalorder %s185, %s199
      %p201 = scmp.eq.s32.totalorder %s26, 0
      %p202 = por %p200, %p201
      %s204 = sadd.s32 %s203, 1
      %p207 = scmp.eq.s32.totalorder %s20, 1
      %p208 = scmp.ne.s32.totalorder %s203, %s205
      %p209 = scmp.eq.s32.totalorder %s20, 0
      %p210 = por %p208, %p209
      %p211 = scmp.ne.s32.totalorder %s203, %s205
      %p212 = scmp.eq.s32.totalorder %s25, 1
      %p213 = por %p211, %p212
      %p214 = scmp.ne.s32.totalorder %s205, %s206
      %p215 = scmp.eq.s32.totalorder %s25, 0
      %p216 = por %p214, %p215
      %p217 = scmp.ne.s32.totalorder %s205, %s206
      %p218 = scmp.eq.s32.totalorder %s26, 1
      %p219 = por %p217, %p218
      %p221 = scmp.ne.s32.totalorder %s206, %s220
      %p222 = scmp.eq.s32.totalorder %s26, 0
      %p223 = por %p221, %p222
      %s225 = sadd.s32 %s224, 1
      %p228 = scmp.eq.s32.totalorder %s20, 1
      %p229 = scmp.ne.s32.totalorder %s224, %s226
      %p230 = scmp.eq.s32.totalorder %s20, 0
      %p231 = por %p229, %p230
      %p232 = scmp.ne.s32.totalorder %s224, %s226
      %p233 = scmp.eq.s32.totalorder %s25, 1
      %p234 = por %p232, %p233
      %p235 = scmp.ne.s32.totalorder %s226, %s227
      %p236 = scmp.eq.s32.totalorder %s25, 0
      %p237 = por %p235, %p236
      %p238 = scmp.ne.s32.totalorder %s226, %s227
      %p239 = scmp.eq.s32.totalorder %s26, 1
      %p240 = por %p238, %p239
      %p242 = scmp.ne.s32.totalorder %s227, %s241
      %p243 = scmp.eq.s32.totalorder %s26, 0
      %p244 = por %p242, %p243
      %s246 = sadd.s32 %s245, 1
      %p249 = scmp.eq.s32.totalorder %s20, 1
      %p250 = scmp.ne.s32.totalorder %s245, %s247
      %p251 = scmp.eq.s32.totalorder %s20, 0
      %p252 = por %p250, %p251
      %p253 = scmp.ne.s32.totalorder %s245, %s247
      %p254 = scmp.eq.s32.totalorder %s25, 1
      %p255 = por %p253, %p254
      %p256 = scmp.ne.s32.totalorder %s247, %s248
      %p257 = scmp.eq.s32.totalorder %s25, 0
      %p258 = por %p256, %p257
      %p259 = scmp.ne.s32.totalorder %s247, %s248
      %p260 = scmp.eq.s32.totalorder %s26, 1
      %p261 = por %p259, %p260
      %p263 = scmp.ne.s32.totalorder %s248, %s262
      %p264 = scmp.eq.s32.totalorder %s26, 0
      %p265 = por %p263, %p264
      %s267 = sadd.s32 %s266, 1
      %p270 = scmp.eq.s32.totalorder %s20, 1
      %p271 = scmp.ne.s32.totalorder %s266, %s268
      %p272 = scmp.eq.s32.totalorder %s20, 0
      %p273 = por %p271, %p272
      %p274 = scmp.ne.s32.totalorder %s266, %s268
      %p275 = scmp.eq.s32.totalorder %s25, 1
      %p276 = por %p274, %p275
      %p277 = scmp.ne.s32.totalorder %s268, %s269
      %p278 = scmp.eq.s32.totalorder %s25, 0
      %p279 = por %p277, %p278
      %p280 = scmp.ne.s32.totalorder %s268, %s269
      %p281 = scmp.eq.s32.totalorder %s26, 1
      %p282 = por %p280, %p281
      %p284 = scmp.ne.s32.totalorder %s269, %s283
      %p285 = scmp.eq.s32.totalorder %s26, 0
      %p286 = por %p284, %p285
      %s288 = sadd.s32 %s287, 1
      %p291 = scmp.eq.s32.totalorder %s20, 1
      %p292 = scmp.ne.s32.totalorder %s287, %s289
      %p293 = scmp.eq.s32.totalorder %s20, 0
      %p294 = por %p292, %p293
      %p295 = scmp.ne.s32.totalorder %s287, %s289
      %p296 = scmp.eq.s32.totalorder %s25, 1
      %p297 = por %p295, %p296
      %p298 = scmp.ne.s32.totalorder %s289, %s290
      %p299 = scmp.eq.s32.totalorder %s25, 0
      %p300 = por %p298, %p299
      %p301 = scmp.ne.s32.totalorder %s289, %s290
      %p302 = scmp.eq.s32.totalorder %s26, 1
      %p303 = por %p301, %p302
      %p305 = scmp.ne.s32.totalorder %s290, %s304
      %p306 = scmp.eq.s32.totalorder %s26, 0
      %p307 = por %p305, %p306
      %s308 = ssub.s32 %s27, %s39
      %s309 = ssub.s32 %s28, %s35
      %s310 = sor.u32 %s308, %s309
      %p311 = scmp.eq.s32.totalorder %s310, 0
      %s313 = sadd.s32 %s312, 1
      %s314 = scalar_select %p311, %s312, %s313
      %p317 = pneg %p311
      %p318 = scmp.eq.s32.totalorder %s20, 1
      %p319 = por %p317, %p318
      %p320 = scmp.ne.s32.totalorder %s312, %s315
      %p321 = scmp.eq.s32.totalorder %s20, 0
      %p322 = por %p320, %p321
      %p323 = scmp.ne.s32.totalorder %s312, %s315
      %p324 = scmp.eq.s32.totalorder %s25, 1
      %p325 = por %p323, %p324
      %p326 = scmp.ne.s32.totalorder %s315, %s316
      %p327 = scmp.eq.s32.totalorder %s25, 0
      %p328 = por %p326, %p327
      %p329 = scmp.ne.s32.totalorder %s315, %s316
      %p330 = scmp.eq.s32.totalorder %s26, 1
      %p331 = por %p329, %p330
      %p333 = scmp.ne.s32.totalorder %s316, %s332
      %p334 = scmp.eq.s32.totalorder %s26, 0
      %p335 = por %p333, %p334
      %p336 = scmp.le.s32.totalorder 1, %s20
      %p337 = scmp.lt.s32.totalorder %s20, 3
      %p338 = pnand %p336, %p337
      %p339 = pneg %p338
      // Predicated region
      $region9: #{tpu_custom_call.1} parent=5 // pred_check
        _
      $region10: #{tpu_custom_call.1} parent=5 // pred_check_branch
        %341 = sbr.rel (%p338) target = $region12
      $region11: #{tpu_custom_call.1} parent=5 // pred_region
        %s342 = ssub.s32 %s20, 1
        // Predicated region
        $region13: #{tpu_custom_call.1} parent=11 // pred_check
          %p343 = pneg %p153
        $region14: #{tpu_custom_call.1} parent=11 // pred_check_branch
          %345 = sbr.rel (%p343) target = $region16
        $region15: #{tpu_custom_call.1} parent=11 // pred_region
          _
        $region16: #{tpu_custom_call.1} parent=11 // pred_fallthru
          _
        // Predicated region
        $region17: #{tpu_custom_call.1} parent=11 // pred_check
          %p346 = pneg %p174
        $region18: #{tpu_custom_call.1} parent=11 // pred_check_branch
          %348 = sbr.rel (%p346) target = $region20
        $region19: #{tpu_custom_call.1} parent=11 // pred_region
          _
        $region20: #{tpu_custom_call.1} parent=11 // pred_fallthru
          _
        // Predicated region
        $region21: #{tpu_custom_call.1} parent=11 // pred_check
          %p349 = pneg %p195
        $region22: #{tpu_custom_call.1} parent=11 // pred_check_branch
          %351 = sbr.rel (%p349) target = $region24
        $region23: #{tpu_custom_call.1} parent=11 // pred_region
          _
        $region24: #{tpu_custom_call.1} parent=11 // pred_fallthru
          _
        // Predicated region
        $region25: #{tpu_custom_call.1} parent=11 // pred_check
          %p352 = pneg %p216
        $region26: #{tpu_custom_call.1} parent=11 // pred_check_branch
          %354 = sbr.rel (%p352) target = $region28
        $region27: #{tpu_custom_call.1} parent=11 // pred_region
          _
        $region28: #{tpu_custom_call.1} parent=11 // pred_fallthru
          _
        // Predicated region
        $region29: #{tpu_custom_call.1} parent=11 // pred_check
          %p355 = pneg %p237
        $region30: #{tpu_custom_call.1} parent=11 // pred_check_branch
          %357 = sbr.rel (%p355) target = $region32
        $region31: #{tpu_custom_call.1} parent=11 // pred_region
          _
        $region32: #{tpu_custom_call.1} parent=11 // pred_fallthru
          _
        // Predicated region
        $region33: #{tpu_custom_call.1} parent=11 // pred_check
          %p358 = pneg %p258
        $region34: #{tpu_custom_call.1} parent=11 // pred_check_branch
          %360 = sbr.rel (%p358) target = $region36
        $region35: #{tpu_custom_call.1} parent=11 // pred_region
          _
        $region36: #{tpu_custom_call.1} parent=11 // pred_fallthru
          _
        // Predicated region
        $region37: #{tpu_custom_call.1} parent=11 // pred_check
          %p361 = pneg %p279
        $region38: #{tpu_custom_call.1} parent=11 // pred_check_branch
          %363 = sbr.rel (%p361) target = $region40
        $region39: #{tpu_custom_call.1} parent=11 // pred_region
          _
        $region40: #{tpu_custom_call.1} parent=11 // pred_fallthru
          _
        // Predicated region
        $region41: #{tpu_custom_call.1} parent=11 // pred_check
          %p364 = pneg %p300
        $region42: #{tpu_custom_call.1} parent=11 // pred_check_branch
          %366 = sbr.rel (%p364) target = $region44
        $region43: #{tpu_custom_call.1} parent=11 // pred_region
          _
        $region44: #{tpu_custom_call.1} parent=11 // pred_fallthru
          _
      $region12: #{tpu_custom_call.1} parent=5 // pred_fallthru
        _
      %p367 = scmp.lt.s32.totalorder %s20, 2
      // Predicated region
      $region45: #{tpu_custom_call.1} parent=5 // pred_check
        %p368 = pneg %p367
      $region46: #{tpu_custom_call.1} parent=5 // pred_check_branch
        %370 = sbr.rel (%p368) target = $region48
      $region47: #{tpu_custom_call.1} parent=5 // pred_region
        // Predicated region
        $region49: #{tpu_custom_call.1} parent=47 // pred_check
          %p371 = pneg %p54
        $region50: #{tpu_custom_call.1} parent=47 // pred_check_branch
          %373 = sbr.rel (%p371) target = $region52
        $region51: #{tpu_custom_call.1} parent=47 // pred_region
          %s374 = smul.u32 8, %s28
          %p375 = scmp.lt.s32.totalorder %s27, 1
          %s376 = scalar_select %p375, %s27, 1
          %p377 = scmp.lt.s32.totalorder %s374, 7
          %s378 = scalar_select %p377, %s374, 7
          %s379 = smul.addr %s376, 8
          %s380 = sadd.s32 %s378, %s379
          %s381 = smul.addr %s380, 4
          %s382 = scalar_lea.vmem %s0, %s381
          %s383 = smul.u32 8, %s28
        $region52: #{tpu_custom_call.1} parent=47 // pred_fallthru
          _
        // Predicated region
        $region53: #{tpu_custom_call.1} parent=47 // pred_check
          %p384 = pneg %p90
        $region54: #{tpu_custom_call.1} parent=47 // pred_check_branch
          %386 = sbr.rel (%p384) target = $region56
        $region55: #{tpu_custom_call.1} parent=47 // pred_region
          %s387 = smul.u32 %s28, 8
          %s388 = ssub.s32 %s387, 1
          %p389 = scmp.gt.s32.totalorder %s388, 0
          %s390 = scalar_select %p389, %s388, 0
          %p391 = scmp.lt.s32.totalorder %s27, 1
          %s392 = scalar_select %p391, %s27, 1
          %p393 = scmp.lt.s32.totalorder %s390, 7
          %s394 = scalar_select %p393, %s390, 7
          %s395 = smul.addr %s392, 8
          %s396 = sadd.s32 %s394, %s395
          %s397 = smul.addr %s396, 4
          %s398 = scalar_lea.vmem %s1, %s397
          %s399 = smul.u32 %s28, 8
          %s400 = ssub.s32 %s399, 1
          %p401 = scmp.gt.s32.totalorder %s400, 0
          %s402 = scalar_select %p401, %s400, 0
        $region56: #{tpu_custom_call.1} parent=47 // pred_fallthru
          _
        // Predicated region
        $region57: #{tpu_custom_call.1} parent=47 // pred_check
          %p403 = pneg %p126
        $region58: #{tpu_custom_call.1} parent=47 // pred_check_branch
          %405 = sbr.rel (%p403) target = $region60
        $region59: #{tpu_custom_call.1} parent=47 // pred_region
          %s406 = smul.u32 %s28, 8
          %s407 = sadd.s32 %s406, 8
          %p408 = scmp.lt.s32.totalorder %s407, 7
          %s409 = scalar_select %p408, %s407, 7
          %p410 = scmp.lt.s32.totalorder %s27, 1
          %s411 = scalar_select %p410, %s27, 1
          %p412 = scmp.lt.s32.totalorder %s409, 7
          %s413 = scalar_select %p412, %s409, 7
          %s414 = smul.addr %s411, 8
          %s415 = sadd.s32 %s413, %s414
          %s416 = smul.addr %s415, 4
          %s417 = scalar_lea.vmem %s2, %s416
          %s418 = smul.u32 %s28, 8
          %s419 = sadd.s32 %s418, 8
          %p420 = scmp.lt.s32.totalorder %s419, 7
          %s421 = scalar_select %p420, %s419, 7
        $region60: #{tpu_custom_call.1} parent=47 // pred_fallthru
          _
      $region48: #{tpu_custom_call.1} parent=5 // pred_fallthru
        _
      %p422 = scmp.le.s32.totalorder 1, %s20
      %p423 = scmp.lt.s32.totalorder %s20, 3
      %p424 = pnand %p422, %p423
      %p425 = pneg %p424
      // Predicated region
      $region61: #{tpu_custom_call.1} parent=5 // pred_check
        _
      $region62: #{tpu_custom_call.1} parent=5 // pred_check_branch
        %427 = sbr.rel (%p424) target = $region64
      $region63: #{tpu_custom_call.1} parent=5 // pred_region
        %s428 = ssub.s32 %s20, 1
        %s429 = smul.u32 8, %s30
        %p430 = scmp.lt.s32.totalorder %s29, 1
        %s431 = scalar_select %p430, %s29, 1
        %p432 = scmp.lt.s32.totalorder %s429, 7
        %s433 = scalar_select %p432, %s429, 7
        %s434 = smul.addr %s431, 8
        %s435 = sadd.s32 %s433, %s434
        %s436 = smul.addr %s435, 4
        %s437 = scalar_lea.vmem %s0, %s436
        %p438 = pneg %p60
        %p439 = pneg %p57
        %s440 = smul.u32 %s30, 8
        %s441 = ssub.s32 %s440, 1
        %p442 = scmp.gt.s32.totalorder %s441, 0
        %s443 = scalar_select %p442, %s441, 0
        %p444 = scmp.lt.s32.totalorder %s29, 1
        %s445 = scalar_select %p444, %s29, 1
        %p446 = scmp.lt.s32.totalorder %s443, 7
        %s447 = scalar_select %p446, %s443, 7
        %s448 = smul.addr %s445, 8
        %s449 = sadd.s32 %s447, %s448
        %s450 = smul.addr %s449, 4
        %s451 = scalar_lea.vmem %s1, %s450
        %p452 = pneg %p96
        %p453 = pneg %p93
        %s454 = smul.u32 %s30, 8
        %s455 = sadd.s32 %s454, 8
        %p456 = scmp.lt.s32.totalorder %s455, 7
        %s457 = scalar_select %p456, %s455, 7
        %p458 = scmp.lt.s32.totalorder %s29, 1
        %s459 = scalar_select %p458, %s29, 1
        %p460 = scmp.lt.s32.totalorder %s457, 7
        %s461 = scalar_select %p460, %s457, 7
        %s462 = smul.addr %s459, 8
        %s463 = sadd.s32 %s461, %s462
        %s464 = smul.addr %s463, 4
        %s465 = scalar_lea.vmem %s2, %s464
        %p466 = pneg %p132
        %p467 = pneg %p129
        %p468 = pneg %p153
        %p469 = pneg %p150
        %p470 = pneg %p174
        %p471 = pneg %p171
        %p472 = pneg %p195
        %p473 = pneg %p192
        %p474 = pneg %p216
        %p475 = pneg %p213
        %p476 = pneg %p237
        %p477 = pneg %p234
        %p478 = pneg %p258
        %p479 = pneg %p255
        %p480 = pneg %p279
        %p481 = pneg %p276
        %p482 = pneg %p300
        %p483 = pneg %p297
        %p484 = pneg %p328
        %p485 = pneg %p325
        %s486 = sand.u32 %s315, 1
        %s487 = scalar_lea.sflag [#allocation3], %s486
        %s488 = sand.u32 %s315, 1
        %s489 = smul.addr %s488, 32
        %s490 = scalar_lea.vmem [#allocation2], %s489
        %s491 = smul.u32 8, %s30
        %p492 = scmp.lt.s32.totalorder %s29, 1
        %s493 = scalar_select %p492, %s29, 1
        %p494 = scmp.lt.s32.totalorder %s491, 7
        %s495 = scalar_select %p494, %s491, 7
        %s496 = smul.addr %s493, 8
        %s497 = sadd.s32 %s495, %s496
        %s498 = smul.addr %s497, 4
        %s499 = scalar_lea.vmem %s0, %s498
        %s500 = smul.u32 8, %s30
        %s501 = smul.u32 %s30, 8
        %s502 = ssub.s32 %s501, 1
        %p503 = scmp.gt.s32.totalorder %s502, 0
        %s504 = scalar_select %p503, %s502, 0
        %p505 = scmp.lt.s32.totalorder %s29, 1
        %s506 = scalar_select %p505, %s29, 1
        %p507 = scmp.lt.s32.totalorder %s504, 7
        %s508 = scalar_select %p507, %s504, 7
        %s509 = smul.addr %s506, 8
        %s510 = sadd.s32 %s508, %s509
        %s511 = smul.addr %s510, 4
        %s512 = scalar_lea.vmem %s1, %s511
        %s513 = smul.u32 %s30, 8
        %s514 = ssub.s32 %s513, 1
        %p515 = scmp.gt.s32.totalorder %s514, 0
        %s516 = scalar_select %p515, %s514, 0
        %s517 = smul.u32 %s30, 8
        %s518 = sadd.s32 %s517, 8
        %p519 = scmp.lt.s32.totalorder %s518, 7
        %s520 = scalar_select %p519, %s518, 7
        %p521 = scmp.lt.s32.totalorder %s29, 1
        %s522 = scalar_select %p521, %s29, 1
        %p523 = scmp.lt.s32.totalorder %s520, 7
        %s524 = scalar_select %p523, %s520, 7
        %s525 = smul.addr %s522, 8
        %s526 = sadd.s32 %s524, %s525
        %s527 = smul.addr %s526, 4
        %s528 = scalar_lea.vmem %s2, %s527
        %s529 = smul.u32 %s30, 8
        %s530 = sadd.s32 %s529, 8
        %p531 = scmp.lt.s32.totalorder %s530, 7
        %s532 = scalar_select %p531, %s530, 7
        %s533 = smul.u32 8, %s30
        %p535 = scmp.gt.s32.totalorder %s30, 0
        %s536 = scalar_select %p535, 1, 0
        %s537 = scvt.s32.f32 %s536
        %p538 = scmp.lt.s32.totalorder %s30, 0
        %s539 = scalar_select %p538, 1, 0
        %s540 = scvt.s32.f32 %s539
        %v541 = vld [vmem:[%s499] sm:$0xf]
        %v542 = vld [vmem:[%s499 + $0x4] sm:$0xf]
        %v543 = vld [vmem:[%s499 + $0x8] sm:$0xf]
        %v544 = vld [vmem:[%s499 + $0xc] sm:$0xf]
        %v545 = vld [vmem:[%s499 + $0x10] sm:$0xf]
        %v546 = vld [vmem:[%s499 + $0x14] sm:$0xf]
        %v547 = vld [vmem:[%s499 + $0x18] sm:$0xf]
        %v548 = vld [vmem:[%s499 + $0x1c] sm:$0xf]
        %v549 = vld [vmem:[%s3] sm:$0x3]
        %v550 = vld [vmem:[%s4] sm:$0x1]
        %v552 = vlaneseq
        %v553 = vshrl.u32 %v552, 7
        %v554 = vsub.s32 0, %v553
        %v555 = vrot.slane %v550, %v554
        %v565 = vunpack.c.l.b16 %v541
        %v566 = vunpack.c.l.b16 %v542
        %v567 = vunpack.c.l.b16 %v543
        %v568 = vunpack.c.l.b16 %v544
        %v569 = vunpack.c.l.b16 %v545
        %v570 = vunpack.c.l.b16 %v546
        %v571 = vunpack.c.l.b16 %v547
        %v572 = vunpack.c.l.b16 %v548
        %v573 = vpack.c.b16 %v566, %v565
        %v574 = vpack.c.b16 %v568, %v567
        %v575 = vpack.c.b16 %v570, %v569
        %v576 = vpack.c.b16 %v572, %v571
        %vm577 = vcmask 31744
        %v579 = vsel %vm577, %v573, 0
        %v582 = vsel %vm577, %v574, 0
        %v585 = vsel %vm577, %v575, 0
        %v588 = vsel %vm577, %v576, 0
        %vm590 = vcmask 1041408
        %v592 = vsel %vm590, %v549, 0
        %594 = vmatprep.subr.bf16.mxu0 0
        %595 = vmatpush1.bf16.msra.mxu0 0
        %596 = vmatprep.subr.bf16.mxu0 0
        %597 = vmatpush1.bf16.msra.mxu0 0
        %598 = vmatprep.subr.bf16.mxu0 0
        %599 = vmatpush1.bf16.msra.mxu0 0
        %600 = vmatprep.subr.bf16.mxu0 0
        %601 = vmatpush1.bf16.msra.mxu0 0
        %602 = vmatprep.subr.bf16.mxu0 0
        %603 = vmatpush1.bf16.msra.mxu0 0
        %604 = vmatprep.subr.bf16.mxu0 0
        %605 = vmatpush1.bf16.msra.mxu0 0
        %606 = vmatprep.subr.bf16.mxu0 0
        %607 = vmatpush1.bf16.msra.mxu0 0
        %608 = vmatprep.subr.bf16.mxu0 0
        %609 = vmatpush1.bf16.msra.mxu0 %v592
        %610 = vmatprep.subr.bf16.mxu0 0
        %611 = vmatpush2.bf16.msra.mxu0 0
        %612 = vmatprep.subr.bf16.mxu0 0
        %613 = vmatpush2.bf16.msra.mxu0 0
        %614 = vmatprep.subr.bf16.mxu0 0
        %615 = vmatpush2.bf16.msra.mxu0 0
        %616 = vmatprep.subr.bf16.mxu0 0
        %617 = vmatpush2.bf16.msra.mxu0 0
        %618 = vmatprep.subr.bf16.mxu0 0
        %619 = vmatpush2.bf16.msra.mxu0 0
        %620 = vmatprep.subr.bf16.mxu0 0
        %621 = vmatpush2.bf16.msra.mxu0 0
        %622 = vmatprep.subr.bf16.mxu0 0
        %623 = vmatpush2.bf16.msra.mxu0 0
        %624 = vmatprep.subr.bf16.mxu0 0
        %625 = vmatpush2.bf16.msra.mxu0 0
        %626 = vmatprep.mubr.bf16.mxu0 0
        %627 = vmatmul.mubr.bf16.gmra.mxu0 %v579
        %v628 = vpop.f32.mrf.mxu0
        %v629 = vadd.f32 %v555, %v628
        %v630 = vpop.f32.mrf.mxu0
        %v631 = vpop.f32.mrf.mxu0
        %v632 = vadd.f32 %v555, %v631
        %v633 = vpop.f32.mrf.mxu0
        %634 = vmatprep.mubr.bf16.mxu0 0
        %635 = vmatmul.mubr.bf16.gmra.mxu0 %v582
        %v636 = vpop.f32.mrf.mxu0
        %v637 = vadd.f32 %v555, %v636
        %v638 = vpop.f32.mrf.mxu0
        %v639 = vpop.f32.mrf.mxu0
        %v640 = vadd.f32 %v555, %v639
        %v641 = vpop.f32.mrf.mxu0
        %642 = vmatprep.mubr.bf16.mxu0 0
        %643 = vmatmul.mubr.bf16.gmra.mxu0 %v585
        %v644 = vpop.f32.mrf.mxu0
        %v645 = vadd.f32 %v555, %v644
        %v646 = vpop.f32.mrf.mxu0
        %v647 = vpop.f32.mrf.mxu0
        %v648 = vadd.f32 %v555, %v647
        %v649 = vpop.f32.mrf.mxu0
        %650 = vmatprep.mubr.bf16.mxu0 0
        %651 = vmatmul.mubr.bf16.gmra.mxu0 %v588
        %v652 = vpop.f32.mrf.mxu0
        %v653 = vadd.f32 %v555, %v652
        %v654 = vpop.f32.mrf.mxu0
        %v655 = vpop.f32.mrf.mxu0
        %v656 = vadd.f32 %v555, %v655
        %v657 = vpop.f32.mrf.mxu0
        %658 = vdwg.mxu0
        %v659 = vmax.f32 %v629, 0.0
        %v660 = vmax.f32 %v632, 0.0
        %v661 = vmax.f32 %v637, 0.0
        %v662 = vmax.f32 %v640, 0.0
        %v663 = vmax.f32 %v645, 0.0
        %v664 = vmax.f32 %v648, 0.0
        %v665 = vmax.f32 %v653, 0.0
        %v666 = vmax.f32 %v656, 0.0
        %v667 = vpack.c.bf16 %v660, %v659
        %v668 = vpack.c.bf16 %v662, %v661
        %v669 = vpack.c.bf16 %v664, %v663
        %v670 = vpack.c.bf16 %v666, %v665
        %v675 = vunpack.c.l.b16 %v667
        %v676 = vunpack.c.h.b16 %v667
        %v677 = vunpack.c.l.b16 %v668
        %v678 = vunpack.c.h.b16 %v668
        %v679 = vunpack.c.l.b16 %v669
        %v680 = vunpack.c.h.b16 %v669
        %v681 = vunpack.c.l.b16 %v670
        %v682 = vunpack.c.h.b16 %v670
        %v683 = vpack.c.b16 %v675, %v675
        %v684 = vpack.c.b16 %v676, %v676
        %v685 = vpack.c.b16 %v677, %v677
        %v686 = vpack.c.b16 %v678, %v678
        %v687 = vpack.c.b16 %v679, %v679
        %v688 = vpack.c.b16 %v680, %v680
        %v689 = vpack.c.b16 %v681, %v681
        %v690 = vpack.c.b16 %v682, %v682
        %v691 = vld [vmem:[%s512] sm:$0xf]
        %v693 = vsel %vm577, %v691, 0
        %695 = vmatprep.subr.bf16.mxu0 0
        %696 = vmatpush1.bf16.msra.mxu0 0
        %697 = vmatprep.subr.bf16.mxu0 0
        %698 = vmatpush1.bf16.msra.mxu0 0
        %699 = vmatprep.subr.bf16.mxu0 0
        %700 = vmatpush1.bf16.msra.mxu0 0
        %701 = vmatprep.subr.bf16.mxu0 0
        %702 = vmatpush1.bf16.msra.mxu0 0
        %703 = vmatprep.subr.bf16.mxu0 0
        %704 = vmatpush1.bf16.msra.mxu0 0
        %705 = vmatprep.subr.bf16.mxu0 0
        %706 = vmatpush1.bf16.msra.mxu0 0
        %707 = vmatprep.subr.bf16.mxu0 0
        %708 = vmatpush1.bf16.msra.mxu0 0
        %709 = vmatprep.subr.bf16.mxu0 0
        %710 = vmatpush1.bf16.msra.mxu0 %v592
        %711 = vmatprep.subr.bf16.mxu0 0
        %712 = vmatpush2.bf16.msra.mxu0 0
        %713 = vmatprep.subr.bf16.mxu0 0
        %714 = vmatpush2.bf16.msra.mxu0 0
        %715 = vmatprep.subr.bf16.mxu0 0
        %716 = vmatpush2.bf16.msra.mxu0 0
        %717 = vmatprep.subr.bf16.mxu0 0
        %718 = vmatpush2.bf16.msra.mxu0 0
        %719 = vmatprep.subr.bf16.mxu0 0
        %720 = vmatpush2.bf16.msra.mxu0 0
        %721 = vmatprep.subr.bf16.mxu0 0
        %722 = vmatpush2.bf16.msra.mxu0 0
        %723 = vmatprep.subr.bf16.mxu0 0
        %724 = vmatpush2.bf16.msra.mxu0 0
        %725 = vmatprep.subr.bf16.mxu0 0
        %726 = vmatpush2.bf16.msra.mxu0 0
        %727 = vmatprep.mubr.bf16.mxu0 0
        %728 = vmatmul.mubr.bf16.gmra.mxu0 %v693
        %v729 = vpop.f32.mrf.mxu0
        %v730 = vadd.f32 %v555, %v729
        %v731 = vpop.f32.mrf.mxu0
        %v732 = vpop.f32.mrf.mxu0
        %v733 = vpop.f32.mrf.mxu0
        %734 = vdwg.mxu0
        %v735 = vmax.f32 %v730, 0.0
        %v736 = vstv %s537
        %v737 = vmul.f32 %v735, %v736
        %v738 = vpack.c.bf16 %v737, %v737
        %v739 = vld [vmem:[%s528] sm:$0xf]
        %v741 = vsel %vm577, %v739, 0
        %743 = vmatprep.subr.bf16.mxu0 0
        %744 = vmatpush1.bf16.msra.mxu0 0
        %745 = vmatprep.subr.bf16.mxu0 0
        %746 = vmatpush1.bf16.msra.mxu0 0
        %747 = vmatprep.subr.bf16.mxu0 0
        %748 = vmatpush1.bf16.msra.mxu0 0
        %749 = vmatprep.subr.bf16.mxu0 0
        %750 = vmatpush1.bf16.msra.mxu0 0
        %751 = vmatprep.subr.bf16.mxu0 0
        %752 = vmatpush1.bf16.msra.mxu0 0
        %753 = vmatprep.subr.bf16.mxu0 0
        %754 = vmatpush1.bf16.msra.mxu0 0
        %755 = vmatprep.subr.bf16.mxu0 0
        %756 = vmatpush1.bf16.msra.mxu0 0
        %757 = vmatprep.subr.bf16.mxu0 0
        %758 = vmatpush1.bf16.msra.mxu0 %v592
        %759 = vmatprep.subr.bf16.mxu0 0
        %760 = vmatpush2.bf16.msra.mxu0 0
        %761 = vmatprep.subr.bf16.mxu0 0
        %762 = vmatpush2.bf16.msra.mxu0 0
        %763 = vmatprep.subr.bf16.mxu0 0
        %764 = vmatpush2.bf16.msra.mxu0 0
        %765 = vmatprep.subr.bf16.mxu0 0
        %766 = vmatpush2.bf16.msra.mxu0 0
        %767 = vmatprep.subr.bf16.mxu0 0
        %768 = vmatpush2.bf16.msra.mxu0 0
        %769 = vmatprep.subr.bf16.mxu0 0
        %770 = vmatpush2.bf16.msra.mxu0 0
        %771 = vmatprep.subr.bf16.mxu0 0
        %772 = vmatpush2.bf16.msra.mxu0 0
        %773 = vmatprep.subr.bf16.mxu0 0
        %774 = vmatpush2.bf16.msra.mxu0 0
        %775 = vmatprep.mubr.bf16.mxu0 0
        %776 = vmatmul.mubr.bf16.gmra.mxu0 %v741
        %v777 = vpop.f32.mrf.mxu0
        %v778 = vadd.f32 %v555, %v777
        %v779 = vpop.f32.mrf.mxu0
        %v780 = vpop.f32.mrf.mxu0
        %v781 = vpop.f32.mrf.mxu0
        %782 = vdwg.mxu0
        %v783 = vmax.f32 %v778, 0.0
        %v784 = vstv %s540
        %v785 = vmul.f32 %v783, %v784
        %v786 = vpack.c.bf16 %v785, %v785
        %v788 = vshrl.u32 %v738, 16
        %v790 = vrot.slane %v788, 7
        %v791 = vshll.u32 %v738, 16
        %v793 = vor.u32 %v790, %v791
        %v795 = vshrl.u32 %v683, 16
        %v797 = vrot.slane %v795, 7
        %v798 = vshll.u32 %v683, 16
        %v800 = vor.u32 %v797, %v798
        %v802 = vshrl.u32 %v684, 16
        %v804 = vrot.slane %v802, 7
        %v805 = vshll.u32 %v684, 16
        %v807 = vor.u32 %v804, %v805
        %v809 = vshrl.u32 %v685, 16
        %v811 = vrot.slane %v809, 7
        %v812 = vshll.u32 %v685, 16
        %v814 = vor.u32 %v811, %v812
        %v816 = vshrl.u32 %v686, 16
        %v818 = vrot.slane %v816, 7
        %v819 = vshll.u32 %v686, 16
        %v821 = vor.u32 %v818, %v819
        %v823 = vshrl.u32 %v687, 16
        %v825 = vrot.slane %v823, 7
        %v826 = vshll.u32 %v687, 16
        %v828 = vor.u32 %v825, %v826
        %v830 = vshrl.u32 %v688, 16
        %v832 = vrot.slane %v830, 7
        %v833 = vshll.u32 %v688, 16
        %v835 = vor.u32 %v832, %v833
        %v837 = vshrl.u32 %v689, 16
        %v839 = vrot.slane %v837, 7
        %v840 = vshll.u32 %v689, 16
        %v842 = vor.u32 %v839, %v840
        %v844 = vshrl.u32 %v690, 16
        %v846 = vrot.slane %v844, 7
        %v847 = vshll.u32 %v690, 16
        %v849 = vor.u32 %v846, %v847
        %v851 = vshrl.u32 %v786, 16
        %v853 = vrot.slane %v851, 7
        %v854 = vshll.u32 %v786, 16
        %v856 = vor.u32 %v853, %v854
        %vm867 = vcmask 1040384
        %vm868 = vsmask.f32 256
        %vm869 = vmand %vm867, %vm868
        %v870 = vsel %vm869, 0, %v793
        %v871 = vsel %vm869, 0, %v800
        %v872 = vsel %vm869, 0, %v807
        %v873 = vsel %vm869, 0, %v814
        %v874 = vsel %vm869, 0, %v821
        %v875 = vsel %vm869, 0, %v828
        %v876 = vsel %vm869, 0, %v835
        %v877 = vsel %vm869, 0, %v842
        %v878 = vsel %vm869, 0, %v849
        %v879 = vsel %vm869, 0, %v856
        %vm880 = vcmask 1044480
        %vm881 = vsmask.f32 4352
        %vm882 = vmand %vm880, %vm881
        %v883 = vsel %vm882, %v870, 0
        %v884 = vsel %vm882, %v871, 0
        %v885 = vsel %vm882, %v872, 0
        %v886 = vsel %vm882, %v873, 0
        %v887 = vsel %vm882, %v874, 0
        %v888 = vsel %vm882, %v875, 0
        %v889 = vsel %vm882, %v876, 0
        %v890 = vsel %vm882, %v877, 0
        %v891 = vsel %vm882, %v878, 0
        %v892 = vsel %vm882, %v879, 0
        %v894 = vshrl.u32 %v883, 16
        %v896 = vshll.u32 %v883, 16
        %v898 = vrot.slane %v896, 1
        %v899 = vor.u32 %v894, %v898
        %v901 = vshrl.u32 %v884, 16
        %v903 = vshll.u32 %v884, 16
        %v905 = vrot.slane %v903, 1
        %v906 = vor.u32 %v901, %v905
        %v908 = vshrl.u32 %v885, 16
        %v910 = vshll.u32 %v885, 16
        %v912 = vrot.slane %v910, 1
        %v913 = vor.u32 %v908, %v912
        %v915 = vshrl.u32 %v886, 16
        %v917 = vshll.u32 %v886, 16
        %v919 = vrot.slane %v917, 1
        %v920 = vor.u32 %v915, %v919
        %v922 = vshrl.u32 %v887, 16
        %v924 = vshll.u32 %v887, 16
        %v926 = vrot.slane %v924, 1
        %v927 = vor.u32 %v922, %v926
        %v929 = vshrl.u32 %v888, 16
        %v931 = vshll.u32 %v888, 16
        %v933 = vrot.slane %v931, 1
        %v934 = vor.u32 %v929, %v933
        %v936 = vshrl.u32 %v889, 16
        %v938 = vshll.u32 %v889, 16
        %v940 = vrot.slane %v938, 1
        %v941 = vor.u32 %v936, %v940
        %v943 = vshrl.u32 %v890, 16
        %v945 = vshll.u32 %v890, 16
        %v947 = vrot.slane %v945, 1
        %v948 = vor.u32 %v943, %v947
        %949 = vrot.lane.b32.xlu0 %v899, 8
        %v950 = vpop.permute.xlu0 %949
        %951 = vrot.lane.b32.xlu0 %v906, 8
        %v952 = vpop.permute.xlu0 %951
        %953 = vrot.lane.b32.xlu0 %v913, 8
        %v954 = vpop.permute.xlu0 %953
        %955 = vrot.lane.b32.xlu0 %v920, 8
        %v956 = vpop.permute.xlu0 %955
        %957 = vrot.lane.b32.xlu0 %v927, 8
        %v958 = vpop.permute.xlu0 %957
        %959 = vrot.lane.b32.xlu0 %v934, 8
        %v960 = vpop.permute.xlu0 %959
        %961 = vrot.lane.b32.xlu0 %v941, 8
        %v962 = vpop.permute.xlu0 %961
        %963 = vrot.lane.b32.xlu0 %v948, 8
        %v964 = vpop.permute.xlu0 %963
        %v973 = vrot.slane %v883, 1
        %v974 = vrot.slane %v884, 1
        %v975 = vrot.slane %v885, 1
        %v976 = vrot.slane %v886, 1
        %v977 = vrot.slane %v887, 1
        %v978 = vrot.slane %v888, 1
        %v979 = vrot.slane %v889, 1
        %v980 = vrot.slane %v890, 1
        %981 = vrot.lane.b32.xlu0 %v973, 16
        %v982 = vpop.permute.xlu0 %981
        %983 = vrot.lane.b32.xlu0 %v974, 16
        %v984 = vpop.permute.xlu0 %983
        %985 = vrot.lane.b32.xlu0 %v975, 16
        %v986 = vpop.permute.xlu0 %985
        %987 = vrot.lane.b32.xlu0 %v976, 16
        %v988 = vpop.permute.xlu0 %987
        %989 = vrot.lane.b32.xlu0 %v977, 16
        %v990 = vpop.permute.xlu0 %989
        %991 = vrot.lane.b32.xlu0 %v978, 16
        %v992 = vpop.permute.xlu0 %991
        %993 = vrot.lane.b32.xlu0 %v979, 16
        %v994 = vpop.permute.xlu0 %993
        %995 = vrot.lane.b32.xlu0 %v980, 16
        %v996 = vpop.permute.xlu0 %995
        %vm997 = vcmask 64512
        %v999 = vsel %vm997, %v883, %v950
        %v1001 = vsel %vm997, %v884, %v952
        %v1003 = vsel %vm997, %v885, %v954
        %v1005 = vsel %vm997, %v886, %v956
        %v1007 = vsel %vm997, %v887, %v958
        %v1009 = vsel %vm997, %v888, %v960
        %v1011 = vsel %vm997, %v889, %v962
        %v1013 = vsel %vm997, %v890, %v964
        %vm1014 = vcmask 130048
        %v1016 = vsel %vm1014, %v999, %v982
        %v1018 = vsel %vm1014, %v1001, %v984
        %v1020 = vsel %vm1014, %v1003, %v986
        %v1022 = vsel %vm1014, %v1005, %v988
        %v1024 = vsel %vm1014, %v1007, %v990
        %v1026 = vsel %vm1014, %v1009, %v992
        %v1028 = vsel %vm1014, %v1011, %v994
        %v1030 = vsel %vm1014, %v1013, %v996
        %v1031 = vld [vmem:[%s5] sm:$0xf]
        %v1032 = vld [vmem:[%s5 + $0x4] sm:$0xf]
        %v1033 = vld [vmem:[%s5 + $0x8] sm:$0xf]
        %v1035 = vshrl.u32 %v891, 16
        %v1037 = vshll.u32 %v891, 16
        %v1039 = vrot.slane %v1037, 1
        %v1040 = vor.u32 %v1035, %v1039
        %1041 = vrot.lane.b32.xlu0 %v1040, 8
        %v1042 = vpop.permute.xlu0 %1041
        %v1044 = vrot.slane %v891, 1
        %1045 = vrot.lane.b32.xlu0 %v1044, 16
        %v1046 = vpop.permute.xlu0 %1045
        %v1048 = vsel %vm997, %v891, %v1042
        %v1050 = vsel %vm1014, %v1048, %v1046
        %s1051 = scalar_lea.vmem %s5, 12
        %v1052 = vld [vmem:[%s1051] sm:$0xf]
        %v1053 = vld [vmem:[%s1051 + $0x4] sm:$0xf]
        %v1054 = vld [vmem:[%s1051 + $0x8] sm:$0xf]
        %v1063 = vunpack.c.l.b16 %v1018
        %v1064 = vunpack.c.l.b16 %v1020
        %v1065 = vunpack.c.l.b16 %v1022
        %v1066 = vunpack.c.l.b16 %v1024
        %v1067 = vunpack.c.l.b16 %v1026
        %v1068 = vunpack.c.l.b16 %v1028
        %v1069 = vunpack.c.l.b16 %v1030
        %v1070 = vunpack.c.l.b16 %v1050
        %v1071 = vpack.c.b16 %v1064, %v1063
        %v1072 = vpack.c.b16 %v1066, %v1065
        %v1073 = vpack.c.b16 %v1068, %v1067
        %v1074 = vpack.c.b16 %v1070, %v1069
        %v1078 = vunpack.c.l.b16 %v1052
        %v1079 = vunpack.c.l.b16 %v1053
        %v1080 = vunpack.c.l.b16 %v1054
        %v1081 = vpack.c.b16 %v1079, %v1078
        %v1082 = vpack.c.b16 %v1080, %v1080
        %vm1084 = vcmask 195584
        %v1086 = vsel %vm1084, %v1071, 0
        %v1089 = vsel %vm1084, %v1072, 0
        %v1092 = vsel %vm1084, %v1073, 0
        %v1095 = vsel %vm1084, %v1074, 0
        %vm1097 = vcmask 1043456
        %v1099 = vsel %vm1097, %v1082, 0
        %1101 = vmatprep.subr.bf16.mxu0 0
        %1102 = vmatpush1.bf16.msra.mxu0 0
        %1103 = vmatprep.subr.bf16.mxu0 0
        %1104 = vmatpush1.bf16.msra.mxu0 0
        %1105 = vmatprep.subr.bf16.mxu0 0
        %1106 = vmatpush1.bf16.msra.mxu0 0
        %1107 = vmatprep.subr.bf16.mxu0 0
        %1108 = vmatpush1.bf16.msra.mxu0 0
        %1109 = vmatprep.subr.bf16.mxu0 0
        %1110 = vmatpush1.bf16.msra.mxu0 0
        %1111 = vmatprep.subr.bf16.mxu0 0
        %1112 = vmatpush1.bf16.msra.mxu0 0
        %1113 = vmatprep.subr.bf16.mxu0 0
        %1114 = vmatpush1.bf16.msra.mxu0 %v1099
        %1115 = vmatprep.subr.bf16.mxu0 0
        %1116 = vmatpush1.bf16.msra.mxu0 %v1081
        %1117 = vmatprep.subr.bf16.mxu0 0
        %1118 = vmatpush2.bf16.msra.mxu0 0
        %1119 = vmatprep.subr.bf16.mxu0 0
        %1120 = vmatpush2.bf16.msra.mxu0 0
        %1121 = vmatprep.subr.bf16.mxu0 0
        %1122 = vmatpush2.bf16.msra.mxu0 0
        %1123 = vmatprep.subr.bf16.mxu0 0
        %1124 = vmatpush2.bf16.msra.mxu0 0
        %1125 = vmatprep.subr.bf16.mxu0 0
        %1126 = vmatpush2.bf16.msra.mxu0 0
        %1127 = vmatprep.subr.bf16.mxu0 0
        %1128 = vmatpush2.bf16.msra.mxu0 0
        %1129 = vmatprep.subr.bf16.mxu0 0
        %1130 = vmatpush2.bf16.msra.mxu0 0
        %1131 = vmatprep.subr.bf16.mxu0 0
        %1132 = vmatpush2.bf16.msra.mxu0 0
        %1133 = vmatprep.mubr.bf16.mxu0 0
        %1134 = vmatmul.mubr.bf16.gmra.mxu0 %v1086
        %v1135 = vpop.f32.mrf.mxu0
        %v1136 = vadd.f32 0.0, %v1135
        %v1137 = vpop.f32.mrf.mxu0
        %v1138 = vpop.f32.mrf.mxu0
        %v1139 = vadd.f32 0.0, %v1138
        %v1140 = vpop.f32.mrf.mxu0
        %1141 = vmatprep.mubr.bf16.mxu0 0
        %1142 = vmatmul.mubr.bf16.gmra.mxu0 %v1089
        %v1143 = vpop.f32.mrf.mxu0
        %v1144 = vadd.f32 0.0, %v1143
        %v1145 = vpop.f32.mrf.mxu0
        %v1146 = vpop.f32.mrf.mxu0
        %v1147 = vadd.f32 0.0, %v1146
        %v1148 = vpop.f32.mrf.mxu0
        %1149 = vmatprep.mubr.bf16.mxu0 0
        %1150 = vmatmul.mubr.bf16.gmra.mxu0 %v1092
        %v1151 = vpop.f32.mrf.mxu0
        %v1152 = vadd.f32 0.0, %v1151
        %v1153 = vpop.f32.mrf.mxu0
        %v1154 = vpop.f32.mrf.mxu0
        %v1155 = vadd.f32 0.0, %v1154
        %v1156 = vpop.f32.mrf.mxu0
        %1157 = vmatprep.mubr.bf16.mxu0 0
        %1158 = vmatmul.mubr.bf16.gmra.mxu0 %v1095
        %v1159 = vpop.f32.mrf.mxu0
        %v1160 = vadd.f32 0.0, %v1159
        %v1161 = vpop.f32.mrf.mxu0
        %v1162 = vpop.f32.mrf.mxu0
        %v1163 = vadd.f32 0.0, %v1162
        %v1164 = vpop.f32.mrf.mxu0
        %1165 = vdwg.mxu0
        %v1167 = vunpack.c.l.b16 %v1016
        %v1168 = vpack.c.b16 %v1063, %v1167
        %v1169 = vpack.c.b16 %v1065, %v1064
        %v1170 = vpack.c.b16 %v1067, %v1066
        %v1171 = vpack.c.b16 %v1069, %v1068
        %v1175 = vunpack.c.l.b16 %v1031
        %v1176 = vunpack.c.l.b16 %v1032
        %v1177 = vunpack.c.l.b16 %v1033
        %v1178 = vpack.c.b16 %v1176, %v1175
        %v1179 = vpack.c.b16 %v1177, %v1177
        %v1182 = vsel %vm1084, %v1168, 0
        %v1185 = vsel %vm1084, %v1169, 0
        %v1188 = vsel %vm1084, %v1170, 0
        %v1191 = vsel %vm1084, %v1171, 0
        %v1194 = vsel %vm1097, %v1179, 0
        %1196 = vmatprep.subr.bf16.mxu0 0
        %1197 = vmatpush1.bf16.msra.mxu0 0
        %1198 = vmatprep.subr.bf16.mxu0 0
        %1199 = vmatpush1.bf16.msra.mxu0 0
        %1200 = vmatprep.subr.bf16.mxu0 0
        %1201 = vmatpush1.bf16.msra.mxu0 0
        %1202 = vmatprep.subr.bf16.mxu0 0
        %1203 = vmatpush1.bf16.msra.mxu0 0
        %1204 = vmatprep.subr.bf16.mxu0 0
        %1205 = vmatpush1.bf16.msra.mxu0 0
        %1206 = vmatprep.subr.bf16.mxu0 0
        %1207 = vmatpush1.bf16.msra.mxu0 0
        %1208 = vmatprep.subr.bf16.mxu0 0
        %1209 = vmatpush1.bf16.msra.mxu0 %v1194
        %1210 = vmatprep.subr.bf16.mxu0 0
        %1211 = vmatpush1.bf16.msra.mxu0 %v1178
        %1212 = vmatprep.subr.bf16.mxu0 0
        %1213 = vmatpush2.bf16.msra.mxu0 0
        %1214 = vmatprep.subr.bf16.mxu0 0
        %1215 = vmatpush2.bf16.msra.mxu0 0
        %1216 = vmatprep.subr.bf16.mxu0 0
        %1217 = vmatpush2.bf16.msra.mxu0 0
        %1218 = vmatprep.subr.bf16.mxu0 0
        %1219 = vmatpush2.bf16.msra.mxu0 0
        %1220 = vmatprep.subr.bf16.mxu0 0
        %1221 = vmatpush2.bf16.msra.mxu0 0
        %1222 = vmatprep.subr.bf16.mxu0 0
        %1223 = vmatpush2.bf16.msra.mxu0 0
        %1224 = vmatprep.subr.bf16.mxu0 0
        %1225 = vmatpush2.bf16.msra.mxu0 0
        %1226 = vmatprep.subr.bf16.mxu0 0
        %1227 = vmatpush2.bf16.msra.mxu0 0
        %1228 = vmatprep.mubr.bf16.mxu0 0
        %1229 = vmatmul.mubr.bf16.gmra.mxu0 %v1182
        %v1230 = vpop.f32.mrf.mxu0
        %v1231 = vadd.f32 %v1136, %v1230
        %v1232 = vpop.f32.mrf.mxu0
        %v1233 = vpop.f32.mrf.mxu0
        %v1234 = vadd.f32 %v1139, %v1233
        %v1235 = vpop.f32.mrf.mxu0
        %1236 = vmatprep.mubr.bf16.mxu0 0
        %1237 = vmatmul.mubr.bf16.gmra.mxu0 %v1185
        %v1238 = vpop.f32.mrf.mxu0
        %v1239 = vadd.f32 %v1144, %v1238
        %v1240 = vpop.f32.mrf.mxu0
        %v1241 = vpop.f32.mrf.mxu0
        %v1242 = vadd.f32 %v1147, %v1241
        %v1243 = vpop.f32.mrf.mxu0
        %1244 = vmatprep.mubr.bf16.mxu0 0
        %1245 = vmatmul.mubr.bf16.gmra.mxu0 %v1188
        %v1246 = vpop.f32.mrf.mxu0
        %v1247 = vadd.f32 %v1152, %v1246
        %v1248 = vpop.f32.mrf.mxu0
        %v1249 = vpop.f32.mrf.mxu0
        %v1250 = vadd.f32 %v1155, %v1249
        %v1251 = vpop.f32.mrf.mxu0
        %1252 = vmatprep.mubr.bf16.mxu0 0
        %1253 = vmatmul.mubr.bf16.gmra.mxu0 %v1191
        %v1254 = vpop.f32.mrf.mxu0
        %v1255 = vadd.f32 %v1160, %v1254
        %v1256 = vpop.f32.mrf.mxu0
        %v1257 = vpop.f32.mrf.mxu0
        %v1258 = vadd.f32 %v1163, %v1257
        %v1259 = vpop.f32.mrf.mxu0
        %1260 = vdwg.mxu0
        %v1262 = vshrl.u32 %v892, 16
        %v1264 = vshll.u32 %v892, 16
        %v1266 = vrot.slane %v1264, 1
        %v1267 = vor.u32 %v1262, %v1266
        %1268 = vrot.lane.b32.xlu0 %v1267, 8
        %v1269 = vpop.permute.xlu0 %1268
        %v1271 = vrot.slane %v892, 1
        %1272 = vrot.lane.b32.xlu0 %v1271, 16
        %v1273 = vpop.permute.xlu0 %1272
        %v1275 = vsel %vm997, %v892, %v1269
        %v1277 = vsel %vm1014, %v1275, %v1273
        %s1278 = scalar_lea.vmem %s5, 24
        %v1279 = vld [vmem:[%s1278] sm:$0xf]
        %v1280 = vld [vmem:[%s1278 + $0x4] sm:$0xf]
        %v1281 = vld [vmem:[%s1278 + $0x8] sm:$0xf]
        %v1283 = vunpack.c.l.b16 %v1277
        %v1284 = vpack.c.b16 %v1283, %v1070
        %v1288 = vunpack.c.l.b16 %v1279
        %v1289 = vunpack.c.l.b16 %v1280
        %v1290 = vunpack.c.l.b16 %v1281
        %v1291 = vpack.c.b16 %v1289, %v1288
        %v1292 = vpack.c.b16 %v1290, %v1290
        %v1295 = vsel %vm1084, %v1284, 0
        %v1298 = vsel %vm1097, %v1292, 0
        %1300 = vmatprep.subr.bf16.mxu0 0
        %1301 = vmatpush1.bf16.msra.mxu0 0
        %1302 = vmatprep.subr.bf16.mxu0 0
        %1303 = vmatpush1.bf16.msra.mxu0 0
        %1304 = vmatprep.subr.bf16.mxu0 0
        %1305 = vmatpush1.bf16.msra.mxu0 0
        %1306 = vmatprep.subr.bf16.mxu0 0
        %1307 = vmatpush1.bf16.msra.mxu0 0
        %1308 = vmatprep.subr.bf16.mxu0 0
        %1309 = vmatpush1.bf16.msra.mxu0 0
        %1310 = vmatprep.subr.bf16.mxu0 0
        %1311 = vmatpush1.bf16.msra.mxu0 0
        %1312 = vmatprep.subr.bf16.mxu0 0
        %1313 = vmatpush1.bf16.msra.mxu0 %v1298
        %1314 = vmatprep.subr.bf16.mxu0 0
        %1315 = vmatpush1.bf16.msra.mxu0 %v1291
        %1316 = vmatprep.subr.bf16.mxu0 0
        %1317 = vmatpush2.bf16.msra.mxu0 0
        %1318 = vmatprep.subr.bf16.mxu0 0
        %1319 = vmatpush2.bf16.msra.mxu0 0
        %1320 = vmatprep.subr.bf16.mxu0 0
        %1321 = vmatpush2.bf16.msra.mxu0 0
        %1322 = vmatprep.subr.bf16.mxu0 0
        %1323 = vmatpush2.bf16.msra.mxu0 0
        %1324 = vmatprep.subr.bf16.mxu0 0
        %1325 = vmatpush2.bf16.msra.mxu0 0
        %1326 = vmatprep.subr.bf16.mxu0 0
        %1327 = vmatpush2.bf16.msra.mxu0 0
        %1328 = vmatprep.subr.bf16.mxu0 0
        %1329 = vmatpush2.bf16.msra.mxu0 0
        %1330 = vmatprep.subr.bf16.mxu0 0
        %1331 = vmatpush2.bf16.msra.mxu0 0
        %1332 = vmatprep.mubr.bf16.mxu0 0
        %1333 = vmatmul.mubr.bf16.gmra.mxu0 %v1185
        %v1334 = vpop.f32.mrf.mxu0
        %v1335 = vadd.f32 0.0, %v1334
        %v1336 = vpop.f32.mrf.mxu0
        %v1337 = vpop.f32.mrf.mxu0
        %v1338 = vadd.f32 0.0, %v1337
        %v1339 = vpop.f32.mrf.mxu0
        %1340 = vmatprep.mubr.bf16.mxu0 0
        %1341 = vmatmul.mubr.bf16.gmra.mxu0 %v1188
        %v1342 = vpop.f32.mrf.mxu0
        %v1343 = vadd.f32 0.0, %v1342
        %v1344 = vpop.f32.mrf.mxu0
        %v1345 = vpop.f32.mrf.mxu0
        %v1346 = vadd.f32 0.0, %v1345
        %v1347 = vpop.f32.mrf.mxu0
        %1348 = vmatprep.mubr.bf16.mxu0 0
        %1349 = vmatmul.mubr.bf16.gmra.mxu0 %v1191
        %v1350 = vpop.f32.mrf.mxu0
        %v1351 = vadd.f32 0.0, %v1350
        %v1352 = vpop.f32.mrf.mxu0
        %v1353 = vpop.f32.mrf.mxu0
        %v1354 = vadd.f32 0.0, %v1353
        %v1355 = vpop.f32.mrf.mxu0
        %1356 = vmatprep.mubr.bf16.mxu0 0
        %1357 = vmatmul.mubr.bf16.gmra.mxu0 %v1295
        %v1358 = vpop.f32.mrf.mxu0
        %v1359 = vadd.f32 0.0, %v1358
        %v1360 = vpop.f32.mrf.mxu0
        %v1361 = vpop.f32.mrf.mxu0
        %v1362 = vadd.f32 0.0, %v1361
        %v1363 = vpop.f32.mrf.mxu0
        %1364 = vdwg.mxu0
        %v1365 = vadd.f32 %v1231, %v1335
        %v1366 = vadd.f32 %v1234, %v1338
        %v1367 = vadd.f32 %v1239, %v1343
        %v1368 = vadd.f32 %v1242, %v1346
        %v1369 = vadd.f32 %v1247, %v1351
        %v1370 = vadd.f32 %v1250, %v1354
        %v1371 = vadd.f32 %v1255, %v1359
        %v1372 = vadd.f32 %v1258, %v1362
        %v1373 = vld [vmem:[%s6] sm:$0x1]
        %v1375 = vlaneseq
        %v1376 = vshrl.u32 %v1375, 7
        %v1377 = vsub.s32 0, %v1376
        %v1378 = vrot.slane %v1373, %v1377
        %v1380 = vadd.f32 %v1365, %v1378
        %v1381 = vadd.f32 %v1366, %v1378
        %v1382 = vadd.f32 %v1367, %v1378
        %v1383 = vadd.f32 %v1368, %v1378
        %v1384 = vadd.f32 %v1369, %v1378
        %v1385 = vadd.f32 %v1370, %v1378
        %v1386 = vadd.f32 %v1371, %v1378
        %v1387 = vadd.f32 %v1372, %v1378
        %v1388 = vmax.f32 %v1380, 0.0
        %v1389 = vmax.f32 %v1381, 0.0
        %v1390 = vmax.f32 %v1382, 0.0
        %v1391 = vmax.f32 %v1383, 0.0
        %v1392 = vmax.f32 %v1384, 0.0
        %v1393 = vmax.f32 %v1385, 0.0
        %v1394 = vmax.f32 %v1386, 0.0
        %v1395 = vmax.f32 %v1387, 0.0
        %v1396 = vpack.c.bf16 %v1389, %v1388
        %v1397 = vpack.c.bf16 %v1391, %v1390
        %v1398 = vpack.c.bf16 %v1393, %v1392
        %v1399 = vpack.c.bf16 %v1395, %v1394
        %v1400 = vld [vmem:[%s7] sm:$0xf]
        %v1401 = vld [vmem:[%s8] sm:$0x1]
        %v1403 = vlaneseq
        %v1404 = vshrl.u32 %v1403, 7
        %v1405 = vsub.s32 0, %v1404
        %v1406 = vrot.slane %v1401, %v1405
        %v1409 = vsel %vm997, %v1396, 0
        %v1412 = vsel %vm997, %v1397, 0
        %v1415 = vsel %vm997, %v1398, 0
        %v1418 = vsel %vm997, %v1399, 0
        %v1421 = vsel %vm1097, %v1400, 0
        %1423 = vmatprep.subr.bf16.mxu0 0
        %1424 = vmatpush1.bf16.msra.mxu0 0
        %1425 = vmatprep.subr.bf16.mxu0 0
        %1426 = vmatpush1.bf16.msra.mxu0 0
        %1427 = vmatprep.subr.bf16.mxu0 0
        %1428 = vmatpush1.bf16.msra.mxu0 0
        %1429 = vmatprep.subr.bf16.mxu0 0
        %1430 = vmatpush1.bf16.msra.mxu0 0
        %1431 = vmatprep.subr.bf16.mxu0 0
        %1432 = vmatpush1.bf16.msra.mxu0 0
        %1433 = vmatprep.subr.bf16.mxu0 0
        %1434 = vmatpush1.bf16.msra.mxu0 0
        %1435 = vmatprep.subr.bf16.mxu0 0
        %1436 = vmatpush1.bf16.msra.mxu0 0
        %1437 = vmatprep.subr.bf16.mxu0 0
        %1438 = vmatpush1.bf16.msra.mxu0 %v1421
        %1439 = vmatprep.subr.bf16.mxu0 0
        %1440 = vmatpush2.bf16.msra.mxu0 0
        %1441 = vmatprep.subr.bf16.mxu0 0
        %1442 = vmatpush2.bf16.msra.mxu0 0
        %1443 = vmatprep.subr.bf16.mxu0 0
        %1444 = vmatpush2.bf16.msra.mxu0 0
        %1445 = vmatprep.subr.bf16.mxu0 0
        %1446 = vmatpush2.bf16.msra.mxu0 0
        %1447 = vmatprep.subr.bf16.mxu0 0
        %1448 = vmatpush2.bf16.msra.mxu0 0
        %1449 = vmatprep.subr.bf16.mxu0 0
        %1450 = vmatpush2.bf16.msra.mxu0 0
        %1451 = vmatprep.subr.bf16.mxu0 0
        %1452 = vmatpush2.bf16.msra.mxu0 0
        %1453 = vmatprep.subr.bf16.mxu0 0
        %1454 = vmatpush2.bf16.msra.mxu0 0
        %1455 = vmatprep.mubr.bf16.mxu0 0
        %1456 = vmatmul.mubr.bf16.gmra.mxu0 %v1409
        %v1457 = vpop.f32.mrf.mxu0
        %v1458 = vadd.f32 %v1406, %v1457
        %v1459 = vpop.f32.mrf.mxu0
        %v1460 = vpop.f32.mrf.mxu0
        %v1461 = vadd.f32 %v1406, %v1460
        %v1462 = vpop.f32.mrf.mxu0
        %1463 = vmatprep.mubr.bf16.mxu0 0
        %1464 = vmatmul.mubr.bf16.gmra.mxu0 %v1412
        %v1465 = vpop.f32.mrf.mxu0
        %v1466 = vadd.f32 %v1406, %v1465
        %v1467 = vpop.f32.mrf.mxu0
        %v1468 = vpop.f32.mrf.mxu0
        %v1469 = vadd.f32 %v1406, %v1468
        %v1470 = vpop.f32.mrf.mxu0
        %1471 = vmatprep.mubr.bf16.mxu0 0
        %1472 = vmatmul.mubr.bf16.gmra.mxu0 %v1415
        %v1473 = vpop.f32.mrf.mxu0
        %v1474 = vadd.f32 %v1406, %v1473
        %v1475 = vpop.f32.mrf.mxu0
        %v1476 = vpop.f32.mrf.mxu0
        %v1477 = vadd.f32 %v1406, %v1476
        %v1478 = vpop.f32.mrf.mxu0
        %1479 = vmatprep.mubr.bf16.mxu0 0
        %1480 = vmatmul.mubr.bf16.gmra.mxu0 %v1418
        %v1481 = vpop.f32.mrf.mxu0
        %v1482 = vadd.f32 %v1406, %v1481
        %v1483 = vpop.f32.mrf.mxu0
        %v1484 = vpop.f32.mrf.mxu0
        %v1485 = vadd.f32 %v1406, %v1484
        %v1486 = vpop.f32.mrf.mxu0
        %1487 = vdwg.mxu0
        %v1488 = vmax.f32 %v1458, 0.0
        %v1489 = vmax.f32 %v1461, 0.0
        %v1490 = vmax.f32 %v1466, 0.0
        %v1491 = vmax.f32 %v1469, 0.0
        %v1492 = vmax.f32 %v1474, 0.0
        %v1493 = vmax.f32 %v1477, 0.0
        %v1494 = vmax.f32 %v1482, 0.0
        %v1495 = vmax.f32 %v1485, 0.0
        %v1496 = vld [vmem:[%s9] sm:$0x3]
        %v1497 = vld [vmem:[%s10] sm:$0x1]
        %v1499 = vlaneseq
        %v1500 = vshrl.u32 %v1499, 7
        %v1501 = vsub.s32 0, %v1500
        %v1502 = vrot.slane %v1497, %v1501
        %v1505 = vsel %vm590, %v1496, 0
        %1507 = vmatprep.subr.bf16.mxu0 0
        %1508 = vmatpush1.bf16.msra.mxu0 0
        %1509 = vmatprep.subr.bf16.mxu0 0
        %1510 = vmatpush1.bf16.msra.mxu0 0
        %1511 = vmatprep.subr.bf16.mxu0 0
        %1512 = vmatpush1.bf16.msra.mxu0 0
        %1513 = vmatprep.subr.bf16.mxu0 0
        %1514 = vmatpush1.bf16.msra.mxu0 0
        %1515 = vmatprep.subr.bf16.mxu0 0
        %1516 = vmatpush1.bf16.msra.mxu0 0
        %1517 = vmatprep.subr.bf16.mxu0 0
        %1518 = vmatpush1.bf16.msra.mxu0 0
        %1519 = vmatprep.subr.bf16.mxu0 0
        %1520 = vmatpush1.bf16.msra.mxu0 0
        %1521 = vmatprep.subr.bf16.mxu0 0
        %1522 = vmatpush1.bf16.msra.mxu0 %v1505
        %1523 = vmatprep.subr.bf16.mxu0 0
        %1524 = vmatpush2.bf16.msra.mxu0 0
        %1525 = vmatprep.subr.bf16.mxu0 0
        %1526 = vmatpush2.bf16.msra.mxu0 0
        %1527 = vmatprep.subr.bf16.mxu0 0
        %1528 = vmatpush2.bf16.msra.mxu0 0
        %1529 = vmatprep.subr.bf16.mxu0 0
        %1530 = vmatpush2.bf16.msra.mxu0 0
        %1531 = vmatprep.subr.bf16.mxu0 0
        %1532 = vmatpush2.bf16.msra.mxu0 0
        %1533 = vmatprep.subr.bf16.mxu0 0
        %1534 = vmatpush2.bf16.msra.mxu0 0
        %1535 = vmatprep.subr.bf16.mxu0 0
        %1536 = vmatpush2.bf16.msra.mxu0 0
        %1537 = vmatprep.subr.bf16.mxu0 0
        %1538 = vmatpush2.bf16.msra.mxu0 0
        %1539 = vmatprep.mubr.bf16.mxu0 0
        %1540 = vmatmul.mubr.bf16.gmra.mxu0 %v579
        %v1541 = vpop.f32.mrf.mxu0
        %v1542 = vadd.f32 %v1502, %v1541
        %v1543 = vpop.f32.mrf.mxu0
        %v1544 = vpop.f32.mrf.mxu0
        %v1545 = vadd.f32 %v1502, %v1544
        %v1546 = vpop.f32.mrf.mxu0
        %1547 = vmatprep.mubr.bf16.mxu0 0
        %1548 = vmatmul.mubr.bf16.gmra.mxu0 %v582
        %v1549 = vpop.f32.mrf.mxu0
        %v1550 = vadd.f32 %v1502, %v1549
        %v1551 = vpop.f32.mrf.mxu0
        %v1552 = vpop.f32.mrf.mxu0
        %v1553 = vadd.f32 %v1502, %v1552
        %v1554 = vpop.f32.mrf.mxu0
        %1555 = vmatprep.mubr.bf16.mxu0 0
        %1556 = vmatmul.mubr.bf16.gmra.mxu0 %v585
        %v1557 = vpop.f32.mrf.mxu0
        %v1558 = vadd.f32 %v1502, %v1557
        %v1559 = vpop.f32.mrf.mxu0
        %v1560 = vpop.f32.mrf.mxu0
        %v1561 = vadd.f32 %v1502, %v1560
        %v1562 = vpop.f32.mrf.mxu0
        %1563 = vmatprep.mubr.bf16.mxu0 0
        %1564 = vmatmul.mubr.bf16.gmra.mxu0 %v588
        %v1565 = vpop.f32.mrf.mxu0
        %v1566 = vadd.f32 %v1502, %v1565
        %v1567 = vpop.f32.mrf.mxu0
        %v1568 = vpop.f32.mrf.mxu0
        %v1569 = vadd.f32 %v1502, %v1568
        %v1570 = vpop.f32.mrf.mxu0
        %1571 = vdwg.mxu0
        %v1572 = vmax.f32 %v1542, 0.0
        %v1573 = vmax.f32 %v1545, 0.0
        %v1574 = vmax.f32 %v1550, 0.0
        %v1575 = vmax.f32 %v1553, 0.0
        %v1576 = vmax.f32 %v1558, 0.0
        %v1577 = vmax.f32 %v1561, 0.0
        %v1578 = vmax.f32 %v1566, 0.0
        %v1579 = vmax.f32 %v1569, 0.0
        %v1580 = vadd.f32 %v1572, %v1488
        %v1581 = vadd.f32 %v1573, %v1489
        %v1582 = vadd.f32 %v1574, %v1490
        %v1583 = vadd.f32 %v1575, %v1491
        %v1584 = vadd.f32 %v1576, %v1492
        %v1585 = vadd.f32 %v1577, %v1493
        %v1586 = vadd.f32 %v1578, %v1494
        %v1587 = vadd.f32 %v1579, %v1495
        %v1588 = vpack.c.bf16 %v1580, %v1580
        %v1589 = vpack.c.bf16 %v1581, %v1581
        %v1590 = vpack.c.bf16 %v1582, %v1582
        %v1591 = vpack.c.bf16 %v1583, %v1583
        %v1592 = vpack.c.bf16 %v1584, %v1584
        %v1593 = vpack.c.bf16 %v1585, %v1585
        %v1594 = vpack.c.bf16 %v1586, %v1586
        %v1595 = vpack.c.bf16 %v1587, %v1587
        %vm1596 = vcmask 125952
        %1597 = vst.msk [vmem:[%s490] sm:$0xf] %vm1596, %v1588
        %1598 = vst.msk [vmem:[%s490 + $0x4] sm:$0xf] %vm1596, %v1589
        %1599 = vst.msk [vmem:[%s490 + $0x8] sm:$0xf] %vm1596, %v1590
        %1600 = vst.msk [vmem:[%s490 + $0xc] sm:$0xf] %vm1596, %v1591
        %1601 = vst.msk [vmem:[%s490 + $0x10] sm:$0xf] %vm1596, %v1592
        %1602 = vst.msk [vmem:[%s490 + $0x14] sm:$0xf] %vm1596, %v1593
        %1603 = vst.msk [vmem:[%s490 + $0x18] sm:$0xf] %vm1596, %v1594
        %1604 = vst.msk [vmem:[%s490 + $0x1c] sm:$0xf] %vm1596, %v1595
        %s1605 = sand.u32 %s315, 1
        %s1606 = scalar_lea.sflag [#allocation3], %s1605
        %s1607 = sand.u32 %s315, 1
        %s1608 = smul.addr %s1607, 32
        %s1609 = scalar_lea.vmem [#allocation2], %s1608
        // Predicated region
        $region65: #{tpu_custom_call.1} parent=63 // pred_check
          %p1610 = pneg %p325
        $region66: #{tpu_custom_call.1} parent=63 // pred_check_branch
          %1612 = sbr.rel (%p1610) target = $region68
        $region67: #{tpu_custom_call.1} parent=63 // pred_region
          %s1613 = smul.u32 8, %s30
          %s1615 = ssub.s32 512, 512
          %1616 = vsyncadd %s1606, %s1615
          %s1617 = smul.addr %s29, 8
          %s1618 = sadd.s32 %s1613, %s1617
          %s1619 = smul.addr %s1618, 64
          %s1620 = scalar_lea.hbm %s11, %s1619
          %s1621 = sshll.u32 %s1609, 4
          %s1622 = int_to_ptr.vmem [resolvable:$true] %s1621
          %1627 = dma.vmem_to_hbm [thread:$0]  %s1622, 512, %s1620, %s1606, 64, 64, 4
        $region68: #{tpu_custom_call.1} parent=63 // pred_fallthru
          _
      $region64: #{tpu_custom_call.1} parent=5 // pred_fallthru
        _
      %p1628 = scmp.le.s32.totalorder 2, %s20
      // Predicated region
      $region69: #{tpu_custom_call.1} parent=5 // pred_check
        %p1629 = pneg %p1628
      $region70: #{tpu_custom_call.1} parent=5 // pred_check_branch
        %1631 = sbr.rel (%p1629) target = $region72
      $region71: #{tpu_custom_call.1} parent=5 // pred_region
        %s1632 = ssub.s32 %s20, 2
        // Predicated region
        $region73: #{tpu_custom_call.1} parent=71 // pred_check
          %p1633 = pneg %p331
        $region74: #{tpu_custom_call.1} parent=71 // pred_check_branch
          %1635 = sbr.rel (%p1633) target = $region76
        $region75: #{tpu_custom_call.1} parent=71 // pred_region
          %s1636 = sand.u32 %s316, 1
          %s1637 = scalar_lea.sflag [#allocation3], %s1636
          %s1638 = sand.u32 %s316, 1
          %s1639 = smul.addr %s1638, 32
          %s1640 = scalar_lea.vmem [#allocation2], %s1639
          %1641 = dma.done %s1637, 512
        $region76: #{tpu_custom_call.1} parent=71 // pred_fallthru
          _
      $region72: #{tpu_custom_call.1} parent=5 // pred_fallthru
        _
    $region6: #{tpu_custom_call.1} parent=1 // loop_footer
      %s24 = sadd.s32 1, %s20
    $region7: #{tpu_custom_call.1} parent=1 // loop_footer_branch
      %19 = sbr.rel target = $region3
    $region8: #{tpu_custom_call.1} parent=1 // loop_exit
      _
    %1642 = vsyncpa [#allocation3], 1
    %s1643 = scalar_lea.sflag [#allocation3], 1
    %1644 = vsyncpa %s1643, 1

// kernel: tpu_custom_call.1
$region0: #{tpu_custom_call.1}
  #allocation0 [shape = 'u32[]', space=smem, size = 0x4, offset = 0x4, fixed_abs, tag = 'smem constant byte address 0x4 - core index']
  #allocation1 [shape = 'u32[144,128]{1,0:T(1,128)}', space=vmem, size = 0x12000, scoped, tag = 'internal scratch']
  %s0 = inlined_call_operand.vmem [shape: bf16[2,8,8,4], index: 0, kind: input, shape index: {}]
  %s1 = inlined_call_operand.vmem [shape: bf16[2,8,8,4], index: 1, kind: input, shape index: {}]
  %s2 = inlined_call_operand.vmem [shape: bf16[2,8,8,4], index: 2, kind: input, shape index: {}]
  %s3 = inlined_call_operand.vmem [shape: bf16[4,8], index: 3, kind: input, shape index: {}]
  %s4 = inlined_call_operand.vmem [shape: f32[1,8], index: 4, kind: input, shape index: {}]
  %s5 = inlined_call_operand.vmem [shape: bf16[3,24,8], index: 5, kind: input, shape index: {}]
  %s6 = inlined_call_operand.vmem [shape: f32[1,8], index: 6, kind: input, shape index: {}]
  %s7 = inlined_call_operand.vmem [shape: bf16[8,16], index: 7, kind: input, shape index: {}]
  %s8 = inlined_call_operand.vmem [shape: f32[1,16], index: 8, kind: input, shape index: {}]
  %s9 = inlined_call_operand.vmem [shape: bf16[4,16], index: 9, kind: input, shape index: {}]
  %s10 = inlined_call_operand.vmem [shape: f32[1,16], index: 10, kind: input, shape index: {}]
  %s11 = inlined_call_operand.hbm [shape: bf16[2,8,8,16], index: 11, kind: output, shape index: {}]
  %s12 = sld [smem:[#allocation0]]
  $region77: #{tpu_custom_call.1} parent=0
    _
  %s14 = ssub.s32 1, %s12
  %s15 = scalar_select 0, %s14, %s12
  $region1: #{tpu_custom_call.1} parent=0
    #allocation2 [shape = 'u8[32768]{0}', space=vmem, size = 0x8000, scoped, tag = 'output window, operand 0']
    #allocation3 [shape = 's32[2]{0}', space=sflag, size = 0x8, scoped, tag = 'scoped memory for tpu_custom_call.1']
    %16 = vsyncpa [#allocation3], 0
    %s17 = scalar_lea.sflag [#allocation3], 1
    %18 = vsyncpa %s17, 0
    loop: start=0, step=1, limit=4
    $region2: #{tpu_custom_call.1} parent=1 // loop_pre_header
      _
    $region3: #{tpu_custom_call.1} parent=1 // loop_header
      %s20 = sphi 0, %s24
      %p21 = scmp.ge.s32.totalorder %s20, 4
      %s27 = sphi 0, %s39
      %s28 = sphi 0, %s35
      %s29 = sphi 0, %s27
      %s30 = sphi 0, %s28
      %s31 = sphi 0, %s29
      %s32 = sphi 0, %s30
      %s44 = sphi 0, %s46
      %s47 = sphi 0, %s44
      %s48 = sphi 0, %s47
      %s64 = sphi 0, %s48
      %s80 = sphi 0, %s82
      %s83 = sphi 0, %s80
      %s84 = sphi 0, %s83
      %s100 = sphi 0, %s84
      %s116 = sphi 0, %s118
      %s119 = sphi 0, %s116
      %s120 = sphi 0, %s119
      %s136 = sphi 0, %s120
      %s140 = sphi 0, %s140
      %s142 = sphi 0, %s140
      %s143 = sphi 0, %s142
      %s157 = sphi 0, %s143
      %s161 = sphi 0, %s161
      %s163 = sphi 0, %s161
      %s164 = sphi 0, %s163
      %s178 = sphi 0, %s164
      %s182 = sphi 0, %s182
      %s184 = sphi 0, %s182
      %s185 = sphi 0, %s184
      %s199 = sphi 0, %s185
      %s203 = sphi 0, %s203
      %s205 = sphi 0, %s203
      %s206 = sphi 0, %s205
      %s220 = sphi 0, %s206
      %s224 = sphi 0, %s224
      %s226 = sphi 0, %s224
      %s227 = sphi 0, %s226
      %s241 = sphi 0, %s227
      %s245 = sphi 0, %s245
      %s247 = sphi 0, %s245
      %s248 = sphi 0, %s247
      %s262 = sphi 0, %s248
      %s266 = sphi 0, %s266
      %s268 = sphi 0, %s266
      %s269 = sphi 0, %s268
      %s283 = sphi 0, %s269
      %s287 = sphi 0, %s287
      %s289 = sphi 0, %s287
      %s290 = sphi 0, %s289
      %s304 = sphi 0, %s290
      %s312 = sphi 0, %s314
      %s315 = sphi 0, %s312
      %s316 = sphi 0, %s315
      %s332 = sphi 0, %s316
    $region4: #{tpu_custom_call.1} parent=1 // loop_header_branch
      %23 = sbr.rel (%p21) target = $region8
    $region5: #{tpu_custom_call.1} parent=1 // loop_body
      %s25 = ssub.s32 %s20, 1
      %s26 = ssub.s32 %s20, 2
      %s33 = sadd.s32 1, %s28
      %p34 = scmp.ge.s32.totalorder %s33, 1
      %s35 = scalar_select %p34, 0, %s33
      %s36 = sadd.s32 1, %s27
      %s37 = scalar_select %p34, %s36, %s27
      %p38 = scmp.ge.s32.totalorder %s37, 2
      %s39 = scalar_select %p38, 0, %s37
      %s40 = ssub.s32 %s27, %s39
      %s41 = ssub.s32 %s28, %s35
      %s42 = sor.u32 %s40, %s41
      %p43 = scmp.eq.s32.totalorder %s42, 0
      %s45 = sadd.s32 %s44, 1
      %s46 = scalar_select %p43, %s44, %s45
      %p49 = pneg %p43
      %p50 = scmp.eq.s32.totalorder %s20, 1
      %p51 = por %p49, %p50
      %p52 = scmp.ne.s32.totalorder %s44, %s47
      %p53 = scmp.eq.s32.totalorder %s20, 0
      %p54 = por %p52, %p53
      %p55 = scmp.ne.s32.totalorder %s44, %s47
      %p56 = scmp.eq.s32.totalorder %s25, 1
      %p57 = por %p55, %p56
      %p58 = scmp.ne.s32.totalorder %s47, %s48
      %p59 = scmp.eq.s32.totalorder %s25, 0
      %p60 = por %p58, %p59
      %p61 = scmp.ne.s32.totalorder %s47, %s48
      %p62 = scmp.eq.s32.totalorder %s26, 1
      %p63 = por %p61, %p62
      %p65 = scmp.ne.s32.totalorder %s48, %s64
      %p66 = scmp.eq.s32.totalorder %s26, 0
      %p67 = por %p65, %p66
      %s68 = smul.u32 %s28, 8
      %s69 = ssub.s32 %s68, 1
      %p70 = scmp.gt.s32.totalorder %s69, 0
      %s71 = scalar_select %p70, %s69, 0
      %s72 = smul.u32 %s35, 8
      %s73 = ssub.s32 %s72, 1
      %p74 = scmp.gt.s32.totalorder %s73, 0
      %s75 = scalar_select %p74, %s73, 0
      %s76 = ssub.s32 %s27, %s39
      %s77 = ssub.s32 %s71, %s75
      %s78 = sor.u32 %s76, %s77
      %p79 = scmp.eq.s32.totalorder %s78, 0
      %s81 = sadd.s32 %s80, 1
      %s82 = scalar_select %p79, %s80, %s81
      %p85 = pneg %p79
      %p86 = scmp.eq.s32.totalorder %s20, 1
      %p87 = por %p85, %p86
      %p88 = scmp.ne.s32.totalorder %s80, %s83
      %p89 = scmp.eq.s32.totalorder %s20, 0
      %p90 = por %p88, %p89
      %p91 = scmp.ne.s32.totalorder %s80, %s83
      %p92 = scmp.eq.s32.totalorder %s25, 1
      %p93 = por %p91, %p92
      %p94 = scmp.ne.s32.totalorder %s83, %s84
      %p95 = scmp.eq.s32.totalorder %s25, 0
      %p96 = por %p94, %p95
      %p97 = scmp.ne.s32.totalorder %s83, %s84
      %p98 = scmp.eq.s32.totalorder %s26, 1
      %p99 = por %p97, %p98
      %p101 = scmp.ne.s32.totalorder %s84, %s100
      %p102 = scmp.eq.s32.totalorder %s26, 0
      %p103 = por %p101, %p102
      %s104 = smul.u32 %s28, 8
      %s105 = sadd.s32 %s104, 8
      %p106 = scmp.lt.s32.totalorder %s105, 7
      %s107 = scalar_select %p106, %s105, 7
      %s108 = smul.u32 %s35, 8
      %s109 = sadd.s32 %s108, 8
      %p110 = scmp.lt.s32.totalorder %s109, 7
      %s111 = scalar_select %p110, %s109, 7
      %s112 = ssub.s32 %s27, %s39
      %s113 = ssub.s32 %s107, %s111
      %s114 = sor.u32 %s112, %s113
      %p115 = scmp.eq.s32.totalorder %s114, 0
      %s117 = sadd.s32 %s116, 1
      %s118 = scalar_select %p115, %s116, %s117
      %p121 = pneg %p115
      %p122 = scmp.eq.s32.totalorder %s20, 1
      %p123 = por %p121, %p122
      %p124 = scmp.ne.s32.totalorder %s116, %s119
      %p125 = scmp.eq.s32.totalorder %s20, 0
      %p126 = por %p124, %p125
      %p127 = scmp.ne.s32.totalorder %s116, %s119
      %p128 = scmp.eq.s32.totalorder %s25, 1
      %p129 = por %p127, %p128
      %p130 = scmp.ne.s32.totalorder %s119, %s120
      %p131 = scmp.eq.s32.totalorder %s25, 0
      %p132 = por %p130, %p131
      %p133 = scmp.ne.s32.totalorder %s119, %s120
      %p134 = scmp.eq.s32.totalorder %s26, 1
      %p135 = por %p133, %p134
      %p137 = scmp.ne.s32.totalorder %s120, %s136
      %p138 = scmp.eq.s32.totalorder %s26, 0
      %p139 = por %p137, %p138
      %s141 = sadd.s32 %s140, 1
      %p144 = scmp.eq.s32.totalorder %s20, 1
      %p145 = scmp.ne.s32.totalorder %s140, %s142
      %p146 = scmp.eq.s32.totalorder %s20, 0
      %p147 = por %p145, %p146
      %p148 = scmp.ne.s32.totalorder %s140, %s142
      %p149 = scmp.eq.s32.totalorder %s25, 1
      %p150 = por %p148, %p149
      %p151 = scmp.ne.s32.totalorder %s142, %s143
      %p152 = scmp.eq.s32.totalorder %s25, 0
      %p153 = por %p151, %p152
      %p154 = scmp.ne.s32.totalorder %s142, %s143
      %p155 = scmp.eq.s32.totalorder %s26, 1
      %p156 = por %p154, %p155
      %p158 = scmp.ne.s32.totalorder %s143, %s157
      %p159 = scmp.eq.s32.totalorder %s26, 0
      %p160 = por %p158, %p159
      %s162 = sadd.s32 %s161, 1
      %p165 = scmp.eq.s32.totalorder %s20, 1
      %p166 = scmp.ne.s32.totalorder %s161, %s163
      %p167 = scmp.eq.s32.totalorder %s20, 0
      %p168 = por %p166, %p167
      %p169 = scmp.ne.s32.totalorder %s161, %s163
      %p170 = scmp.eq.s32.totalorder %s25, 1
      %p171 = por %p169, %p170
      %p172 = scmp.ne.s32.totalorder %s163, %s164
      %p173 = scmp.eq.s32.totalorder %s25, 0
      %p174 = por %p172, %p173
      %p175 = scmp.ne.s32.totalorder %s163, %s164
      %p176 = scmp.eq.s32.totalorder %s26, 1
      %p177 = por %p175, %p176
      %p179 = scmp.ne.s32.totalorder %s164, %s178
      %p180 = scmp.eq.s32.totalorder %s26, 0
      %p181 = por %p179, %p180
      %s183 = sadd.s32 %s182, 1
      %p186 = scmp.eq.s32.totalorder %s20, 1
      %p187 = scmp.ne.s32.totalorder %s182, %s184
      %p188 = scmp.eq.s32.totalorder %s20, 0
      %p189 = por %p187, %p188
      %p190 = scmp.ne.s32.totalorder %s182, %s184
      %p191 = scmp.eq.s32.totalorder %s25, 1
      %p192 = por %p190, %p191
      %p193 = scmp.ne.s32.totalorder %s184, %s185
      %p194 = scmp.eq.s32.totalorder %s25, 0
      %p195 = por %p193, %p194
      %p196 = scmp.ne.s32.totalorder %s184, %s185
      %p197 = scmp.eq.s32.totalorder %s26, 1
      %p198 = por %p196, %p197
      %p200 = scmp.ne.s32.totalorder %s185, %s199
      %p201 = scmp.eq.s32.totalorder %s26, 0
      %p202 = por %p200, %p201
      %s204 = sadd.s32 %s203, 1
      %p207 = scmp.eq.s32.totalorder %s20, 1
      %p208 = scmp.ne.s32.totalorder %s203, %s205
      %p209 = scmp.eq.s32.totalorder %s20, 0
      %p210 = por %p208, %p209
      %p211 = scmp.ne.s32.totalorder %s203, %s205
      %p212 = scmp.eq.s32.totalorder %s25, 1
      %p213 = por %p211, %p212
      %p214 = scmp.ne.s32.totalorder %s205, %s206
      %p215 = scmp.eq.s32.totalorder %s25, 0
      %p216 = por %p214, %p215
      %p217 = scmp.ne.s32.totalorder %s205, %s206
      %p218 = scmp.eq.s32.totalorder %s26, 1
      %p219 = por %p217, %p218
      %p221 = scmp.ne.s32.totalorder %s206, %s220
      %p222 = scmp.eq.s32.totalorder %s26, 0
      %p223 = por %p221, %p222
      %s225 = sadd.s32 %s224, 1
      %p228 = scmp.eq.s32.totalorder %s20, 1
      %p229 = scmp.ne.s32.totalorder %s224, %s226
      %p230 = scmp.eq.s32.totalorder %s20, 0
      %p231 = por %p229, %p230
      %p232 = scmp.ne.s32.totalorder %s224, %s226
      %p233 = scmp.eq.s32.totalorder %s25, 1
      %p234 = por %p232, %p233
      %p235 = scmp.ne.s32.totalorder %s226, %s227
      %p236 = scmp.eq.s32.totalorder %s25, 0
      %p237 = por %p235, %p236
      %p238 = scmp.ne.s32.totalorder %s226, %s227
      %p239 = scmp.eq.s32.totalorder %s26, 1
      %p240 = por %p238, %p239
      %p242 = scmp.ne.s32.totalorder %s227, %s241
      %p243 = scmp.eq.s32.totalorder %s26, 0
      %p244 = por %p242, %p243
      %s246 = sadd.s32 %s245, 1
      %p249 = scmp.eq.s32.totalorder %s20, 1
      %p250 = scmp.ne.s32.totalorder %s245, %s247
      %p251 = scmp.eq.s32.totalorder %s20, 0
      %p252 = por %p250, %p251
      %p253 = scmp.ne.s32.totalorder %s245, %s247
      %p254 = scmp.eq.s32.totalorder %s25, 1
      %p255 = por %p253, %p254
      %p256 = scmp.ne.s32.totalorder %s247, %s248
      %p257 = scmp.eq.s32.totalorder %s25, 0
      %p258 = por %p256, %p257
      %p259 = scmp.ne.s32.totalorder %s247, %s248
      %p260 = scmp.eq.s32.totalorder %s26, 1
      %p261 = por %p259, %p260
      %p263 = scmp.ne.s32.totalorder %s248, %s262
      %p264 = scmp.eq.s32.totalorder %s26, 0
      %p265 = por %p263, %p264
      %s267 = sadd.s32 %s266, 1
      %p270 = scmp.eq.s32.totalorder %s20, 1
      %p271 = scmp.ne.s32.totalorder %s266, %s268
      %p272 = scmp.eq.s32.totalorder %s20, 0
      %p273 = por %p271, %p272
      %p274 = scmp.ne.s32.totalorder %s266, %s268
      %p275 = scmp.eq.s32.totalorder %s25, 1
      %p276 = por %p274, %p275
      %p277 = scmp.ne.s32.totalorder %s268, %s269
      %p278 = scmp.eq.s32.totalorder %s25, 0
      %p279 = por %p277, %p278
      %p280 = scmp.ne.s32.totalorder %s268, %s269
      %p281 = scmp.eq.s32.totalorder %s26, 1
      %p282 = por %p280, %p281
      %p284 = scmp.ne.s32.totalorder %s269, %s283
      %p285 = scmp.eq.s32.totalorder %s26, 0
      %p286 = por %p284, %p285
      %s288 = sadd.s32 %s287, 1
      %p291 = scmp.eq.s32.totalorder %s20, 1
      %p292 = scmp.ne.s32.totalorder %s287, %s289
      %p293 = scmp.eq.s32.totalorder %s20, 0
      %p294 = por %p292, %p293
      %p295 = scmp.ne.s32.totalorder %s287, %s289
      %p296 = scmp.eq.s32.totalorder %s25, 1
      %p297 = por %p295, %p296
      %p298 = scmp.ne.s32.totalorder %s289, %s290
      %p299 = scmp.eq.s32.totalorder %s25, 0
      %p300 = por %p298, %p299
      %p301 = scmp.ne.s32.totalorder %s289, %s290
      %p302 = scmp.eq.s32.totalorder %s26, 1
      %p303 = por %p301, %p302
      %p305 = scmp.ne.s32.totalorder %s290, %s304
      %p306 = scmp.eq.s32.totalorder %s26, 0
      %p307 = por %p305, %p306
      %s308 = ssub.s32 %s27, %s39
      %s309 = ssub.s32 %s28, %s35
      %s310 = sor.u32 %s308, %s309
      %p311 = scmp.eq.s32.totalorder %s310, 0
      %s313 = sadd.s32 %s312, 1
      %s314 = scalar_select %p311, %s312, %s313
      %p317 = pneg %p311
      %p318 = scmp.eq.s32.totalorder %s20, 1
      %p319 = por %p317, %p318
      %p320 = scmp.ne.s32.totalorder %s312, %s315
      %p321 = scmp.eq.s32.totalorder %s20, 0
      %p322 = por %p320, %p321
      %p323 = scmp.ne.s32.totalorder %s312, %s315
      %p324 = scmp.eq.s32.totalorder %s25, 1
      %p325 = por %p323, %p324
      %p326 = scmp.ne.s32.totalorder %s315, %s316
      %p327 = scmp.eq.s32.totalorder %s25, 0
      %p328 = por %p326, %p327
      %p329 = scmp.ne.s32.totalorder %s315, %s316
      %p330 = scmp.eq.s32.totalorder %s26, 1
      %p331 = por %p329, %p330
      %p333 = scmp.ne.s32.totalorder %s316, %s332
      %p334 = scmp.eq.s32.totalorder %s26, 0
      %p335 = por %p333, %p334
      %p336 = scmp.le.s32.totalorder 1, %s20
      %p337 = scmp.lt.s32.totalorder %s20, 3
      %p338 = pnand %p336, %p337
      %p339 = pneg %p338
      // Predicated region
      $region9: #{tpu_custom_call.1} parent=5 // pred_check
        _
      $region10: #{tpu_custom_call.1} parent=5 // pred_check_branch
        %341 = sbr.rel (%p338) target = $region12
      $region11: #{tpu_custom_call.1} parent=5 // pred_region
        %s342 = ssub.s32 %s20, 1
        // Predicated region
        $region13: #{tpu_custom_call.1} parent=11 // pred_check
          %p343 = pneg %p153
        $region14: #{tpu_custom_call.1} parent=11 // pred_check_branch
          %345 = sbr.rel (%p343) target = $region16
        $region15: #{tpu_custom_call.1} parent=11 // pred_region
          _
        $region16: #{tpu_custom_call.1} parent=11 // pred_fallthru
          _
        // Predicated region
        $region17: #{tpu_custom_call.1} parent=11 // pred_check
          %p346 = pneg %p174
        $region18: #{tpu_custom_call.1} parent=11 // pred_check_branch
          %348 = sbr.rel (%p346) target = $region20
        $region19: #{tpu_custom_call.1} parent=11 // pred_region
          _
        $region20: #{tpu_custom_call.1} parent=11 // pred_fallthru
          _
        // Predicated region
        $region21: #{tpu_custom_call.1} parent=11 // pred_check
          %p349 = pneg %p195
        $region22: #{tpu_custom_call.1} parent=11 // pred_check_branch
          %351 = sbr.rel (%p349) target = $region24
        $region23: #{tpu_custom_call.1} parent=11 // pred_region
          _
        $region24: #{tpu_custom_call.1} parent=11 // pred_fallthru
          _
        // Predicated region
        $region25: #{tpu_custom_call.1} parent=11 // pred_check
          %p352 = pneg %p216
        $region26: #{tpu_custom_call.1} parent=11 // pred_check_branch
          %354 = sbr.rel (%p352) target = $region28
        $region27: #{tpu_custom_call.1} parent=11 // pred_region
          _
        $region28: #{tpu_custom_call.1} parent=11 // pred_fallthru
          _
        // Predicated region
        $region29: #{tpu_custom_call.1} parent=11 // pred_check
          %p355 = pneg %p237
        $region30: #{tpu_custom_call.1} parent=11 // pred_check_branch
          %357 = sbr.rel (%p355) target = $region32
        $region31: #{tpu_custom_call.1} parent=11 // pred_region
          _
        $region32: #{tpu_custom_call.1} parent=11 // pred_fallthru
          _
        // Predicated region
        $region33: #{tpu_custom_call.1} parent=11 // pred_check
          %p358 = pneg %p258
        $region34: #{tpu_custom_call.1} parent=11 // pred_check_branch
          %360 = sbr.rel (%p358) target = $region36
        $region35: #{tpu_custom_call.1} parent=11 // pred_region
          _
        $region36: #{tpu_custom_call.1} parent=11 // pred_fallthru
          _
        // Predicated region
        $region37: #{tpu_custom_call.1} parent=11 // pred_check
          %p361 = pneg %p279
        $region38: #{tpu_custom_call.1} parent=11 // pred_check_branch
          %363 = sbr.rel (%p361) target = $region40
        $region39: #{tpu_custom_call.1} parent=11 // pred_region
          _
        $region40: #{tpu_custom_call.1} parent=11 // pred_fallthru
          _
        // Predicated region
        $region41: #{tpu_custom_call.1} parent=11 // pred_check
          %p364 = pneg %p300
        $region42: #{tpu_custom_call.1} parent=11 // pred_check_branch
          %366 = sbr.rel (%p364) target = $region44
        $region43: #{tpu_custom_call.1} parent=11 // pred_region
          _
        $region44: #{tpu_custom_call.1} parent=11 // pred_fallthru
          _
      $region12: #{tpu_custom_call.1} parent=5 // pred_fallthru
        _
      %p367 = scmp.lt.s32.totalorder %s20, 2
      // Predicated region
      $region45: #{tpu_custom_call.1} parent=5 // pred_check
        %p368 = pneg %p367
      $region46: #{tpu_custom_call.1} parent=5 // pred_check_branch
        %370 = sbr.rel (%p368) target = $region48
      $region47: #{tpu_custom_call.1} parent=5 // pred_region
        // Predicated region
        $region49: #{tpu_custom_call.1} parent=47 // pred_check
          %p371 = pneg %p54
        $region50: #{tpu_custom_call.1} parent=47 // pred_check_branch
          %373 = sbr.rel (%p371) target = $region52
        $region51: #{tpu_custom_call.1} parent=47 // pred_region
          %s374 = smul.u32 8, %s28
          %p375 = scmp.lt.s32.totalorder %s27, 1
          %s376 = scalar_select %p375, %s27, 1
          %p377 = scmp.lt.s32.totalorder %s374, 7
          %s378 = scalar_select %p377, %s374, 7
          %s379 = smul.addr %s376, 8
          %s380 = sadd.s32 %s378, %s379
          %s381 = smul.addr %s380, 4
          %s382 = scalar_lea.vmem %s0, %s381
          %s383 = smul.u32 8, %s28
        $region52: #{tpu_custom_call.1} parent=47 // pred_fallthru
          _
        // Predicated region
        $region53: #{tpu_custom_call.1} parent=47 // pred_check
          %p384 = pneg %p90
        $region54: #{tpu_custom_call.1} parent=47 // pred_check_branch
          %386 = sbr.rel (%p384) target = $region56
        $region55: #{tpu_custom_call.1} parent=47 // pred_region
          %s387 = smul.u32 %s28, 8
          %s388 = ssub.s32 %s387, 1
          %p389 = scmp.gt.s32.totalorder %s388, 0
          %s390 = scalar_select %p389, %s388, 0
          %p391 = scmp.lt.s32.totalorder %s27, 1
          %s392 = scalar_select %p391, %s27, 1
          %p393 = scmp.lt.s32.totalorder %s390, 7
          %s394 = scalar_select %p393, %s390, 7
          %s395 = smul.addr %s392, 8
          %s396 = sadd.s32 %s394, %s395
          %s397 = smul.addr %s396, 4
          %s398 = scalar_lea.vmem %s1, %s397
          %s399 = smul.u32 %s28, 8
          %s400 = ssub.s32 %s399, 1
          %p401 = scmp.gt.s32.totalorder %s400, 0
          %s402 = scalar_select %p401, %s400, 0
        $region56: #{tpu_custom_call.1} parent=47 // pred_fallthru
          _
        // Predicated region
        $region57: #{tpu_custom_call.1} parent=47 // pred_check
          %p403 = pneg %p126
        $region58: #{tpu_custom_call.1} parent=47 // pred_check_branch
          %405 = sbr.rel (%p403) target = $region60
        $region59: #{tpu_custom_call.1} parent=47 // pred_region
          %s406 = smul.u32 %s28, 8
          %s407 = sadd.s32 %s406, 8
          %p408 = scmp.lt.s32.totalorder %s407, 7
          %s409 = scalar_select %p408, %s407, 7
          %p410 = scmp.lt.s32.totalorder %s27, 1
          %s411 = scalar_select %p410, %s27, 1
          %p412 = scmp.lt.s32.totalorder %s409, 7
          %s413 = scalar_select %p412, %s409, 7
          %s414 = smul.addr %s411, 8
          %s415 = sadd.s32 %s413, %s414
          %s416 = smul.addr %s415, 4
          %s417 = scalar_lea.vmem %s2, %s416
          %s418 = smul.u32 %s28, 8
          %s419 = sadd.s32 %s418, 8
          %p420 = scmp.lt.s32.totalorder %s419, 7
          %s421 = scalar_select %p420, %s419, 7
        $region60: #{tpu_custom_call.1} parent=47 // pred_fallthru
          _
      $region48: #{tpu_custom_call.1} parent=5 // pred_fallthru
        _
      %p422 = scmp.le.s32.totalorder 1, %s20
      %p423 = scmp.lt.s32.totalorder %s20, 3
      %p424 = pnand %p422, %p423
      %p425 = pneg %p424
      // Predicated region
      $region61: #{tpu_custom_call.1} parent=5 // pred_check
        _
      $region62: #{tpu_custom_call.1} parent=5 // pred_check_branch
        %427 = sbr.rel (%p424) target = $region64
      $region63: #{tpu_custom_call.1} parent=5 // pred_region
        %s428 = ssub.s32 %s20, 1
        %s429 = smul.u32 8, %s30
        %p430 = scmp.lt.s32.totalorder %s29, 1
        %s431 = scalar_select %p430, %s29, 1
        %p432 = scmp.lt.s32.totalorder %s429, 7
        %s433 = scalar_select %p432, %s429, 7
        %s434 = smul.addr %s431, 8
        %s435 = sadd.s32 %s433, %s434
        %s436 = smul.addr %s435, 4
        %s437 = scalar_lea.vmem %s0, %s436
        %p438 = pneg %p60
        %p439 = pneg %p57
        %s440 = smul.u32 %s30, 8
        %s441 = ssub.s32 %s440, 1
        %p442 = scmp.gt.s32.totalorder %s441, 0
        %s443 = scalar_select %p442, %s441, 0
        %p444 = scmp.lt.s32.totalorder %s29, 1
        %s445 = scalar_select %p444, %s29, 1
        %p446 = scmp.lt.s32.totalorder %s443, 7
        %s447 = scalar_select %p446, %s443, 7
        %s448 = smul.addr %s445, 8
        %s449 = sadd.s32 %s447, %s448
        %s450 = smul.addr %s449, 4
        %s451 = scalar_lea.vmem %s1, %s450
        %p452 = pneg %p96
        %p453 = pneg %p93
        %s454 = smul.u32 %s30, 8
        %s455 = sadd.s32 %s454, 8
        %p456 = scmp.lt.s32.totalorder %s455, 7
        %s457 = scalar_select %p456, %s455, 7
        %p458 = scmp.lt.s32.totalorder %s29, 1
        %s459 = scalar_select %p458, %s29, 1
        %p460 = scmp.lt.s32.totalorder %s457, 7
        %s461 = scalar_select %p460, %s457, 7
        %s462 = smul.addr %s459, 8
        %s463 = sadd.s32 %s461, %s462
        %s464 = smul.addr %s463, 4
        %s465 = scalar_lea.vmem %s2, %s464
        %p466 = pneg %p132
        %p467 = pneg %p129
        %p468 = pneg %p153
        %p469 = pneg %p150
        %p470 = pneg %p174
        %p471 = pneg %p171
        %p472 = pneg %p195
        %p473 = pneg %p192
        %p474 = pneg %p216
        %p475 = pneg %p213
        %p476 = pneg %p237
        %p477 = pneg %p234
        %p478 = pneg %p258
        %p479 = pneg %p255
        %p480 = pneg %p279
        %p481 = pneg %p276
        %p482 = pneg %p300
        %p483 = pneg %p297
        %p484 = pneg %p328
        %p485 = pneg %p325
        %s486 = sand.u32 %s315, 1
        %s487 = scalar_lea.sflag [#allocation3], %s486
        %s488 = sand.u32 %s315, 1
        %s489 = smul.addr %s488, 32
        %s490 = scalar_lea.vmem [#allocation2], %s489
        %s491 = smul.u32 8, %s30
        %p492 = scmp.lt.s32.totalorder %s29, 1
        %s493 = scalar_select %p492, %s29, 1
        %p494 = scmp.lt.s32.totalorder %s491, 7
        %s495 = scalar_select %p494, %s491, 7
        %s496 = smul.addr %s493, 8
        %s497 = sadd.s32 %s495, %s496
        %s498 = smul.addr %s497, 4
        %s499 = scalar_lea.vmem %s0, %s498
        %s500 = smul.u32 8, %s30
        %s501 = smul.u32 %s30, 8
        %s502 = ssub.s32 %s501, 1
        %p503 = scmp.gt.s32.totalorder %s502, 0
        %s504 = scalar_select %p503, %s502, 0
        %p505 = scmp.lt.s32.totalorder %s29, 1
        %s506 = scalar_select %p505, %s29, 1
        %p507 = scmp.lt.s32.totalorder %s504, 7
        %s508 = scalar_select %p507, %s504, 7
        %s509 = smul.addr %s506, 8
        %s510 = sadd.s32 %s508, %s509
        %s511 = smul.addr %s510, 4
        %s512 = scalar_lea.vmem %s1, %s511
        %s513 = smul.u32 %s30, 8
        %s514 = ssub.s32 %s513, 1
        %p515 = scmp.gt.s32.totalorder %s514, 0
        %s516 = scalar_select %p515, %s514, 0
        %s517 = smul.u32 %s30, 8
        %s518 = sadd.s32 %s517, 8
        %p519 = scmp.lt.s32.totalorder %s518, 7
        %s520 = scalar_select %p519, %s518, 7
        %p521 = scmp.lt.s32.totalorder %s29, 1
        %s522 = scalar_select %p521, %s29, 1
        %p523 = scmp.lt.s32.totalorder %s520, 7
        %s524 = scalar_select %p523, %s520, 7
        %s525 = smul.addr %s522, 8
        %s526 = sadd.s32 %s524, %s525
        %s527 = smul.addr %s526, 4
        %s528 = scalar_lea.vmem %s2, %s527
        %s529 = smul.u32 %s30, 8
        %s530 = sadd.s32 %s529, 8
        %p531 = scmp.lt.s32.totalorder %s530, 7
        %s532 = scalar_select %p531, %s530, 7
        %s533 = smul.u32 8, %s30
        %p535 = scmp.gt.s32.totalorder %s30, 0
        %s536 = scalar_select %p535, 1, 0
        %s537 = scvt.s32.f32 %s536
        %p538 = scmp.lt.s32.totalorder %s30, 0
        %s539 = scalar_select %p538, 1, 0
        %s540 = scvt.s32.f32 %s539
        %v541 = vld [vmem:[%s499] sm:$0xf]
        %v542 = vld [vmem:[%s499 + $0x4] sm:$0xf]
        %v543 = vld [vmem:[%s499 + $0x8] sm:$0xf]
        %v544 = vld [vmem:[%s499 + $0xc] sm:$0xf]
        %v545 = vld [vmem:[%s499 + $0x10] sm:$0xf]
        %v546 = vld [vmem:[%s499 + $0x14] sm:$0xf]
        %v547 = vld [vmem:[%s499 + $0x18] sm:$0xf]
        %v548 = vld [vmem:[%s499 + $0x1c] sm:$0xf]
        %v549 = vld [vmem:[%s3] sm:$0x3]
        %v550 = vld [vmem:[%s4] sm:$0x1]
        %v552 = vlaneseq
        %v553 = vshrl.u32 %v552, 7
        %v554 = vsub.s32 0, %v553
        %v555 = vrot.slane %v550, %v554
        %v565 = vunpack.c.l.b16 %v541
        %v566 = vunpack.c.l.b16 %v542
        %v567 = vunpack.c.l.b16 %v543
        %v568 = vunpack.c.l.b16 %v544
        %v569 = vunpack.c.l.b16 %v545
        %v570 = vunpack.c.l.b16 %v546
        %v571 = vunpack.c.l.b16 %v547
        %v572 = vunpack.c.l.b16 %v548
        %v573 = vpack.c.b16 %v566, %v565
        %v574 = vpack.c.b16 %v568, %v567
        %v575 = vpack.c.b16 %v570, %v569
        %v576 = vpack.c.b16 %v572, %v571
        %vm577 = vcmask 31744
        %v579 = vsel %vm577, %v573, 0
        %v582 = vsel %vm577, %v574, 0
        %v585 = vsel %vm577, %v575, 0
        %v588 = vsel %vm577, %v576, 0
        %vm590 = vcmask 1041408
        %v592 = vsel %vm590, %v549, 0
        %594 = vmatprep.subr.bf16.mxu0 0
        %595 = vmatpush1.bf16.msra.mxu0 0
        %596 = vmatprep.subr.bf16.mxu0 0
        %597 = vmatpush1.bf16.msra.mxu0 0
        %598 = vmatprep.subr.bf16.mxu0 0
        %599 = vmatpush1.bf16.msra.mxu0 0
        %600 = vmatprep.subr.bf16.mxu0 0
        %601 = vmatpush1.bf16.msra.mxu0 0
        %602 = vmatprep.subr.bf16.mxu0 0
        %603 = vmatpush1.bf16.msra.mxu0 0
        %604 = vmatprep.subr.bf16.mxu0 0
        %605 = vmatpush1.bf16.msra.mxu0 0
        %606 = vmatprep.subr.bf16.mxu0 0
        %607 = vmatpush1.bf16.msra.mxu0 0
        %608 = vmatprep.subr.bf16.mxu0 0
        %609 = vmatpush1.bf16.msra.mxu0 %v592
        %610 = vmatprep.subr.bf16.mxu0 0
        %611 = vmatpush2.bf16.msra.mxu0 0
        %612 = vmatprep.subr.bf16.mxu0 0
        %613 = vmatpush2.bf16.msra.mxu0 0
        %614 = vmatprep.subr.bf16.mxu0 0
        %615 = vmatpush2.bf16.msra.mxu0 0
        %616 = vmatprep.subr.bf16.mxu0 0
        %617 = vmatpush2.bf16.msra.mxu0 0
        %618 = vmatprep.subr.bf16.mxu0 0
        %619 = vmatpush2.bf16.msra.mxu0 0
        %620 = vmatprep.subr.bf16.mxu0 0
        %621 = vmatpush2.bf16.msra.mxu0 0
        %622 = vmatprep.subr.bf16.mxu0 0
        %623 = vmatpush2.bf16.msra.mxu0 0
        %624 = vmatprep.subr.bf16.mxu0 0
        %625 = vmatpush2.bf16.msra.mxu0 0
        %626 = vmatprep.mubr.bf16.mxu0 0
        %627 = vmatmul.mubr.bf16.gmra.mxu0 %v579
        %v628 = vpop.f32.mrf.mxu0
        %v629 = vadd.f32 %v555, %v628
        %v630 = vpop.f32.mrf.mxu0
        %v631 = vpop.f32.mrf.mxu0
        %v632 = vadd.f32 %v555, %v631
        %v633 = vpop.f32.mrf.mxu0
        %634 = vmatprep.mubr.bf16.mxu0 0
        %635 = vmatmul.mubr.bf16.gmra.mxu0 %v582
        %v636 = vpop.f32.mrf.mxu0
        %v637 = vadd.f32 %v555, %v636
        %v638 = vpop.f32.mrf.mxu0
        %v639 = vpop.f32.mrf.mxu0
        %v640 = vadd.f32 %v555, %v639
        %v641 = vpop.f32.mrf.mxu0
        %642 = vmatprep.mubr.bf16.mxu0 0
        %643 = vmatmul.mubr.bf16.gmra.mxu0 %v585
        %v644 = vpop.f32.mrf.mxu0
        %v645 = vadd.f32 %v555, %v644
        %v646 = vpop.f32.mrf.mxu0
        %v647 = vpop.f32.mrf.mxu0
        %v648 = vadd.f32 %v555, %v647
        %v649 = vpop.f32.mrf.mxu0
        %650 = vmatprep.mubr.bf16.mxu0 0
        %651 = vmatmul.mubr.bf16.gmra.mxu0 %v588
        %v652 = vpop.f32.mrf.mxu0
        %v653 = vadd.f32 %v555, %v652
        %v654 = vpop.f32.mrf.mxu0
        %v655 = vpop.f32.mrf.mxu0
        %v656 = vadd.f32 %v555, %v655
        %v657 = vpop.f32.mrf.mxu0
        %658 = vdwg.mxu0
        %v659 = vmax.f32 %v629, 0.0
        %v660 = vmax.f32 %v632, 0.0
        %v661 = vmax.f32 %v637, 0.0
        %v662 = vmax.f32 %v640, 0.0
        %v663 = vmax.f32 %v645, 0.0
        %v664 = vmax.f32 %v648, 0.0
        %v665 = vmax.f32 %v653, 0.0
        %v666 = vmax.f32 %v656, 0.0
        %v667 = vpack.c.bf16 %v660, %v659
        %v668 = vpack.c.bf16 %v662, %v661
        %v669 = vpack.c.bf16 %v664, %v663
        %v670 = vpack.c.bf16 %v666, %v665
        %v675 = vunpack.c.l.b16 %v667
        %v676 = vunpack.c.h.b16 %v667
        %v677 = vunpack.c.l.b16 %v668
        %v678 = vunpack.c.h.b16 %v668
        %v679 = vunpack.c.l.b16 %v669
        %v680 = vunpack.c.h.b16 %v669
        %v681 = vunpack.c.l.b16 %v670
        %v682 = vunpack.c.h.b16 %v670
        %v683 = vpack.c.b16 %v675, %v675
        %v684 = vpack.c.b16 %v676, %v676
        %v685 = vpack.c.b16 %v677, %v677
        %v686 = vpack.c.b16 %v678, %v678
        %v687 = vpack.c.b16 %v679, %v679
        %v688 = vpack.c.b16 %v680, %v680
        %v689 = vpack.c.b16 %v681, %v681
        %v690 = vpack.c.b16 %v682, %v682
        %v691 = vld [vmem:[%s512] sm:$0xf]
        %v693 = vsel %vm577, %v691, 0
        %695 = vmatprep.subr.bf16.mxu0 0
        %696 = vmatpush1.bf16.msra.mxu0 0
        %697 = vmatprep.subr.bf16.mxu0 0
        %698 = vmatpush1.bf16.msra.mxu0 0
        %699 = vmatprep.subr.bf16.mxu0 0
        %700 = vmatpush1.bf16.msra.mxu0 0
        %701 = vmatprep.subr.bf16.mxu0 0
        %702 = vmatpush1.bf16.msra.mxu0 0
        %703 = vmatprep.subr.bf16.mxu0 0
        %704 = vmatpush1.bf16.msra.mxu0 0
        %705 = vmatprep.subr.bf16.mxu0 0
        %706 = vmatpush1.bf16.msra.mxu0 0
        %707 = vmatprep.subr.bf16.mxu0 0
        %708 = vmatpush1.bf16.msra.mxu0 0
        %709 = vmatprep.subr.bf16.mxu0 0
        %710 = vmatpush1.bf16.msra.mxu0 %v592
        %711 = vmatprep.subr.bf16.mxu0 0
        %712 = vmatpush2.bf16.msra.mxu0 0
        %713 = vmatprep.subr.bf16.mxu0 0
        %714 = vmatpush2.bf16.msra.mxu0 0
        %715 = vmatprep.subr.bf16.mxu0 0
        %716 = vmatpush2.bf16.msra.mxu0 0
        %717 = vmatprep.subr.bf16.mxu0 0
        %718 = vmatpush2.bf16.msra.mxu0 0
        %719 = vmatprep.subr.bf16.mxu0 0
        %720 = vmatpush2.bf16.msra.mxu0 0
        %721 = vmatprep.subr.bf16.mxu0 0
        %722 = vmatpush2.bf16.msra.mxu0 0
        %723 = vmatprep.subr.bf16.mxu0 0
        %724 = vmatpush2.bf16.msra.mxu0 0
        %725 = vmatprep.subr.bf16.mxu0 0
        %726 = vmatpush2.bf16.msra.mxu0 0
        %727 = vmatprep.mubr.bf16.mxu0 0
        %728 = vmatmul.mubr.bf16.gmra.mxu0 %v693
        %v729 = vpop.f32.mrf.mxu0
        %v730 = vadd.f32 %v555, %v729
        %v731 = vpop.f32.mrf.mxu0
        %v732 = vpop.f32.mrf.mxu0
        %v733 = vpop.f32.mrf.mxu0
        %734 = vdwg.mxu0
        %v735 = vmax.f32 %v730, 0.0
        %v736 = vstv %s537
        %v737 = vmul.f32 %v735, %v736
        %v738 = vpack.c.bf16 %v737, %v737
        %v739 = vld [vmem:[%s528] sm:$0xf]
        %v741 = vsel %vm577, %v739, 0
        %743 = vmatprep.subr.bf16.mxu0 0
        %744 = vmatpush1.bf16.msra.mxu0 0
        %745 = vmatprep.subr.bf16.mxu0 0
        %746 = vmatpush1.bf16.msra.mxu0 0
        %747 = vmatprep.subr.bf16.mxu0 0
        %748 = vmatpush1.bf16.msra.mxu0 0
        %749 = vmatprep.subr.bf16.mxu0 0
        %750 = vmatpush1.bf16.msra.mxu0 0
        %751 = vmatprep.subr.bf16.mxu0 0
        %752 = vmatpush1.bf16.msra.mxu0 0
        %753 = vmatprep.subr.bf16.mxu0 0
        %754 = vmatpush1.bf16.msra.mxu0 0
        %755 = vmatprep.subr.bf16.mxu0 0
        %756 = vmatpush1.bf16.msra.mxu0 0
        %757 = vmatprep.subr.bf16.mxu0 0
        %758 = vmatpush1.bf16.msra.mxu0 %v592
        %759 = vmatprep.subr.bf16.mxu0 0
        %760 = vmatpush2.bf16.msra.mxu0 0
        %761 = vmatprep.subr.bf16.mxu0 0
        %762 = vmatpush2.bf16.msra.mxu0 0
        %763 = vmatprep.subr.bf16.mxu0 0
        %764 = vmatpush2.bf16.msra.mxu0 0
        %765 = vmatprep.subr.bf16.mxu0 0
        %766 = vmatpush2.bf16.msra.mxu0 0
        %767 = vmatprep.subr.bf16.mxu0 0
        %768 = vmatpush2.bf16.msra.mxu0 0
        %769 = vmatprep.subr.bf16.mxu0 0
        %770 = vmatpush2.bf16.msra.mxu0 0
        %771 = vmatprep.subr.bf16.mxu0 0
        %772 = vmatpush2.bf16.msra.mxu0 0
        %773 = vmatprep.subr.bf16.mxu0 0
        %774 = vmatpush2.bf16.msra.mxu0 0
        %775 = vmatprep.mubr.bf16.mxu0 0
        %776 = vmatmul.mubr.bf16.gmra.mxu0 %v741
        %v777 = vpop.f32.mrf.mxu0
        %v778 = vadd.f32 %v555, %v777
        %v779 = vpop.f32.mrf.mxu0
        %v780 = vpop.f32.mrf.mxu0
        %v781 = vpop.f32.mrf.mxu0
        %782 = vdwg.mxu0
        %v783 = vmax.f32 %v778, 0.0
        %v784 = vstv %s540
        %v785 = vmul.f32 %v783, %v784
        %v786 = vpack.c.bf16 %v785, %v785
        %v788 = vshrl.u32 %v738, 16
        %v790 = vrot.slane %v788, 7
        %v791 = vshll.u32 %v738, 16
        %v793 = vor.u32 %v790, %v791
        %v795 = vshrl.u32 %v683, 16
        %v797 = vrot.slane %v795, 7
        %v798 = vshll.u32 %v683, 16
        %v800 = vor.u32 %v797, %v798
        %v802 = vshrl.u32 %v684, 16
        %v804 = vrot.slane %v802, 7
        %v805 = vshll.u32 %v684, 16
        %v807 = vor.u32 %v804, %v805
        %v809 = vshrl.u32 %v685, 16
        %v811 = vrot.slane %v809, 7
        %v812 = vshll.u32 %v685, 16
        %v814 = vor.u32 %v811, %v812
        %v816 = vshrl.u32 %v686, 16
        %v818 = vrot.slane %v816, 7
        %v819 = vshll.u32 %v686, 16
        %v821 = vor.u32 %v818, %v819
        %v823 = vshrl.u32 %v687, 16
        %v825 = vrot.slane %v823, 7
        %v826 = vshll.u32 %v687, 16
        %v828 = vor.u32 %v825, %v826
        %v830 = vshrl.u32 %v688, 16
        %v832 = vrot.slane %v830, 7
        %v833 = vshll.u32 %v688, 16
        %v835 = vor.u32 %v832, %v833
        %v837 = vshrl.u32 %v689, 16
        %v839 = vrot.slane %v837, 7
        %v840 = vshll.u32 %v689, 16
        %v842 = vor.u32 %v839, %v840
        %v844 = vshrl.u32 %v690, 16
        %v846 = vrot.slane %v844, 7
        %v847 = vshll.u32 %v690, 16
        %v849 = vor.u32 %v846, %v847
        %v851 = vshrl.u32 %v786, 16
        %v853 = vrot.slane %v851, 7
        %v854 = vshll.u32 %v786, 16
        %v856 = vor.u32 %v853, %v854
        %vm867 = vcmask 1040384
        %vm868 = vsmask.f32 256
        %vm869 = vmand %vm867, %vm868
        %v870 = vsel %vm869, 0, %v793
        %v871 = vsel %vm869, 0, %v800
        %v872 = vsel %vm869, 0, %v807
        %v873 = vsel %vm869, 0, %v814
        %v874 = vsel %vm869, 0, %v821
        %v875 = vsel %vm869, 0, %v828
        %v876 = vsel %vm869, 0, %v835
        %v877 = vsel %vm869, 0, %v842
        %v878 = vsel %vm869, 0, %v849
        %v879 = vsel %vm869, 0, %v856
        %vm880 = vcmask 1044480
        %vm881 = vsmask.f32 4352
        %vm882 = vmand %vm880, %vm881
        %v883 = vsel %vm882, %v870, 0
        %v884 = vsel %vm882, %v871, 0
        %v885 = vsel %vm882, %v872, 0
        %v886 = vsel %vm882, %v873, 0
        %v887 = vsel %vm882, %v874, 0
        %v888 = vsel %vm882, %v875, 0
        %v889 = vsel %vm882, %v876, 0
        %v890 = vsel %vm882, %v877, 0
        %v891 = vsel %vm882, %v878, 0
        %v892 = vsel %vm882, %v879, 0
        %v894 = vshrl.u32 %v883, 16
        %v896 = vshll.u32 %v883, 16
        %v898 = vrot.slane %v896, 1
        %v899 = vor.u32 %v894, %v898
        %v901 = vshrl.u32 %v884, 16
        %v903 = vshll.u32 %v884, 16
        %v905 = vrot.slane %v903, 1
        %v906 = vor.u32 %v901, %v905
        %v908 = vshrl.u32 %v885, 16
        %v910 = vshll.u32 %v885, 16
        %v912 = vrot.slane %v910, 1
        %v913 = vor.u32 %v908, %v912
        %v915 = vshrl.u32 %v886, 16
        %v917 = vshll.u32 %v886, 16
        %v919 = vrot.slane %v917, 1
        %v920 = vor.u32 %v915, %v919
        %v922 = vshrl.u32 %v887, 16
        %v924 = vshll.u32 %v887, 16
        %v926 = vrot.slane %v924, 1
        %v927 = vor.u32 %v922, %v926
        %v929 = vshrl.u32 %v888, 16
        %v931 = vshll.u32 %v888, 16
        %v933 = vrot.slane %v931, 1
        %v934 = vor.u32 %v929, %v933
        %v936 = vshrl.u32 %v889, 16
        %v938 = vshll.u32 %v889, 16
        %v940 = vrot.slane %v938, 1
        %v941 = vor.u32 %v936, %v940
        %v943 = vshrl.u32 %v890, 16
        %v945 = vshll.u32 %v890, 16
        %v947 = vrot.slane %v945, 1
        %v948 = vor.u32 %v943, %v947
        %949 = vrot.lane.b32.xlu0 %v899, 8
        %v950 = vpop.permute.xlu0 %949
        %951 = vrot.lane.b32.xlu0 %v906, 8
        %v952 = vpop.permute.xlu0 %951
        %953 = vrot.lane.b32.xlu0 %v913, 8
        %v954 = vpop.permute.xlu0 %953
        %955 = vrot.lane.b32.xlu0 %v920, 8
        %v956 = vpop.permute.xlu0 %955
        %957 = vrot.lane.b32.xlu0 %v927, 8
        %v958 = vpop.permute.xlu0 %957
        %959 = vrot.lane.b32.xlu0 %v934, 8
        %v960 = vpop.permute.xlu0 %959
        %961 = vrot.lane.b32.xlu0 %v941, 8
        %v962 = vpop.permute.xlu0 %961
        %963 = vrot.lane.b32.xlu0 %v948, 8
        %v964 = vpop.permute.xlu0 %963
        %v973 = vrot.slane %v883, 1
        %v974 = vrot.slane %v884, 1
        %v975 = vrot.slane %v885, 1
        %v976 = vrot.slane %v886, 1
        %v977 = vrot.slane %v887, 1
        %v978 = vrot.slane %v888, 1
        %v979 = vrot.slane %v889, 1
        %v980 = vrot.slane %v890, 1
        %981 = vrot.lane.b32.xlu0 %v973, 16
        %v982 = vpop.permute.xlu0 %981
        %983 = vrot.lane.b32.xlu0 %v974, 16
        %v984 = vpop.permute.xlu0 %983
        %985 = vrot.lane.b32.xlu0 %v975, 16
        %v986 = vpop.permute.xlu0 %985
        %987 = vrot.lane.b32.xlu0 %v976, 16
        %v988 = vpop.permute.xlu0 %987
        %989 = vrot.lane.b32.xlu0 %v977, 16
        %v990 = vpop.permute.xlu0 %989
        %991 = vrot.lane.b32.xlu0 %v978, 16
        %v992 = vpop.permute.xlu0 %991
        %993 = vrot.lane.b32.xlu0 %v979, 16
        %v994 = vpop.permute.xlu0 %993
        %995 = vrot.lane.b32.xlu0 %v980, 16
        %v996 = vpop.permute.xlu0 %995
        %vm997 = vcmask 64512
        %v999 = vsel %vm997, %v883, %v950
        %v1001 = vsel %vm997, %v884, %v952
        %v1003 = vsel %vm997, %v885, %v954
        %v1005 = vsel %vm997, %v886, %v956
        %v1007 = vsel %vm997, %v887, %v958
        %v1009 = vsel %vm997, %v888, %v960
        %v1011 = vsel %vm997, %v889, %v962
        %v1013 = vsel %vm997, %v890, %v964
        %vm1014 = vcmask 130048
        %v1016 = vsel %vm1014, %v999, %v982
        %v1018 = vsel %vm1014, %v1001, %v984
        %v1020 = vsel %vm1014, %v1003, %v986
        %v1022 = vsel %vm1014, %v1005, %v988
        %v1024 = vsel %vm1014, %v1007, %v990
        %v1026 = vsel %vm1014, %v1009, %v992
        %v1028 = vsel %vm1014, %v1011, %v994
        %v1030 = vsel %vm1014, %v1013, %v996
        %v1031 = vld [vmem:[%s5] sm:$0xf]
        %v1032 = vld [vmem:[%s5 + $0x4] sm:$0xf]
        %v1033 = vld [vmem:[%s5 + $0x8] sm:$0xf]
        %v1035 = vshrl.u32 %v891, 16
        %v1037 = vshll.u32 %v891, 16
        %v1039 = vrot.slane %v1037, 1
        %v1040 = vor.u32 %v1035, %v1039
        %1041 = vrot.lane.b32.xlu0 %v1040, 8
        %v1042 = vpop.permute.xlu0 %1041
        %v1044 = vrot.slane %v891, 1
        %1045 = vrot.lane.b32.xlu0 %v1044, 16
        %v1046 = vpop.permute.xlu0 %1045
        %v1048 = vsel %vm997, %v891, %v1042
        %v1050 = vsel %vm1014, %v1048, %v1046
        %s1051 = scalar_lea.vmem %s5, 12
        %v1052 = vld [vmem:[%s1051] sm:$0xf]
        %v1053 = vld [vmem:[%s1051 + $0x4] sm:$0xf]
        %v1054 = vld [vmem:[%s1051 + $0x8] sm:$0xf]
        %v1063 = vunpack.c.l.b16 %v1018
        %v1064 = vunpack.c.l.b16 %v1020
        %v1065 = vunpack.c.l.b16 %v1022
        %v1066 = vunpack.c.l.b16 %v1024
        %v1067 = vunpack.c.l.b16 %v1026
        %v1068 = vunpack.c.l.b16 %v1028
        %v1069 = vunpack.c.l.b16 %v1030
        %v1070 = vunpack.c.l.b16 %v1050
        %v1071 = vpack.c.b16 %v1064, %v1063
        %v1072 = vpack.c.b16 %v1066, %v1065
        %v1073 = vpack.c.b16 %v1068, %v1067
        %v1074 = vpack.c.b16 %v1070, %v1069
        %v1078 = vunpack.c.l.b16 %v1052
        %v1079 = vunpack.c.l.b16 %v1053
        %v1080 = vunpack.c.l.b16 %v1054
        %v1081 = vpack.c.b16 %v1079, %v1078
        %v1082 = vpack.c.b16 %v1080, %v1080
        %vm1084 = vcmask 195584
        %v1086 = vsel %vm1084, %v1071, 0
        %v1089 = vsel %vm1084, %v1072, 0
        %v1092 = vsel %vm1084, %v1073, 0
        %v1095 = vsel %vm1084, %v1074, 0
        %vm1097 = vcmask 1043456
        %v1099 = vsel %vm1097, %v1082, 0
        %1101 = vmatprep.subr.bf16.mxu0 0
        %1102 = vmatpush1.bf16.msra.mxu0 0
        %1103 = vmatprep.subr.bf16.mxu0 0
        %1104 = vmatpush1.bf16.msra.mxu0 0
        %1105 = vmatprep.subr.bf16.mxu0 0
        %1106 = vmatpush1.bf16.msra.mxu0 0
        %1107 = vmatprep.subr.bf16.mxu0 0
        %1108 = vmatpush1.bf16.msra.mxu0 0
        %1109 = vmatprep.subr.bf16.mxu0 0
        %1110 = vmatpush1.bf16.msra.mxu0 0
        %1111 = vmatprep.subr.bf16.mxu0 0
        %1112 = vmatpush1.bf16.msra.mxu0 0
        %1113 = vmatprep.subr.bf16.mxu0 0
        %1114 = vmatpush1.bf16.msra.mxu0 %v1099
        %1115 = vmatprep.subr.bf16.mxu0 0
        %1116 = vmatpush1.bf16.msra.mxu0 %v1081
        %1117 = vmatprep.subr.bf16.mxu0 0
        %1118 = vmatpush2.bf16.msra.mxu0 0
        %1119 = vmatprep.subr.bf16.mxu0 0
        %1120 = vmatpush2.bf16.msra.mxu0 0
        %1121 = vmatprep.subr.bf16.mxu0 0
        %1122 = vmatpush2.bf16.msra.mxu0 0
        %1123 = vmatprep.subr.bf16.mxu0 0
        %1124 = vmatpush2.bf16.msra.mxu0 0
        %1125 = vmatprep.subr.bf16.mxu0 0
        %1126 = vmatpush2.bf16.msra.mxu0 0
        %1127 = vmatprep.subr.bf16.mxu0 0
        %1128 = vmatpush2.bf16.msra.mxu0 0
        %1129 = vmatprep.subr.bf16.mxu0 0
        %1130 = vmatpush2.bf16.msra.mxu0 0
        %1131 = vmatprep.subr.bf16.mxu0 0
        %1132 = vmatpush2.bf16.msra.mxu0 0
        %1133 = vmatprep.mubr.bf16.mxu0 0
        %1134 = vmatmul.mubr.bf16.gmra.mxu0 %v1086
        %v1135 = vpop.f32.mrf.mxu0
        %v1136 = vadd.f32 0.0, %v1135
        %v1137 = vpop.f32.mrf.mxu0
        %v1138 = vpop.f32.mrf.mxu0
        %v1139 = vadd.f32 0.0, %v1138
        %v1140 = vpop.f32.mrf.mxu0
        %1141 = vmatprep.mubr.bf16.mxu0 0
        %1142 = vmatmul.mubr.bf16.gmra.mxu0 %v1089
        %v1143 = vpop.f32.mrf.mxu0
        %v1144 = vadd.f32 0.0, %v1143
        %v1145 = vpop.f32.mrf.mxu0
        %v1146 = vpop.f32.mrf.mxu0
        %v1147 = vadd.f32 0.0, %v1146
        %v1148 = vpop.f32.mrf.mxu0
        %1149 = vmatprep.mubr.bf16.mxu0 0
        %1150 = vmatmul.mubr.bf16.gmra.mxu0 %v1092
        %v1151 = vpop.f32.mrf.mxu0
        %v1152 = vadd.f32 0.0, %v1151
        %v1153 = vpop.f32.mrf.mxu0
        %v1154 = vpop.f32.mrf.mxu0
        %v1155 = vadd.f32 0.0, %v1154
        %v1156 = vpop.f32.mrf.mxu0
        %1157 = vmatprep.mubr.bf16.mxu0 0
        %1158 = vmatmul.mubr.bf16.gmra.mxu0 %v1095
        %v1159 = vpop.f32.mrf.mxu0
        %v1160 = vadd.f32 0.0, %v1159
        %v1161 = vpop.f32.mrf.mxu0
        %v1162 = vpop.f32.mrf.mxu0
        %v1163 = vadd.f32 0.0, %v1162
        %v1164 = vpop.f32.mrf.mxu0
        %1165 = vdwg.mxu0
        %v1167 = vunpack.c.l.b16 %v1016
        %v1168 = vpack.c.b16 %v1063, %v1167
        %v1169 = vpack.c.b16 %v1065, %v1064
        %v1170 = vpack.c.b16 %v1067, %v1066
        %v1171 = vpack.c.b16 %v1069, %v1068
        %v1175 = vunpack.c.l.b16 %v1031
        %v1176 = vunpack.c.l.b16 %v1032
        %v1177 = vunpack.c.l.b16 %v1033
        %v1178 = vpack.c.b16 %v1176, %v1175
        %v1179 = vpack.c.b16 %v1177, %v1177
        %v1182 = vsel %vm1084, %v1168, 0
        %v1185 = vsel %vm1084, %v1169, 0
        %v1188 = vsel %vm1084, %v1170, 0
        %v1191 = vsel %vm1084, %v1171, 0
        %v1194 = vsel %vm1097, %v1179, 0
        %1196 = vmatprep.subr.bf16.mxu0 0
        %1197 = vmatpush1.bf16.msra.mxu0 0
        %1198 = vmatprep.subr.bf16.mxu0 0
        %1199 = vmatpush1.bf16.msra.mxu0 0
        %1200 = vmatprep.subr.bf16.mxu0 0
        %1201 = vmatpush1.bf16.msra.mxu0 0
        %1202 = vmatprep.subr.bf16.mxu0 0
        %1203 = vmatpush1.bf16.msra.mxu0 0
        %1204 = vmatprep.subr.bf16.mxu0 0
        %1205 = vmatpush1.bf16.msra.mxu0 0
        %1206 = vmatprep.subr.bf16.mxu0 0
        %1207 = vmatpush1.bf16.msra.mxu0 0
        %1208 = vmatprep.subr.bf16.mxu0 0
        %1209 = vmatpush1.bf16.msra.mxu0 %v1194
        %1210 = vmatprep.subr.bf16.mxu0 0
        %1211 = vmatpush1.bf16.msra.mxu0 %v1178
        %1212 = vmatprep.subr.bf16.mxu0 0
        %1213 = vmatpush2.bf16.msra.mxu0 0
        %1214 = vmatprep.subr.bf16.mxu0 0
        %1215 = vmatpush2.bf16.msra.mxu0 0
        %1216 = vmatprep.subr.bf16.mxu0 0
        %1217 = vmatpush2.bf16.msra.mxu0 0
        %1218 = vmatprep.subr.bf16.mxu0 0
        %1219 = vmatpush2.bf16.msra.mxu0 0
        %1220 = vmatprep.subr.bf16.mxu0 0
        %1221 = vmatpush2.bf16.msra.mxu0 0
        %1222 = vmatprep.subr.bf16.mxu0 0
        %1223 = vmatpush2.bf16.msra.mxu0 0
        %1224 = vmatprep.subr.bf16.mxu0 0
        %1225 = vmatpush2.bf16.msra.mxu0 0
        %1226 = vmatprep.subr.bf16.mxu0 0
        %1227 = vmatpush2.bf16.msra.mxu0 0
        %1228 = vmatprep.mubr.bf16.mxu0 0
        %1229 = vmatmul.mubr.bf16.gmra.mxu0 %v1182
        %v1230 = vpop.f32.mrf.mxu0
        %v1231 = vadd.f32 %v1136, %v1230
        %v1232 = vpop.f32.mrf.mxu0
        %v1233 = vpop.f32.mrf.mxu0
        %v1234 = vadd.f32 %v1139, %v1233
        %v1235 = vpop.f32.mrf.mxu0
        %1236 = vmatprep.mubr.bf16.mxu0 0
        %1237 = vmatmul.mubr.bf16.gmra.mxu0 %v1185
        %v1238 = vpop.f32.mrf.mxu0
        %v1239 = vadd.f32 %v1144, %v1238
        %v1240 = vpop.f32.mrf.mxu0
        %v1241 = vpop.f32.mrf.mxu0
        %v1242 = vadd.f32 %v1147, %v1241
        %v1243 = vpop.f32.mrf.mxu0
        %1244 = vmatprep.mubr.bf16.mxu0 0
        %1245 = vmatmul.mubr.bf16.gmra.mxu0 %v1188
        %v1246 = vpop.f32.mrf.mxu0
        %v1247 = vadd.f32 %v1152, %v1246
        %v1248 = vpop.f32.mrf.mxu0
        %v1249 = vpop.f32.mrf.mxu0
        %v1250 = vadd.f32 %v1155, %v1249
        %v1251 = vpop.f32.mrf.mxu0
        %1252 = vmatprep.mubr.bf16.mxu0 0
        %1253 = vmatmul.mubr.bf16.gmra.mxu0 %v1191
        %v1254 = vpop.f32.mrf.mxu0
        %v1255 = vadd.f32 %v1160, %v1254
        %v1256 = vpop.f32.mrf.mxu0
        %v1257 = vpop.f32.mrf.mxu0
        %v1258 = vadd.f32 %v1163, %v1257
        %v1259 = vpop.f32.mrf.mxu0
        %1260 = vdwg.mxu0
        %v1262 = vshrl.u32 %v892, 16
        %v1264 = vshll.u32 %v892, 16
        %v1266 = vrot.slane %v1264, 1
        %v1267 = vor.u32 %v1262, %v1266
        %1268 = vrot.lane.b32.xlu0 %v1267, 8
        %v1269 = vpop.permute.xlu0 %1268
        %v1271 = vrot.slane %v892, 1
        %1272 = vrot.lane.b32.xlu0 %v1271, 16
        %v1273 = vpop.permute.xlu0 %1272
        %v1275 = vsel %vm997, %v892, %v1269
        %v1277 = vsel %vm1014, %v1275, %v1273
        %s1278 = scalar_lea.vmem %s5, 24
        %v1279 = vld [vmem:[%s1278] sm:$0xf]
        %v1280 = vld [vmem:[%s1278 + $0x4] sm:$0xf]
        %v1281 = vld [vmem:[%s1278 + $0x8] sm:$0xf]
        %v1283 = vunpack.c.l.b16 %v1277
        %v1284 = vpack.c.b16 %v1283, %v1070
        %v1288 = vunpack.c.l.b16 %v1279
        %v1289 = vunpack.c.l.b16 %v1280
        %v1290 = vunpack.c.l.b16 %v1281
        %v1291 = vpack.c.b16 %v1289, %v1288
        %v1292 = vpack.c.b16 %v1290, %v1290
        %v1295 = vsel %vm1084, %v1284, 0
        %v1298 = vsel %vm1097, %v1292, 0
        %1300 = vmatprep.subr.bf16.mxu0 0
        %1301 = vmatpush1.bf16.msra.mxu0 0
        %1302 = vmatprep.subr.bf16.mxu0 0
        %1303 = vmatpush1.bf16.msra.mxu0 0
        %1304 = vmatprep.subr.bf16.mxu0 0
        %1305 = vmatpush1.bf16.msra.mxu0 0
        %1306 = vmatprep.subr.bf16.mxu0 0
        %1307 = vmatpush1.bf16.msra.mxu0 0
        %1308 = vmatprep.subr.bf16.mxu0 0
        %1309 = vmatpush1.bf16.msra.mxu0 0
        %1310 = vmatprep.subr.bf16.mxu0 0
        %1311 = vmatpush1.bf16.msra.mxu0 0
        %1312 = vmatprep.subr.bf16.mxu0 0
        %1313 = vmatpush1.bf16.msra.mxu0 %v1298
        %1314 = vmatprep.subr.bf16.mxu0 0
        %1315 = vmatpush1.bf16.msra.mxu0 %v1291
        %1316 = vmatprep.subr.bf16.mxu0 0
        %1317 = vmatpush2.bf16.msra.mxu0 0
        %1318 = vmatprep.subr.bf16.mxu0 0
        %1319 = vmatpush2.bf16.msra.mxu0 0
        %1320 = vmatprep.subr.bf16.mxu0 0
        %1321 = vmatpush2.bf16.msra.mxu0 0
        %1322 = vmatprep.subr.bf16.mxu0 0
        %1323 = vmatpush2.bf16.msra.mxu0 0
        %1324 = vmatprep.subr.bf16.mxu0 0
        %1325 = vmatpush2.bf16.msra.mxu0 0
        %1326 = vmatprep.subr.bf16.mxu0 0
        %1327 = vmatpush2.bf16.msra.mxu0 0
        %1328 = vmatprep.subr.bf16.mxu0 0
        %1329 = vmatpush2.bf16.msra.mxu0 0
        %1330 = vmatprep.subr.bf16.mxu0 0
        %1331 = vmatpush2.bf16.msra.mxu0 0
        %1332 = vmatprep.mubr.bf16.mxu0 0
        %1333 = vmatmul.mubr.bf16.gmra.mxu0 %v1185
        %v1334 = vpop.f32.mrf.mxu0
        %v1335 = vadd.f32 0.0, %v1334
        %v1336 = vpop.f32.mrf.mxu0
        %v1337 = vpop.f32.mrf.mxu0
        %v1338 = vadd.f32 0.0, %v1337
        %v1339 = vpop.f32.mrf.mxu0
        %1340 = vmatprep.mubr.bf16.mxu0 0
        %1341 = vmatmul.mubr.bf16.gmra.mxu0 %v1188
        %v1342 = vpop.f32.mrf.mxu0
        %v1343 = vadd.f32 0.0, %v1342
        %v1344 = vpop.f32.mrf.mxu0
        %v1345 = vpop.f32.mrf.mxu0
        %v1346 = vadd.f32 0.0, %v1345
        %v1347 = vpop.f32.mrf.mxu0
        %1348 = vmatprep.mubr.bf16.mxu0 0
        %1349 = vmatmul.mubr.bf16.gmra.mxu0 %v1191
        %v1350 = vpop.f32.mrf.mxu0
        %v1351 = vadd.f32 0.0, %v1350
        %v1352 = vpop.f32.mrf.mxu0
        %v1353 = vpop.f32.mrf.mxu0
        %v1354 = vadd.f32 0.0, %v1353
        %v1355 = vpop.f32.mrf.mxu0
        %1356 = vmatprep.mubr.bf16.mxu0 0
        %1357 = vmatmul.mubr.bf16.gmra.mxu0 %v1295
        %v1358 = vpop.f32.mrf.mxu0
        %v1359 = vadd.f32 0.0, %v1358
        %v1360 = vpop.f32.mrf.mxu0
        %v1361 = vpop.f32.mrf.mxu0
        %v1362 = vadd.f32 0.0, %v1361
        %v1363 = vpop.f32.mrf.mxu0
        %1364 = vdwg.mxu0
        %v1365 = vadd.f32 %v1231, %v1335
        %v1366 = vadd.f32 %v1234, %v1338
        %v1367 = vadd.f32 %v1239, %v1343
        %v1368 = vadd.f32 %v1242, %v1346
        %v1369 = vadd.f32 %v1247, %v1351
        %v1370 = vadd.f32 %v1250, %v1354
        %v1371 = vadd.f32 %v1255, %v1359
        %v1372 = vadd.f32 %v1258, %v1362
        %v1373 = vld [vmem:[%s6] sm:$0x1]
        %v1375 = vlaneseq
        %v1376 = vshrl.u32 %v1375, 7
        %v1377 = vsub.s32 0, %v1376
        %v1378 = vrot.slane %v1373, %v1377
        %v1380 = vadd.f32 %v1365, %v1378
        %v1381 = vadd.f32 %v1366, %v1378
        %v1382 = vadd.f32 %v1367, %v1378
        %v1383 = vadd.f32 %v1368, %v1378
        %v1384 = vadd.f32 %v1369, %v1378
        %v1385 = vadd.f32 %v1370, %v1378
        %v1386 = vadd.f32 %v1371, %v1378
        %v1387 = vadd.f32 %v1372, %v1378
        %v1388 = vmax.f32 %v1380, 0.0
        %v1389 = vmax.f32 %v1381, 0.0
        %v1390 = vmax.f32 %v1382, 0.0
        %v1391 = vmax.f32 %v1383, 0.0
        %v1392 = vmax.f32 %v1384, 0.0
        %v1393 = vmax.f32 %v1385, 0.0
        %v1394 = vmax.f32 %v1386, 0.0
        %v1395 = vmax.f32 %v1387, 0.0
        %v1396 = vpack.c.bf16 %v1389, %v1388
        %v1397 = vpack.c.bf16 %v1391, %v1390
        %v1398 = vpack.c.bf16 %v1393, %v1392
        %v1399 = vpack.c.bf16 %v1395, %v1394
        %v1400 = vld [vmem:[%s7] sm:$0xf]
        %v1401 = vld [vmem:[%s8] sm:$0x1]
        %v1403 = vlaneseq
        %v1404 = vshrl.u32 %v1403, 7
        %v1405 = vsub.s32 0, %v1404
        %v1406 = vrot.slane %v1401, %v1405
        %v1409 = vsel %vm997, %v1396, 0
        %v1412 = vsel %vm997, %v1397, 0
        %v1415 = vsel %vm997, %v1398, 0
        %v1418 = vsel %vm997, %v1399, 0
        %v1421 = vsel %vm1097, %v1400, 0
        %1423 = vmatprep.subr.bf16.mxu0 0
        %1424 = vmatpush1.bf16.msra.mxu0 0
        %1425 = vmatprep.subr.bf16.mxu0 0
        %1426 = vmatpush1.bf16.msra.mxu0 0
        %1427 = vmatprep.subr.bf16.mxu0 0
        %1428 = vmatpush1.bf16.msra.mxu0 0
        %1429 = vmatprep.subr.bf16.mxu0 0
        %1430 = vmatpush1.bf16.msra.mxu0 0
        %1431 = vmatprep.subr.bf16.mxu0 0
        %1432 = vmatpush1.bf16.msra.mxu0 0
        %1433 = vmatprep.subr.bf16.mxu0 0
        %1434 = vmatpush1.bf16.msra.mxu0 0
        %1435 = vmatprep.subr.bf16.mxu0 0
        %1436 = vmatpush1.bf16.msra.mxu0 0
        %1437 = vmatprep.subr.bf16.mxu0 0
        %1438 = vmatpush1.bf16.msra.mxu0 %v1421
        %1439 = vmatprep.subr.bf16.mxu0 0
        %1440 = vmatpush2.bf16.msra.mxu0 0
        %1441 = vmatprep.subr.bf16.mxu0 0
        %1442 = vmatpush2.bf16.msra.mxu0 0
        %1443 = vmatprep.subr.bf16.mxu0 0
        %1444 = vmatpush2.bf16.msra.mxu0 0
        %1445 = vmatprep.subr.bf16.mxu0 0
        %1446 = vmatpush2.bf16.msra.mxu0 0
        %1447 = vmatprep.subr.bf16.mxu0 0
        %1448 = vmatpush2.bf16.msra.mxu0 0
        %1449 = vmatprep.subr.bf16.mxu0 0
        %1450 = vmatpush2.bf16.msra.mxu0 0
        %1451 = vmatprep.subr.bf16.mxu0 0
        %1452 = vmatpush2.bf16.msra.mxu0 0
        %1453 = vmatprep.subr.bf16.mxu0 0
        %1454 = vmatpush2.bf16.msra.mxu0 0
        %1455 = vmatprep.mubr.bf16.mxu0 0
        %1456 = vmatmul.mubr.bf16.gmra.mxu0 %v1409
        %v1457 = vpop.f32.mrf.mxu0
        %v1458 = vadd.f32 %v1406, %v1457
        %v1459 = vpop.f32.mrf.mxu0
        %v1460 = vpop.f32.mrf.mxu0
        %v1461 = vadd.f32 %v1406, %v1460
        %v1462 = vpop.f32.mrf.mxu0
        %1463 = vmatprep.mubr.bf16.mxu0 0
        %1464 = vmatmul.mubr.bf16.gmra.mxu0 %v1412
        %v1465 = vpop.f32.mrf.mxu0
        %v1466 = vadd.f32 %v1406, %v1465
        %v1467 = vpop.f32.mrf.mxu0
        %v1468 = vpop.f32.mrf.mxu0
        %v1469 = vadd.f32 %v1406, %v1468
        %v1470 = vpop.f32.mrf.mxu0
        %1471 = vmatprep.mubr.bf16.mxu0 0
        %1472 = vmatmul.mubr.bf16.gmra.mxu0 %v1415
        %v1473 = vpop.f32.mrf.mxu0
        %v1474 = vadd.f32 %v1406, %v1473
        %v1475 = vpop.f32.mrf.mxu0
        %v1476 = vpop.f32.mrf.mxu0
        %v1477 = vadd.f32 %v1406, %v1476
        %v1478 = vpop.f32.mrf.mxu0
        %1479 = vmatprep.mubr.bf16.mxu0 0
        %1480 = vmatmul.mubr.bf16.gmra.mxu0 %v1418
        %v1481 = vpop.f32.mrf.mxu0
        %v1482 = vadd.f32 %v1406, %v1481
        %v1483 = vpop.f32.mrf.mxu0
        %v1484 = vpop.f32.mrf.mxu0
        %v1485 = vadd.f32 %v1406, %v1484
        %v1486 = vpop.f32.mrf.mxu0
        %1487 = vdwg.mxu0
        %v1488 = vmax.f32 %v1458, 0.0
        %v1489 = vmax.f32 %v1461, 0.0
        %v1490 = vmax.f32 %v1466, 0.0
        %v1491 = vmax.f32 %v1469, 0.0
        %v1492 = vmax.f32 %v1474, 0.0
        %v1493 = vmax.f32 %v1477, 0.0
        %v1494 = vmax.f32 %v1482, 0.0
        %v1495 = vmax.f32 %v1485, 0.0
        %v1496 = vld [vmem:[%s9] sm:$0x3]
        %v1497 = vld [vmem:[%s10] sm:$0x1]
        %v1499 = vlaneseq
        %v1500 = vshrl.u32 %v1499, 7
        %v1501 = vsub.s32 0, %v1500
        %v1502 = vrot.slane %v1497, %v1501
        %v1505 = vsel %vm590, %v1496, 0
        %1507 = vmatprep.subr.bf16.mxu0 0
        %1508 = vmatpush1.bf16.msra.mxu0 0
        %1509 = vmatprep.subr.bf16.mxu0 0
        %1510 = vmatpush1.bf16.msra.mxu0 0
        %1511 = vmatprep.subr.bf16.mxu0 0
        %1512 = vmatpush1.bf16.msra.mxu0 0
        %1513 = vmatprep.subr.bf16.mxu0 0
        %1514 = vmatpush1.bf16.msra.mxu0 0
        %1515 = vmatprep.subr.bf16.mxu0 0
        %1516 = vmatpush1.bf16.msra.mxu0 0
        %1517 = vmatprep.subr.bf16.mxu0 0
        %1518 = vmatpush1.bf16.msra.mxu0 0
        %1519 = vmatprep.subr.bf16.mxu0 0
        %1520 = vmatpush1.bf16.msra.mxu0 0
        %1521 = vmatprep.subr.bf16.mxu0 0
        %1522 = vmatpush1.bf16.msra.mxu0 %v1505
        %1523 = vmatprep.subr.bf16.mxu0 0
        %1524 = vmatpush2.bf16.msra.mxu0 0
        %1525 = vmatprep.subr.bf16.mxu0 0
        %1526 = vmatpush2.bf16.msra.mxu0 0
        %1527 = vmatprep.subr.bf16.mxu0 0
        %1528 = vmatpush2.bf16.msra.mxu0 0
        %1529 = vmatprep.subr.bf16.mxu0 0
        %1530 = vmatpush2.bf16.msra.mxu0 0
        %1531 = vmatprep.subr.bf16.mxu0 0
        %1532 = vmatpush2.bf16.msra.mxu0 0
        %1533 = vmatprep.subr.bf16.mxu0 0
        %1534 = vmatpush2.bf16.msra.mxu0 0
        %1535 = vmatprep.subr.bf16.mxu0 0
        %1536 = vmatpush2.bf16.msra.mxu0 0
        %1537 = vmatprep.subr.bf16.mxu0 0
        %1538 = vmatpush2.bf16.msra.mxu0 0
        %1539 = vmatprep.mubr.bf16.mxu0 0
        %1540 = vmatmul.mubr.bf16.gmra.mxu0 %v579
        %v1541 = vpop.f32.mrf.mxu0
        %v1542 = vadd.f32 %v1502, %v1541
        %v1543 = vpop.f32.mrf.mxu0
        %v1544 = vpop.f32.mrf.mxu0
        %v1545 = vadd.f32 %v1502, %v1544
        %v1546 = vpop.f32.mrf.mxu0
        %1547 = vmatprep.mubr.bf16.mxu0 0
        %1548 = vmatmul.mubr.bf16.gmra.mxu0 %v582
        %v1549 = vpop.f32.mrf.mxu0
        %v1550 = vadd.f32 %v1502, %v1549
        %v1551 = vpop.f32.mrf.mxu0
        %v1552 = vpop.f32.mrf.mxu0
        %v1553 = vadd.f32 %v1502, %v1552
        %v1554 = vpop.f32.mrf.mxu0
        %1555 = vmatprep.mubr.bf16.mxu0 0
        %1556 = vmatmul.mubr.bf16.gmra.mxu0 %v585
        %v1557 = vpop.f32.mrf.mxu0
        %v1558 = vadd.f32 %v1502, %v1557
        %v1559 = vpop.f32.mrf.mxu0
        %v1560 = vpop.f32.mrf.mxu0
        %v1561 = vadd.f32 %v1502, %v1560
        %v1562 = vpop.f32.mrf.mxu0
        %1563 = vmatprep.mubr.bf16.mxu0 0
        %1564 = vmatmul.mubr.bf16.gmra.mxu0 %v588
        %v1565 = vpop.f32.mrf.mxu0
        %v1566 = vadd.f32 %v1502, %v1565
        %v1567 = vpop.f32.mrf.mxu0
        %v1568 = vpop.f32.mrf.mxu0
        %v1569 = vadd.f32 %v1502, %v1568
        %v1570 = vpop.f32.mrf.mxu0
        %1571 = vdwg.mxu0
        %v1572 = vmax.f32 %v1542, 0.0
        %v1573 = vmax.f32 %v1545, 0.0
        %v1574 = vmax.f32 %v1550, 0.0
        %v1575 = vmax.f32 %v1553, 0.0
        %v1576 = vmax.f32 %v1558, 0.0
        %v1577 = vmax.f32 %v1561, 0.0
        %v1578 = vmax.f32 %v1566, 0.0
        %v1579 = vmax.f32 %v1569, 0.0
        %v1580 = vadd.f32 %v1572, %v1488
        %v1581 = vadd.f32 %v1573, %v1489
        %v1582 = vadd.f32 %v1574, %v1490
        %v1583 = vadd.f32 %v1575, %v1491
        %v1584 = vadd.f32 %v1576, %v1492
        %v1585 = vadd.f32 %v1577, %v1493
        %v1586 = vadd.f32 %v1578, %v1494
        %v1587 = vadd.f32 %v1579, %v1495
        %v1588 = vpack.c.bf16 %v1580, %v1580
        %v1589 = vpack.c.bf16 %v1581, %v1581
        %v1590 = vpack.c.bf16 %v1582, %v1582
        %v1591 = vpack.c.bf16 %v1583, %v1583
        %v1592 = vpack.c.bf16 %v1584, %v1584
        %v1593 = vpack.c.bf16 %v1585, %v1585
        %v1594 = vpack.c.bf16 %v1586, %v1586
        %v1595 = vpack.c.bf16 %v1587, %v1587
        %vm1596 = vcmask 125952
        %1597 = vst.msk [vmem:[%s490] sm:$0xf] %vm1596, %v1588
        %1598 = vst.msk [vmem:[%s490 + $0x4] sm:$0xf] %vm1596, %v1589
        %1599 = vst.msk [vmem:[%s490 + $0x8] sm:$0xf] %vm1596, %v1590
        %1600 = vst.msk [vmem:[%s490 + $0xc] sm:$0xf] %vm1596, %v1591
        %1601 = vst.msk [vmem:[%s490 + $0x10] sm:$0xf] %vm1596, %v1592
        %1602 = vst.msk [vmem:[%s490 + $0x14] sm:$0xf] %vm1596, %v1593
        %1603 = vst.msk [vmem:[%s490 + $0x18] sm:$0xf] %vm1596, %v1594
        %1604 = vst.msk [vmem:[%s490 + $0x1c] sm:$0xf] %vm1596, %v1595
        %s1605 = sand.u32 %s315, 1
        %s1606 = scalar_lea.sflag [#allocation3], %s1605
        %s1607 = sand.u32 %s315, 1
        %s1608 = smul.addr %s1607, 32
        %s1609 = scalar_lea.vmem [#allocation2], %s1608
        // Predicated region
        $region65: #{tpu_custom_call.1} parent=63 // pred_check
          %p1610 = pneg %p325
        $region66: #{tpu_custom_call.1} parent=63 // pred_check_branch
          %1612 = sbr.rel (%p1610) target = $region68
        $region67: #{tpu_custom_call.1} parent=63 // pred_region
          %s1613 = smul.u32 8, %s30
          %s1615 = ssub.s32 512, 512
          %1616 = vsyncadd %s1606, %s1615
          %s1617 = smul.addr %s29, 8
          %s1618 = sadd.s32 %s1613, %s1617
          %s1619 = smul.addr %s1618, 64
          %s1620 = scalar_lea.hbm %s11, %s1619
          %s1621 = sshll.u32 %s1609, 4
          %s1622 = int_to_ptr.vmem [resolvable:$true] %s1621
          %1627 = dma.vmem_to_hbm [thread:$0]  %s1622, 512, %s1620, %s1606, 64, 64, 4
        $region68: #{tpu_custom_call.1} parent=63 // pred_fallthru
          _
      $region64: #{tpu_custom_call.1} parent=5 // pred_fallthru
        _
      %p1628 = scmp.le.s32.totalorder 2, %s20
      // Predicated region
      $region69: #{tpu_custom_call.1} parent=5 // pred_check
        %p1629 = pneg %p1628
      $region70: #{tpu_custom_call.1} parent=5 // pred_check_branch
        %1631 = sbr.rel (%p1629) target = $region72
      $region71: #{tpu_custom_call.1} parent=5 // pred_region
        %s1632 = ssub.s32 %s20, 2
        // Predicated region
        $region73: #{tpu_custom_call.1} parent=71 // pred_check
          %p1633 = pneg %p331
        $region74: #{tpu_custom_call.1} parent=71 // pred_check_branch
          %1635 = sbr.rel (%p1633) target = $region76
        $region75: #{tpu_custom_call.1} parent=71 // pred_region
          %s1636 = sand.u32 %s316, 1
          %s1637 = scalar_lea.sflag [#allocation3], %s1636
          %s1638 = sand.u32 %s316, 1
          %s1639 = smul.addr %s1638, 32
          %s1640 = scalar_lea.vmem [#allocation2], %s1639
          %1641 = dma.done %s1637, 512
        $region76: #{tpu_custom_call.1} parent=71 // pred_fallthru
          _
      $region72: #{tpu_custom_call.1} parent=5 // pred_fallthru
        _
    $region6: #{tpu_custom_call.1} parent=1 // loop_footer
      %s24 = sadd.s32 1, %s20
    $region7: #{tpu_custom_call.1} parent=1 // loop_footer_branch
      %19 = sbr.rel target = $region3
    $region8: #{tpu_custom_call.1} parent=1 // loop_exit
      _
    %1642 = vsyncpa [#allocation3], 1
    %s1643 = scalar_lea.sflag [#allocation3], 1
    %1644 = vsyncpa %s1643, 1

</llo_original>
